<compile_context>
chip_gen: v6e
topology: v6e:2x2x1
jax: 0.10.0
libtpu: 0.0.40
codegen_flags: <defaults>
</compile_context>

<pallas_src>
import functools

import jax
import jax.numpy as jnp
from jax.experimental import pallas as pl
from jax.experimental.pallas import tpu as pltpu

HIDDEN_SIZE = 20
NUM_LAYERS = 4


def sensor_net_kernel(x_ref, w_ih0_ref, w_hh_ref, w_ih_rest_ref, b_ref,
                      fc_w_ref, fc_b_ref, out_ref, seq_buf, *, batch, seq_len):
    """Whole forward pass in one kernel invocation (everything fits in VMEM).

    x_ref:         (B*T, I)        input, batch-major rows (row = b*T + t)
    w_ih0_ref:     (I, 4Hp)        layer-0 input weights (transposed, scaled, padded)
    w_hh_ref:      (L, Hp, 4Hp)    recurrent weights per layer (transposed, scaled, padded)
    w_ih_rest_ref: (L-1, Hp, 4Hp)  layers 1..L-1 input weights (transposed, scaled, padded)
    b_ref:         (L, 1, 4Hp)     (b_ih + b_hh) per layer, scaled, padded
    fc_w_ref:      (Hp, O)         fc weight (transposed, zero-padded rows)
    fc_b_ref:      (1, O)          fc bias
    out_ref:       (B, O)          output
    seq_buf:       (T*B, Hp)       VMEM scratch: per-layer output sequence, time-major rows
    """
    B, T = batch, seq_len
    L, Hp, G = w_hh_ref.shape  # G == 4*Hp == 128

    def cell(gates, c):
        # Single EUP pass over all four gates; i/f/o columns already hold z/2.
        t_all = jnp.tanh(gates)
        i = 0.5 * t_all[:, 0 * Hp:1 * Hp] + 0.5   # sigmoid(z) = 0.5*tanh(z/2)+0.5
        f = 0.5 * t_all[:, 1 * Hp:2 * Hp] + 0.5
        g = t_all[:, 2 * Hp:3 * Hp]
        o = 0.5 * t_all[:, 3 * Hp:4 * Hp] + 0.5
        c_new = f * c + i * g
        h_new = o * jnp.tanh(c_new)
        return h_new, c_new

    # ----- layer 0: batched input projection (bias folded in), then recurrence -----
    pre0 = (jnp.dot(x_ref[...], w_ih0_ref[...], preferred_element_type=jnp.float32)
            + b_ref[0])                       # (B*T, 4Hp), batch-major rows
    pre0 = pre0.reshape(B, T, G)

    h = jnp.zeros((B, Hp), jnp.float32)
    c = jnp.zeros((B, Hp), jnp.float32)
    w_hh0 = w_hh_ref[0]
    for t in range(T):                        # static trip count, fully unrolled
        gates = pre0[:, t, :] + jnp.dot(h, w_hh0, preferred_element_type=jnp.float32)
        h, c = cell(gates, c)
        seq_buf[t * B:(t + 1) * B, :] = h     # time-major rows for next layer

    # ----- layers 1..L-1: batched input projection over the stored sequence -----
    for l in range(1, L):
        pre = (jnp.dot(seq_buf[...], w_ih_rest_ref[l - 1],
                       preferred_element_type=jnp.float32)
               + b_ref[l])                    # (T*B, 4Hp), time-major rows
        w_hh = w_hh_ref[l]
        h = jnp.zeros((B, Hp), jnp.float32)
        c = jnp.zeros((B, Hp), jnp.float32)
        for t in range(T):
            gates = (pre[t * B:(t + 1) * B, :]
                     + jnp.dot(h, w_hh, preferred_element_type=jnp.float32))
            h, c = cell(gates, c)
            if l < L - 1:
                seq_buf[t * B:(t + 1) * B, :] = h

    # ----- fc on the last timestep of the last layer -----
    out_ref[...] = (jnp.dot(h, fc_w_ref[...], preferred_element_type=jnp.float32)
                    + fc_b_ref[...])


# ----------------------------- wrapper-side prep -----------------------------

def _prep_gate_weight(w, hp):
    """PyTorch (4H, in_dim) -> (in_dim, 4*hp): transpose, scale i/f/o cols by 0.5,
    zero-pad each gate block H -> hp."""
    four_h, in_dim = w.shape
    h = four_h // 4
    scale = jnp.array([0.5, 0.5, 1.0, 0.5], jnp.float32).reshape(1, 4, 1)
    wt = w.T.reshape(in_dim, 4, h) * scale
    wt = jnp.pad(wt, ((0, 0), (0, 0), (0, hp - h)))
    return wt.reshape(in_dim, 4 * hp)


def _prep_gate_bias(b_ih, b_hh, hp):
    """(4H,)+(4H,) -> (1, 4*hp) with i/f/o blocks scaled by 0.5 and zero padding."""
    h = b_ih.shape[0] // 4
    scale = jnp.array([0.5, 0.5, 1.0, 0.5], jnp.float32).reshape(4, 1)
    b = (b_ih + b_hh).reshape(4, h) * scale
    b = jnp.pad(b, ((0, 0), (0, hp - h)))
    return b.reshape(1, 4 * hp)


def init_params(key, input_size, hidden_size, output_size, num_layers):
    """Deterministic init matching PyTorch shapes (uniform(-1/sqrt(H), 1/sqrt(H)))."""
    bound = 1.0 / float(hidden_size) ** 0.5
    n_keys = 4 * num_layers + 2
    keys = jax.random.split(key, n_keys)
    kidx = 0

    def u(shape):
        nonlocal kidx
        k = keys[kidx]
        kidx += 1
        return jax.random.uniform(k, shape, jnp.float32, minval=-bound, maxval=bound)

    H4 = 4 * hidden_size
    w_ih, w_hh, b_ih, b_hh = [], [], [], []
    for layer in range(num_layers):
        in_dim = input_size if layer == 0 else hidden_size
        w_ih.append(u((H4, in_dim)))   # PyTorch weight_ih_l{k}
        w_hh.append(u((H4, hidden_size)))
        b_ih.append(u((H4,)))
        b_hh.append(u((H4,)))
    fc_w = u((output_size, hidden_size))
    fc_b = u((output_size,))
    return dict(w_ih=w_ih, w_hh=w_hh, b_ih=b_ih, b_hh=b_hh, fc_w=fc_w, fc_b=fc_b)


@functools.partial(jax.jit, static_argnames=("output_size",))
def sensor_network_forward(x, params, output_size):
    """x: (B, T, I) batch_first, like the PyTorch module."""
    B, T, I = x.shape
    H = params["w_hh"][0].shape[1]
    L = len(params["w_ih"])
    Hp = ((H + 31) // 32) * 32   # pad hidden so 4*Hp is a multiple of 128 lanes

    # Parameter plumbing: transpose, fuse 0.5 sigmoid pre-scale, zero-pad H -> Hp.
    w_ih0 = _prep_gate_weight(params["w_ih"][0], Hp)                       # (I, 4Hp)
    w_hh_all = jnp.stack([
        jnp.pad(_prep_gate_weight(params["w_hh"][l], Hp), ((0, Hp - H), (0, 0)))
        for l in range(L)])                                                # (L, Hp, 4Hp)
    w_ih_rest = jnp.stack([
        jnp.pad(_prep_gate_weight(params["w_ih"][l], Hp), ((0, Hp - H), (0, 0)))
        for l in range(1, L)])                                             # (L-1, Hp, 4Hp)
    b_all = jnp.stack([_prep_gate_bias(params["b_ih"][l], params["b_hh"][l], Hp)
                       for l in range(L)])                                 # (L, 1, 4Hp)
    fc_w = jnp.pad(params["fc_w"].T, ((0, Hp - H), (0, 0)))                # (Hp, O)
    fc_b = params["fc_b"][None, :]                                         # (1, O)

    # No transpose of x: a contiguous (B,T,I)->(B*T,I) reshape is free in XLA.
    x2d = x.reshape(B * T, I).astype(jnp.float32)

    kernel = functools.partial(sensor_net_kernel, batch=B, seq_len=T)
    vmem = pl.BlockSpec(memory_space=pltpu.MemorySpace.VMEM)
    return pl.pallas_call(
        kernel,
        out_shape=jax.ShapeDtypeStruct((B, output_size), jnp.float32),
        in_specs=[vmem] * 7,
        out_specs=vmem,
        scratch_shapes=[pltpu.VMEM((T * B, Hp), jnp.float32)],
    )(x2d, w_ih0, w_hh_all, w_ih_rest, b_all, fc_w, fc_b)


def reference_forward(x, params):
    """Pure-JAX replica of the PyTorch forward (for correctness checking)."""
    B, T, _ = x.shape
    H = params["w_hh"][0].shape[1]
    L = len(params["w_ih"])
    layer_in = x.astype(jnp.float32)
    for l in range(L):
        w_ih = params["w_ih"][l]
        w_hh = params["w_hh"][l]
        b = params["b_ih"][l] + params["b_hh"][l]
        h = jnp.zeros((B, H), jnp.float32)
        c = jnp.zeros((B, H), jnp.float32)
        outs = []
        for t in range(T):
            gates = layer_in[:, t, :] @ w_ih.T + h @ w_hh.T + b
            i = jax.nn.sigmoid(gates[:, 0 * H:1 * H])
            f = jax.nn.sigmoid(gates[:, 1 * H:2 * H])
            g = jnp.tanh(gates[:, 2 * H:3 * H])
            o = jax.nn.sigmoid(gates[:, 3 * H:4 * H])
            c = f * c + i * g
            h = o * jnp.tanh(c)
            outs.append(h)
        layer_in = jnp.stack(outs, axis=1)
    return layer_in[:, -1, :] @ params["fc_w"].T + params["fc_b"]


if __name__ == "__main__":
    BATCH = 2
    SEQ = 8
    INPUT_SIZE = 16
    OUTPUT_SIZE = 4

    key = jax.random.PRNGKey(0)
    key_x, key_p = jax.random.split(key)
    x = jax.random.normal(key_x, (BATCH, SEQ, INPUT_SIZE), dtype=jnp.float32)
    params = init_params(key_p, INPUT_SIZE, HIDDEN_SIZE, OUTPUT_SIZE, NUM_LAYERS)

    out = sensor_network_forward(x, params, OUTPUT_SIZE)
    out = jax.block_until_ready(out)

    ref = jax.block_until_ready(reference_forward(x, params))
    assert out.shape == (BATCH, OUTPUT_SIZE)
    assert jnp.max(jnp.abs(out - ref)) < 5e-4, "Pallas kernel mismatch vs reference"

    print("KERNEL_OK")
</pallas_src>

<mosaic_0001>
module attributes {stable_mosaic.version = 11 : i64} {
  func.func @sensor_net_kernel(%arg0: memref<16x16xf32, #tpu.memory_space<vmem>>, %arg1: memref<16x128xf32, #tpu.memory_space<vmem>>, %arg2: memref<4x32x128xf32, #tpu.memory_space<vmem>>, %arg3: memref<3x32x128xf32, #tpu.memory_space<vmem>>, %arg4: memref<4x1x128xf32, #tpu.memory_space<vmem>>, %arg5: memref<32x4xf32, #tpu.memory_space<vmem>>, %arg6: memref<1x4xf32, #tpu.memory_space<vmem>>, %arg7: memref<2x4xf32, #tpu.memory_space<vmem>>, %arg8: memref<16x32xf32, #tpu.memory_space<vmem>>) attributes {dimension_semantics = [], scalar_prefetch = 0 : i64, scratch_operands = 1 : i64, tpu.core_type = #tpu.core_type<tc>} {
    %c0 = arith.constant 0 : index
    %c0_0 = arith.constant 0 : index
    %0 = vector.load %arg0[%c0, %c0_0] : memref<16x16xf32, #tpu.memory_space<vmem>>, vector<16x16xf32>
    %c0_1 = arith.constant 0 : index
    %c0_2 = arith.constant 0 : index
    %1 = vector.load %arg1[%c0_1, %c0_2] : memref<16x128xf32, #tpu.memory_space<vmem>>, vector<16x128xf32>
    %cst = arith.constant dense<0.000000e+00> : vector<16x128xf32>
    %2 = tpu.matmul %0, %1, %cst {dimension_numbers = #tpu.dot_dimension_numbers<[1], [0], [0], [1], [0, 0, 1, 1], [], []>} : vector<16x16xf32>, vector<16x128xf32>, vector<16x128xf32> -> vector<16x128xf32>
    %c0_3 = arith.constant 0 : index
    %c0_4 = arith.constant 0 : index
    %c0_5 = arith.constant 0 : index
    %3 = vector.load %arg4[%c0_3, %c0_4, %c0_5] : memref<4x1x128xf32, #tpu.memory_space<vmem>>, vector<1x1x128xf32>
    %4 = vector.shape_cast %3 : vector<1x1x128xf32> to vector<1x128xf32>
    %5 = vector.broadcast %4 : vector<1x128xf32> to vector<16x128xf32>
    %6 = arith.addf %2, %5 : vector<16x128xf32>
    %7 = vector.shape_cast %6 : vector<16x128xf32> to vector<2x8x128xf32>
    %cst_6 = arith.constant 0.000000e+00 : f32
    %8 = vector.broadcast %cst_6 : f32 to vector<2x32xf32>
    %cst_7 = arith.constant 0.000000e+00 : f32
    %9 = vector.broadcast %cst_7 : f32 to vector<2x32xf32>
    %c0_8 = arith.constant 0 : index
    %c0_9 = arith.constant 0 : index
    %c0_10 = arith.constant 0 : index
    %10 = vector.load %arg2[%c0_8, %c0_9, %c0_10] : memref<4x32x128xf32, #tpu.memory_space<vmem>>, vector<1x32x128xf32>
    %11 = vector.shape_cast %10 : vector<1x32x128xf32> to vector<32x128xf32>
    %12 = vector.extract_strided_slice %7 {offsets = [0, 0, 0], sizes = [2, 1, 128], strides = [1, 1, 1]} : vector<2x8x128xf32> to vector<2x1x128xf32>
    %13 = vector.shape_cast %12 : vector<2x1x128xf32> to vector<2x128xf32>
    %cst_11 = arith.constant dense<0.000000e+00> : vector<2x128xf32>
    %14 = tpu.matmul %8, %11, %cst_11 {dimension_numbers = #tpu.dot_dimension_numbers<[1], [0], [0], [1], [0, 0, 1, 1], [], []>} : vector<2x32xf32>, vector<32x128xf32>, vector<2x128xf32> -> vector<2x128xf32>
    %15 = arith.addf %13, %14 : vector<2x128xf32>
    %16 = math.tanh %15 : vector<2x128xf32>
    %17 = vector.extract_strided_slice %16 {offsets = [0, 0], sizes = [2, 32], strides = [1, 1]} : vector<2x128xf32> to vector<2x32xf32>
    %cst_12 = arith.constant 5.000000e-01 : f32
    %18 = vector.broadcast %cst_12 : f32 to vector<2x32xf32>
    %19 = arith.mulf %18, %17 : vector<2x32xf32>
    %cst_13 = arith.constant 5.000000e-01 : f32
    %20 = vector.broadcast %cst_13 : f32 to vector<2x32xf32>
    %21 = arith.addf %19, %20 : vector<2x32xf32>
    %22 = vector.extract_strided_slice %16 {offsets = [0, 32], sizes = [2, 32], strides = [1, 1]} : vector<2x128xf32> to vector<2x32xf32>
    %cst_14 = arith.constant 5.000000e-01 : f32
    %23 = vector.broadcast %cst_14 : f32 to vector<2x32xf32>
    %24 = arith.mulf %23, %22 : vector<2x32xf32>
    %cst_15 = arith.constant 5.000000e-01 : f32
    %25 = vector.broadcast %cst_15 : f32 to vector<2x32xf32>
    %26 = arith.addf %24, %25 : vector<2x32xf32>
    %27 = vector.extract_strided_slice %16 {offsets = [0, 64], sizes = [2, 32], strides = [1, 1]} : vector<2x128xf32> to vector<2x32xf32>
    %28 = vector.extract_strided_slice %16 {offsets = [0, 96], sizes = [2, 32], strides = [1, 1]} : vector<2x128xf32> to vector<2x32xf32>
    %cst_16 = arith.constant 5.000000e-01 : f32
    %29 = vector.broadcast %cst_16 : f32 to vector<2x32xf32>
    %30 = arith.mulf %29, %28 : vector<2x32xf32>
    %cst_17 = arith.constant 5.000000e-01 : f32
    %31 = vector.broadcast %cst_17 : f32 to vector<2x32xf32>
    %32 = arith.addf %30, %31 : vector<2x32xf32>
    %33 = arith.mulf %26, %9 : vector<2x32xf32>
    %34 = arith.mulf %21, %27 : vector<2x32xf32>
    %35 = arith.addf %33, %34 : vector<2x32xf32>
    %36 = math.tanh %35 : vector<2x32xf32>
    %37 = arith.mulf %32, %36 : vector<2x32xf32>
    %c0_18 = arith.constant 0 : index
    %c0_19 = arith.constant 0 : index
    %38 = vector.load %arg8[%c0_18, %c0_19] : memref<16x32xf32, #tpu.memory_space<vmem>>, vector<2x32xf32>
    tpu.vector_store %arg8[%c0_18, %c0_19], %37 {strides = array<i32>} : memref<16x32xf32, #tpu.memory_space<vmem>>, vector<2x32xf32>,
    %39 = vector.extract_strided_slice %7 {offsets = [0, 1, 0], sizes = [2, 1, 128], strides = [1, 1, 1]} : vector<2x8x128xf32> to vector<2x1x128xf32>
    %40 = vector.shape_cast %39 : vector<2x1x128xf32> to vector<2x128xf32>
    %cst_20 = arith.constant dense<0.000000e+00> : vector<2x128xf32>
    %41 = tpu.matmul %37, %11, %cst_20 {dimension_numbers = #tpu.dot_dimension_numbers<[1], [0], [0], [1], [0, 0, 1, 1], [], []>} : vector<2x32xf32>, vector<32x128xf32>, vector<2x128xf32> -> vector<2x128xf32>
    %42 = arith.addf %40, %41 : vector<2x128xf32>
    %43 = math.tanh %42 : vector<2x128xf32>
    %44 = vector.extract_strided_slice %43 {offsets = [0, 0], sizes = [2, 32], strides = [1, 1]} : vector<2x128xf32> to vector<2x32xf32>
    %cst_21 = arith.constant 5.000000e-01 : f32
    %45 = vector.broadcast %cst_21 : f32 to vector<2x32xf32>
    %46 = arith.mulf %45, %44 : vector<2x32xf32>
    %cst_22 = arith.constant 5.000000e-01 : f32
    %47 = vector.broadcast %cst_22 : f32 to vector<2x32xf32>
    %48 = arith.addf %46, %47 : vector<2x32xf32>
    %49 = vector.extract_strided_slice %43 {offsets = [0, 32], sizes = [2, 32], strides = [1, 1]} : vector<2x128xf32> to vector<2x32xf32>
    %cst_23 = arith.constant 5.000000e-01 : f32
    %50 = vector.broadcast %cst_23 : f32 to vector<2x32xf32>
    %51 = arith.mulf %50, %49 : vector<2x32xf32>
    %cst_24 = arith.constant 5.000000e-01 : f32
    %52 = vector.broadcast %cst_24 : f32 to vector<2x32xf32>
    %53 = arith.addf %51, %52 : vector<2x32xf32>
    %54 = vector.extract_strided_slice %43 {offsets = [0, 64], sizes = [2, 32], strides = [1, 1]} : vector<2x128xf32> to vector<2x32xf32>
    %55 = vector.extract_strided_slice %43 {offsets = [0, 96], sizes = [2, 32], strides = [1, 1]} : vector<2x128xf32> to vector<2x32xf32>
    %cst_25 = arith.constant 5.000000e-01 : f32
    %56 = vector.broadcast %cst_25 : f32 to vector<2x32xf32>
    %57 = arith.mulf %56, %55 : vector<2x32xf32>
    %cst_26 = arith.constant 5.000000e-01 : f32
    %58 = vector.broadcast %cst_26 : f32 to vector<2x32xf32>
    %59 = arith.addf %57, %58 : vector<2x32xf32>
    %60 = arith.mulf %53, %35 : vector<2x32xf32>
    %61 = arith.mulf %48, %54 : vector<2x32xf32>
    %62 = arith.addf %60, %61 : vector<2x32xf32>
    %63 = math.tanh %62 : vector<2x32xf32>
    %64 = arith.mulf %59, %63 : vector<2x32xf32>
    %c2 = arith.constant 2 : index
    %c0_27 = arith.constant 0 : index
    %65 = vector.load %arg8[%c2, %c0_27] : memref<16x32xf32, #tpu.memory_space<vmem>>, vector<2x32xf32>
    tpu.vector_store %arg8[%c2, %c0_27], %64 {strides = array<i32>} : memref<16x32xf32, #tpu.memory_space<vmem>>, vector<2x32xf32>,
    %66 = vector.extract_strided_slice %7 {offsets = [0, 2, 0], sizes = [2, 1, 128], strides = [1, 1, 1]} : vector<2x8x128xf32> to vector<2x1x128xf32>
    %67 = vector.shape_cast %66 : vector<2x1x128xf32> to vector<2x128xf32>
    %cst_28 = arith.constant dense<0.000000e+00> : vector<2x128xf32>
    %68 = tpu.matmul %64, %11, %cst_28 {dimension_numbers = #tpu.dot_dimension_numbers<[1], [0], [0], [1], [0, 0, 1, 1], [], []>} : vector<2x32xf32>, vector<32x128xf32>, vector<2x128xf32> -> vector<2x128xf32>
    %69 = arith.addf %67, %68 : vector<2x128xf32>
    %70 = math.tanh %69 : vector<2x128xf32>
    %71 = vector.extract_strided_slice %70 {offsets = [0, 0], sizes = [2, 32], strides = [1, 1]} : vector<2x128xf32> to vector<2x32xf32>
    %cst_29 = arith.constant 5.000000e-01 : f32
    %72 = vector.broadcast %cst_29 : f32 to vector<2x32xf32>
    %73 = arith.mulf %72, %71 : vector<2x32xf32>
    %cst_30 = arith.constant 5.000000e-01 : f32
    %74 = vector.broadcast %cst_30 : f32 to vector<2x32xf32>
    %75 = arith.addf %73, %74 : vector<2x32xf32>
    %76 = vector.extract_strided_slice %70 {offsets = [0, 32], sizes = [2, 32], strides = [1, 1]} : vector<2x128xf32> to vector<2x32xf32>
    %cst_31 = arith.constant 5.000000e-01 : f32
    %77 = vector.broadcast %cst_31 : f32 to vector<2x32xf32>
    %78 = arith.mulf %77, %76 : vector<2x32xf32>
    %cst_32 = arith.constant 5.000000e-01 : f32
    %79 = vector.broadcast %cst_32 : f32 to vector<2x32xf32>
    %80 = arith.addf %78, %79 : vector<2x32xf32>
    %81 = vector.extract_strided_slice %70 {offsets = [0, 64], sizes = [2, 32], strides = [1, 1]} : vector<2x128xf32> to vector<2x32xf32>
    %82 = vector.extract_strided_slice %70 {offsets = [0, 96], sizes = [2, 32], strides = [1, 1]} : vector<2x128xf32> to vector<2x32xf32>
    %cst_33 = arith.constant 5.000000e-01 : f32
    %83 = vector.broadcast %cst_33 : f32 to vector<2x32xf32>
    %84 = arith.mulf %83, %82 : vector<2x32xf32>
    %cst_34 = arith.constant 5.000000e-01 : f32
    %85 = vector.broadcast %cst_34 : f32 to vector<2x32xf32>
    %86 = arith.addf %84, %85 : vector<2x32xf32>
    %87 = arith.mulf %80, %62 : vector<2x32xf32>
    %88 = arith.mulf %75, %81 : vector<2x32xf32>
    %89 = arith.addf %87, %88 : vector<2x32xf32>
    %90 = math.tanh %89 : vector<2x32xf32>
    %91 = arith.mulf %86, %90 : vector<2x32xf32>
    %c4 = arith.constant 4 : index
    %c0_35 = arith.constant 0 : index
    %92 = vector.load %arg8[%c4, %c0_35] : memref<16x32xf32, #tpu.memory_space<vmem>>, vector<2x32xf32>
    tpu.vector_store %arg8[%c4, %c0_35], %91 {strides = array<i32>} : memref<16x32xf32, #tpu.memory_space<vmem>>, vector<2x32xf32>,
    %93 = vector.extract_strided_slice %7 {offsets = [0, 3, 0], sizes = [2, 1, 128], strides = [1, 1, 1]} : vector<2x8x128xf32> to vector<2x1x128xf32>
    %94 = vector.shape_cast %93 : vector<2x1x128xf32> to vector<2x128xf32>
    %cst_36 = arith.constant dense<0.000000e+00> : vector<2x128xf32>
    %95 = tpu.matmul %91, %11, %cst_36 {dimension_numbers = #tpu.dot_dimension_numbers<[1], [0], [0], [1], [0, 0, 1, 1], [], []>} : vector<2x32xf32>, vector<32x128xf32>, vector<2x128xf32> -> vector<2x128xf32>
    %96 = arith.addf %94, %95 : vector<2x128xf32>
    %97 = math.tanh %96 : vector<2x128xf32>
    %98 = vector.extract_strided_slice %97 {offsets = [0, 0], sizes = [2, 32], strides = [1, 1]} : vector<2x128xf32> to vector<2x32xf32>
    %cst_37 = arith.constant 5.000000e-01 : f32
    %99 = vector.broadcast %cst_37 : f32 to vector<2x32xf32>
    %100 = arith.mulf %99, %98 : vector<2x32xf32>
    %cst_38 = arith.constant 5.000000e-01 : f32
    %101 = vector.broadcast %cst_38 : f32 to vector<2x32xf32>
    %102 = arith.addf %100, %101 : vector<2x32xf32>
    %103 = vector.extract_strided_slice %97 {offsets = [0, 32], sizes = [2, 32], strides = [1, 1]} : vector<2x128xf32> to vector<2x32xf32>
    %cst_39 = arith.constant 5.000000e-01 : f32
    %104 = vector.broadcast %cst_39 : f32 to vector<2x32xf32>
    %105 = arith.mulf %104, %103 : vector<2x32xf32>
    %cst_40 = arith.constant 5.000000e-01 : f32
    %106 = vector.broadcast %cst_40 : f32 to vector<2x32xf32>
    %107 = arith.addf %105, %106 : vector<2x32xf32>
    %108 = vector.extract_strided_slice %97 {offsets = [0, 64], sizes = [2, 32], strides = [1, 1]} : vector<2x128xf32> to vector<2x32xf32>
    %109 = vector.extract_strided_slice %97 {offsets = [0, 96], sizes = [2, 32], strides = [1, 1]} : vector<2x128xf32> to vector<2x32xf32>
    %cst_41 = arith.constant 5.000000e-01 : f32
    %110 = vector.broadcast %cst_41 : f32 to vector<2x32xf32>
    %111 = arith.mulf %110, %109 : vector<2x32xf32>
    %cst_42 = arith.constant 5.000000e-01 : f32
    %112 = vector.broadcast %cst_42 : f32 to vector<2x32xf32>
    %113 = arith.addf %111, %112 : vector<2x32xf32>
    %114 = arith.mulf %107, %89 : vector<2x32xf32>
    %115 = arith.mulf %102, %108 : vector<2x32xf32>
    %116 = arith.addf %114, %115 : vector<2x32xf32>
    %117 = math.tanh %116 : vector<2x32xf32>
    %118 = arith.mulf %113, %117 : vector<2x32xf32>
    %c6 = arith.constant 6 : index
    %c0_43 = arith.constant 0 : index
    %119 = vector.load %arg8[%c6, %c0_43] : memref<16x32xf32, #tpu.memory_space<vmem>>, vector<2x32xf32>
    tpu.vector_store %arg8[%c6, %c0_43], %118 {strides = array<i32>} : memref<16x32xf32, #tpu.memory_space<vmem>>, vector<2x32xf32>,
    %120 = vector.extract_strided_slice %7 {offsets = [0, 4, 0], sizes = [2, 1, 128], strides = [1, 1, 1]} : vector<2x8x128xf32> to vector<2x1x128xf32>
    %121 = vector.shape_cast %120 : vector<2x1x128xf32> to vector<2x128xf32>
    %cst_44 = arith.constant dense<0.000000e+00> : vector<2x128xf32>
    %122 = tpu.matmul %118, %11, %cst_44 {dimension_numbers = #tpu.dot_dimension_numbers<[1], [0], [0], [1], [0, 0, 1, 1], [], []>} : vector<2x32xf32>, vector<32x128xf32>, vector<2x128xf32> -> vector<2x128xf32>
    %123 = arith.addf %121, %122 : vector<2x128xf32>
    %124 = math.tanh %123 : vector<2x128xf32>
    %125 = vector.extract_strided_slice %124 {offsets = [0, 0], sizes = [2, 32], strides = [1, 1]} : vector<2x128xf32> to vector<2x32xf32>
    %cst_45 = arith.constant 5.000000e-01 : f32
    %126 = vector.broadcast %cst_45 : f32 to vector<2x32xf32>
    %127 = arith.mulf %126, %125 : vector<2x32xf32>
    %cst_46 = arith.constant 5.000000e-01 : f32
    %128 = vector.broadcast %cst_46 : f32 to vector<2x32xf32>
    %129 = arith.addf %127, %128 : vector<2x32xf32>
    %130 = vector.extract_strided_slice %124 {offsets = [0, 32], sizes = [2, 32], strides = [1, 1]} : vector<2x128xf32> to vector<2x32xf32>
    %cst_47 = arith.constant 5.000000e-01 : f32
    %131 = vector.broadcast %cst_47 : f32 to vector<2x32xf32>
    %132 = arith.mulf %131, %130 : vector<2x32xf32>
    %cst_48 = arith.constant 5.000000e-01 : f32
    %133 = vector.broadcast %cst_48 : f32 to vector<2x32xf32>
    %134 = arith.addf %132, %133 : vector<2x32xf32>
    %135 = vector.extract_strided_slice %124 {offsets = [0, 64], sizes = [2, 32], strides = [1, 1]} : vector<2x128xf32> to vector<2x32xf32>
    %136 = vector.extract_strided_slice %124 {offsets = [0, 96], sizes = [2, 32], strides = [1, 1]} : vector<2x128xf32> to vector<2x32xf32>
    %cst_49 = arith.constant 5.000000e-01 : f32
    %137 = vector.broadcast %cst_49 : f32 to vector<2x32xf32>
    %138 = arith.mulf %137, %136 : vector<2x32xf32>
    %cst_50 = arith.constant 5.000000e-01 : f32
    %139 = vector.broadcast %cst_50 : f32 to vector<2x32xf32>
    %140 = arith.addf %138, %139 : vector<2x32xf32>
    %141 = arith.mulf %134, %116 : vector<2x32xf32>
    %142 = arith.mulf %129, %135 : vector<2x32xf32>
    %143 = arith.addf %141, %142 : vector<2x32xf32>
    %144 = math.tanh %143 : vector<2x32xf32>
    %145 = arith.mulf %140, %144 : vector<2x32xf32>
    %c8 = arith.constant 8 : index
    %c0_51 = arith.constant 0 : index
    %146 = vector.load %arg8[%c8, %c0_51] : memref<16x32xf32, #tpu.memory_space<vmem>>, vector<2x32xf32>
    tpu.vector_store %arg8[%c8, %c0_51], %145 {strides = array<i32>} : memref<16x32xf32, #tpu.memory_space<vmem>>, vector<2x32xf32>,
    %147 = vector.extract_strided_slice %7 {offsets = [0, 5, 0], sizes = [2, 1, 128], strides = [1, 1, 1]} : vector<2x8x128xf32> to vector<2x1x128xf32>
    %148 = vector.shape_cast %147 : vector<2x1x128xf32> to vector<2x128xf32>
    %cst_52 = arith.constant dense<0.000000e+00> : vector<2x128xf32>
    %149 = tpu.matmul %145, %11, %cst_52 {dimension_numbers = #tpu.dot_dimension_numbers<[1], [0], [0], [1], [0, 0, 1, 1], [], []>} : vector<2x32xf32>, vector<32x128xf32>, vector<2x128xf32> -> vector<2x128xf32>
    %150 = arith.addf %148, %149 : vector<2x128xf32>
    %151 = math.tanh %150 : vector<2x128xf32>
    %152 = vector.extract_strided_slice %151 {offsets = [0, 0], sizes = [2, 32], strides = [1, 1]} : vector<2x128xf32> to vector<2x32xf32>
    %cst_53 = arith.constant 5.000000e-01 : f32
    %153 = vector.broadcast %cst_53 : f32 to vector<2x32xf32>
    %154 = arith.mulf %153, %152 : vector<2x32xf32>
    %cst_54 = arith.constant 5.000000e-01 : f32
    %155 = vector.broadcast %cst_54 : f32 to vector<2x32xf32>
    %156 = arith.addf %154, %155 : vector<2x32xf32>
    %157 = vector.extract_strided_slice %151 {offsets = [0, 32], sizes = [2, 32], strides = [1, 1]} : vector<2x128xf32> to vector<2x32xf32>
    %cst_55 = arith.constant 5.000000e-01 : f32
    %158 = vector.broadcast %cst_55 : f32 to vector<2x32xf32>
    %159 = arith.mulf %158, %157 : vector<2x32xf32>
    %cst_56 = arith.constant 5.000000e-01 : f32
    %160 = vector.broadcast %cst_56 : f32 to vector<2x32xf32>
    %161 = arith.addf %159, %160 : vector<2x32xf32>
    %162 = vector.extract_strided_slice %151 {offsets = [0, 64], sizes = [2, 32], strides = [1, 1]} : vector<2x128xf32> to vector<2x32xf32>
    %163 = vector.extract_strided_slice %151 {offsets = [0, 96], sizes = [2, 32], strides = [1, 1]} : vector<2x128xf32> to vector<2x32xf32>
    %cst_57 = arith.constant 5.000000e-01 : f32
    %164 = vector.broadcast %cst_57 : f32 to vector<2x32xf32>
    %165 = arith.mulf %164, %163 : vector<2x32xf32>
    %cst_58 = arith.constant 5.000000e-01 : f32
    %166 = vector.broadcast %cst_58 : f32 to vector<2x32xf32>
    %167 = arith.addf %165, %166 : vector<2x32xf32>
    %168 = arith.mulf %161, %143 : vector<2x32xf32>
    %169 = arith.mulf %156, %162 : vector<2x32xf32>
    %170 = arith.addf %168, %169 : vector<2x32xf32>
    %171 = math.tanh %170 : vector<2x32xf32>
    %172 = arith.mulf %167, %171 : vector<2x32xf32>
    %c10 = arith.constant 10 : index
    %c0_59 = arith.constant 0 : index
    %173 = vector.load %arg8[%c10, %c0_59] : memref<16x32xf32, #tpu.memory_space<vmem>>, vector<2x32xf32>
    tpu.vector_store %arg8[%c10, %c0_59], %172 {strides = array<i32>} : memref<16x32xf32, #tpu.memory_space<vmem>>, vector<2x32xf32>,
    %174 = vector.extract_strided_slice %7 {offsets = [0, 6, 0], sizes = [2, 1, 128], strides = [1, 1, 1]} : vector<2x8x128xf32> to vector<2x1x128xf32>
    %175 = vector.shape_cast %174 : vector<2x1x128xf32> to vector<2x128xf32>
    %cst_60 = arith.constant dense<0.000000e+00> : vector<2x128xf32>
    %176 = tpu.matmul %172, %11, %cst_60 {dimension_numbers = #tpu.dot_dimension_numbers<[1], [0], [0], [1], [0, 0, 1, 1], [], []>} : vector<2x32xf32>, vector<32x128xf32>, vector<2x128xf32> -> vector<2x128xf32>
    %177 = arith.addf %175, %176 : vector<2x128xf32>
    %178 = math.tanh %177 : vector<2x128xf32>
    %179 = vector.extract_strided_slice %178 {offsets = [0, 0], sizes = [2, 32], strides = [1, 1]} : vector<2x128xf32> to vector<2x32xf32>
    %cst_61 = arith.constant 5.000000e-01 : f32
    %180 = vector.broadcast %cst_61 : f32 to vector<2x32xf32>
    %181 = arith.mulf %180, %179 : vector<2x32xf32>
    %cst_62 = arith.constant 5.000000e-01 : f32
    %182 = vector.broadcast %cst_62 : f32 to vector<2x32xf32>
    %183 = arith.addf %181, %182 : vector<2x32xf32>
    %184 = vector.extract_strided_slice %178 {offsets = [0, 32], sizes = [2, 32], strides = [1, 1]} : vector<2x128xf32> to vector<2x32xf32>
    %cst_63 = arith.constant 5.000000e-01 : f32
    %185 = vector.broadcast %cst_63 : f32 to vector<2x32xf32>
    %186 = arith.mulf %185, %184 : vector<2x32xf32>
    %cst_64 = arith.constant 5.000000e-01 : f32
    %187 = vector.broadcast %cst_64 : f32 to vector<2x32xf32>
    %188 = arith.addf %186, %187 : vector<2x32xf32>
    %189 = vector.extract_strided_slice %178 {offsets = [0, 64], sizes = [2, 32], strides = [1, 1]} : vector<2x128xf32> to vector<2x32xf32>
    %190 = vector.extract_strided_slice %178 {offsets = [0, 96], sizes = [2, 32], strides = [1, 1]} : vector<2x128xf32> to vector<2x32xf32>
    %cst_65 = arith.constant 5.000000e-01 : f32
    %191 = vector.broadcast %cst_65 : f32 to vector<2x32xf32>
    %192 = arith.mulf %191, %190 : vector<2x32xf32>
    %cst_66 = arith.constant 5.000000e-01 : f32
    %193 = vector.broadcast %cst_66 : f32 to vector<2x32xf32>
    %194 = arith.addf %192, %193 : vector<2x32xf32>
    %195 = arith.mulf %188, %170 : vector<2x32xf32>
    %196 = arith.mulf %183, %189 : vector<2x32xf32>
    %197 = arith.addf %195, %196 : vector<2x32xf32>
    %198 = math.tanh %197 : vector<2x32xf32>
    %199 = arith.mulf %194, %198 : vector<2x32xf32>
    %c12 = arith.constant 12 : index
    %c0_67 = arith.constant 0 : index
    %200 = vector.load %arg8[%c12, %c0_67] : memref<16x32xf32, #tpu.memory_space<vmem>>, vector<2x32xf32>
    tpu.vector_store %arg8[%c12, %c0_67], %199 {strides = array<i32>} : memref<16x32xf32, #tpu.memory_space<vmem>>, vector<2x32xf32>,
    %201 = vector.extract_strided_slice %7 {offsets = [0, 7, 0], sizes = [2, 1, 128], strides = [1, 1, 1]} : vector<2x8x128xf32> to vector<2x1x128xf32>
    %202 = vector.shape_cast %201 : vector<2x1x128xf32> to vector<2x128xf32>
    %cst_68 = arith.constant dense<0.000000e+00> : vector<2x128xf32>
    %203 = tpu.matmul %199, %11, %cst_68 {dimension_numbers = #tpu.dot_dimension_numbers<[1], [0], [0], [1], [0, 0, 1, 1], [], []>} : vector<2x32xf32>, vector<32x128xf32>, vector<2x128xf32> -> vector<2x128xf32>
    %204 = arith.addf %202, %203 : vector<2x128xf32>
    %205 = math.tanh %204 : vector<2x128xf32>
    %206 = vector.extract_strided_slice %205 {offsets = [0, 0], sizes = [2, 32], strides = [1, 1]} : vector<2x128xf32> to vector<2x32xf32>
    %cst_69 = arith.constant 5.000000e-01 : f32
    %207 = vector.broadcast %cst_69 : f32 to vector<2x32xf32>
    %208 = arith.mulf %207, %206 : vector<2x32xf32>
    %cst_70 = arith.constant 5.000000e-01 : f32
    %209 = vector.broadcast %cst_70 : f32 to vector<2x32xf32>
    %210 = arith.addf %208, %209 : vector<2x32xf32>
    %211 = vector.extract_strided_slice %205 {offsets = [0, 32], sizes = [2, 32], strides = [1, 1]} : vector<2x128xf32> to vector<2x32xf32>
    %cst_71 = arith.constant 5.000000e-01 : f32
    %212 = vector.broadcast %cst_71 : f32 to vector<2x32xf32>
    %213 = arith.mulf %212, %211 : vector<2x32xf32>
    %cst_72 = arith.constant 5.000000e-01 : f32
    %214 = vector.broadcast %cst_72 : f32 to vector<2x32xf32>
    %215 = arith.addf %213, %214 : vector<2x32xf32>
    %216 = vector.extract_strided_slice %205 {offsets = [0, 64], sizes = [2, 32], strides = [1, 1]} : vector<2x128xf32> to vector<2x32xf32>
    %217 = vector.extract_strided_slice %205 {offsets = [0, 96], sizes = [2, 32], strides = [1, 1]} : vector<2x128xf32> to vector<2x32xf32>
    %cst_73 = arith.constant 5.000000e-01 : f32
    %218 = vector.broadcast %cst_73 : f32 to vector<2x32xf32>
    %219 = arith.mulf %218, %217 : vector<2x32xf32>
    %cst_74 = arith.constant 5.000000e-01 : f32
    %220 = vector.broadcast %cst_74 : f32 to vector<2x32xf32>
    %221 = arith.addf %219, %220 : vector<2x32xf32>
    %222 = arith.mulf %215, %197 : vector<2x32xf32>
    %223 = arith.mulf %210, %216 : vector<2x32xf32>
    %224 = arith.addf %222, %223 : vector<2x32xf32>
    %225 = math.tanh %224 : vector<2x32xf32>
    %226 = arith.mulf %221, %225 : vector<2x32xf32>
    %c14 = arith.constant 14 : index
    %c0_75 = arith.constant 0 : index
    %227 = vector.load %arg8[%c14, %c0_75] : memref<16x32xf32, #tpu.memory_space<vmem>>, vector<2x32xf32>
    tpu.vector_store %arg8[%c14, %c0_75], %226 {strides = array<i32>} : memref<16x32xf32, #tpu.memory_space<vmem>>, vector<2x32xf32>,
    %c0_76 = arith.constant 0 : index
    %c0_77 = arith.constant 0 : index
    %228 = vector.load %arg8[%c0_76, %c0_77] : memref<16x32xf32, #tpu.memory_space<vmem>>, vector<16x32xf32>
    %c0_78 = arith.constant 0 : index
    %c0_79 = arith.constant 0 : index
    %c0_80 = arith.constant 0 : index
    %229 = vector.load %arg3[%c0_78, %c0_79, %c0_80] : memref<3x32x128xf32, #tpu.memory_space<vmem>>, vector<1x32x128xf32>
    %230 = vector.shape_cast %229 : vector<1x32x128xf32> to vector<32x128xf32>
    %cst_81 = arith.constant dense<0.000000e+00> : vector<16x128xf32>
    %231 = tpu.matmul %228, %230, %cst_81 {dimension_numbers = #tpu.dot_dimension_numbers<[1], [0], [0], [1], [0, 0, 1, 1], [], []>} : vector<16x32xf32>, vector<32x128xf32>, vector<16x128xf32> -> vector<16x128xf32>
    %c1 = arith.constant 1 : index
    %c0_82 = arith.constant 0 : index
    %c0_83 = arith.constant 0 : index
    %232 = vector.load %arg4[%c1, %c0_82, %c0_83] : memref<4x1x128xf32, #tpu.memory_space<vmem>>, vector<1x1x128xf32>
    %233 = vector.shape_cast %232 : vector<1x1x128xf32> to vector<1x128xf32>
    %234 = vector.broadcast %233 : vector<1x128xf32> to vector<16x128xf32>
    %235 = arith.addf %231, %234 : vector<16x128xf32>
    %c1_84 = arith.constant 1 : index
    %c0_85 = arith.constant 0 : index
    %c0_86 = arith.constant 0 : index
    %236 = vector.load %arg2[%c1_84, %c0_85, %c0_86] : memref<4x32x128xf32, #tpu.memory_space<vmem>>, vector<1x32x128xf32>
    %237 = vector.shape_cast %236 : vector<1x32x128xf32> to vector<32x128xf32>
    %cst_87 = arith.constant 0.000000e+00 : f32
    %238 = vector.broadcast %cst_87 : f32 to vector<2x32xf32>
    %cst_88 = arith.constant 0.000000e+00 : f32
    %239 = vector.broadcast %cst_88 : f32 to vector<2x32xf32>
    %240 = vector.extract_strided_slice %235 {offsets = [0, 0], sizes = [2, 128], strides = [1, 1]} : vector<16x128xf32> to vector<2x128xf32>
    %cst_89 = arith.constant dense<0.000000e+00> : vector<2x128xf32>
    %241 = tpu.matmul %238, %237, %cst_89 {dimension_numbers = #tpu.dot_dimension_numbers<[1], [0], [0], [1], [0, 0, 1, 1], [], []>} : vector<2x32xf32>, vector<32x128xf32>, vector<2x128xf32> -> vector<2x128xf32>
    %242 = arith.addf %240, %241 : vector<2x128xf32>
    %243 = math.tanh %242 : vector<2x128xf32>
    %244 = vector.extract_strided_slice %243 {offsets = [0, 0], sizes = [2, 32], strides = [1, 1]} : vector<2x128xf32> to vector<2x32xf32>
    %cst_90 = arith.constant 5.000000e-01 : f32
    %245 = vector.broadcast %cst_90 : f32 to vector<2x32xf32>
    %246 = arith.mulf %245, %244 : vector<2x32xf32>
    %cst_91 = arith.constant 5.000000e-01 : f32
    %247 = vector.broadcast %cst_91 : f32 to vector<2x32xf32>
    %248 = arith.addf %246, %247 : vector<2x32xf32>
    %249 = vector.extract_strided_slice %243 {offsets = [0, 32], sizes = [2, 32], strides = [1, 1]} : vector<2x128xf32> to vector<2x32xf32>
    %cst_92 = arith.constant 5.000000e-01 : f32
    %250 = vector.broadcast %cst_92 : f32 to vector<2x32xf32>
    %251 = arith.mulf %250, %249 : vector<2x32xf32>
    %cst_93 = arith.constant 5.000000e-01 : f32
    %252 = vector.broadcast %cst_93 : f32 to vector<2x32xf32>
    %253 = arith.addf %251, %252 : vector<2x32xf32>
    %254 = vector.extract_strided_slice %243 {offsets = [0, 64], sizes = [2, 32], strides = [1, 1]} : vector<2x128xf32> to vector<2x32xf32>
    %255 = vector.extract_strided_slice %243 {offsets = [0, 96], sizes = [2, 32], strides = [1, 1]} : vector<2x128xf32> to vector<2x32xf32>
    %cst_94 = arith.constant 5.000000e-01 : f32
    %256 = vector.broadcast %cst_94 : f32 to vector<2x32xf32>
    %257 = arith.mulf %256, %255 : vector<2x32xf32>
    %cst_95 = arith.constant 5.000000e-01 : f32
    %258 = vector.broadcast %cst_95 : f32 to vector<2x32xf32>
    %259 = arith.addf %257, %258 : vector<2x32xf32>
    %260 = arith.mulf %253, %239 : vector<2x32xf32>
    %261 = arith.mulf %248, %254 : vector<2x32xf32>
    %262 = arith.addf %260, %261 : vector<2x32xf32>
    %263 = math.tanh %262 : vector<2x32xf32>
    %264 = arith.mulf %259, %263 : vector<2x32xf32>
    %c0_96 = arith.constant 0 : index
    %c0_97 = arith.constant 0 : index
    %265 = vector.load %arg8[%c0_96, %c0_97] : memref<16x32xf32, #tpu.memory_space<vmem>>, vector<2x32xf32>
    tpu.vector_store %arg8[%c0_96, %c0_97], %264 {strides = array<i32>} : memref<16x32xf32, #tpu.memory_space<vmem>>, vector<2x32xf32>,
    %266 = vector.extract_strided_slice %235 {offsets = [2, 0], sizes = [2, 128], strides = [1, 1]} : vector<16x128xf32> to vector<2x128xf32>
    %cst_98 = arith.constant dense<0.000000e+00> : vector<2x128xf32>
    %267 = tpu.matmul %264, %237, %cst_98 {dimension_numbers = #tpu.dot_dimension_numbers<[1], [0], [0], [1], [0, 0, 1, 1], [], []>} : vector<2x32xf32>, vector<32x128xf32>, vector<2x128xf32> -> vector<2x128xf32>
    %268 = arith.addf %266, %267 : vector<2x128xf32>
    %269 = math.tanh %268 : vector<2x128xf32>
    %270 = vector.extract_strided_slice %269 {offsets = [0, 0], sizes = [2, 32], strides = [1, 1]} : vector<2x128xf32> to vector<2x32xf32>
    %cst_99 = arith.constant 5.000000e-01 : f32
    %271 = vector.broadcast %cst_99 : f32 to vector<2x32xf32>
    %272 = arith.mulf %271, %270 : vector<2x32xf32>
    %cst_100 = arith.constant 5.000000e-01 : f32
    %273 = vector.broadcast %cst_100 : f32 to vector<2x32xf32>
    %274 = arith.addf %272, %273 : vector<2x32xf32>
    %275 = vector.extract_strided_slice %269 {offsets = [0, 32], sizes = [2, 32], strides = [1, 1]} : vector<2x128xf32> to vector<2x32xf32>
    %cst_101 = arith.constant 5.000000e-01 : f32
    %276 = vector.broadcast %cst_101 : f32 to vector<2x32xf32>
    %277 = arith.mulf %276, %275 : vector<2x32xf32>
    %cst_102 = arith.constant 5.000000e-01 : f32
    %278 = vector.broadcast %cst_102 : f32 to vector<2x32xf32>
    %279 = arith.addf %277, %278 : vector<2x32xf32>
    %280 = vector.extract_strided_slice %269 {offsets = [0, 64], sizes = [2, 32], strides = [1, 1]} : vector<2x128xf32> to vector<2x32xf32>
    %281 = vector.extract_strided_slice %269 {offsets = [0, 96], sizes = [2, 32], strides = [1, 1]} : vector<2x128xf32> to vector<2x32xf32>
    %cst_103 = arith.constant 5.000000e-01 : f32
    %282 = vector.broadcast %cst_103 : f32 to vector<2x32xf32>
    %283 = arith.mulf %282, %281 : vector<2x32xf32>
    %cst_104 = arith.constant 5.000000e-01 : f32
    %284 = vector.broadcast %cst_104 : f32 to vector<2x32xf32>
    %285 = arith.addf %283, %284 : vector<2x32xf32>
    %286 = arith.mulf %279, %262 : vector<2x32xf32>
    %287 = arith.mulf %274, %280 : vector<2x32xf32>
    %288 = arith.addf %286, %287 : vector<2x32xf32>
    %289 = math.tanh %288 : vector<2x32xf32>
    %290 = arith.mulf %285, %289 : vector<2x32xf32>
    %c2_105 = arith.constant 2 : index
    %c0_106 = arith.constant 0 : index
    %291 = vector.load %arg8[%c2_105, %c0_106] : memref<16x32xf32, #tpu.memory_space<vmem>>, vector<2x32xf32>
    tpu.vector_store %arg8[%c2_105, %c0_106], %290 {strides = array<i32>} : memref<16x32xf32, #tpu.memory_space<vmem>>, vector<2x32xf32>,
    %292 = vector.extract_strided_slice %235 {offsets = [4, 0], sizes = [2, 128], strides = [1, 1]} : vector<16x128xf32> to vector<2x128xf32>
    %cst_107 = arith.constant dense<0.000000e+00> : vector<2x128xf32>
    %293 = tpu.matmul %290, %237, %cst_107 {dimension_numbers = #tpu.dot_dimension_numbers<[1], [0], [0], [1], [0, 0, 1, 1], [], []>} : vector<2x32xf32>, vector<32x128xf32>, vector<2x128xf32> -> vector<2x128xf32>
    %294 = arith.addf %292, %293 : vector<2x128xf32>
    %295 = math.tanh %294 : vector<2x128xf32>
    %296 = vector.extract_strided_slice %295 {offsets = [0, 0], sizes = [2, 32], strides = [1, 1]} : vector<2x128xf32> to vector<2x32xf32>
    %cst_108 = arith.constant 5.000000e-01 : f32
    %297 = vector.broadcast %cst_108 : f32 to vector<2x32xf32>
    %298 = arith.mulf %297, %296 : vector<2x32xf32>
    %cst_109 = arith.constant 5.000000e-01 : f32
    %299 = vector.broadcast %cst_109 : f32 to vector<2x32xf32>
    %300 = arith.addf %298, %299 : vector<2x32xf32>
    %301 = vector.extract_strided_slice %295 {offsets = [0, 32], sizes = [2, 32], strides = [1, 1]} : vector<2x128xf32> to vector<2x32xf32>
    %cst_110 = arith.constant 5.000000e-01 : f32
    %302 = vector.broadcast %cst_110 : f32 to vector<2x32xf32>
    %303 = arith.mulf %302, %301 : vector<2x32xf32>
    %cst_111 = arith.constant 5.000000e-01 : f32
    %304 = vector.broadcast %cst_111 : f32 to vector<2x32xf32>
    %305 = arith.addf %303, %304 : vector<2x32xf32>
    %306 = vector.extract_strided_slice %295 {offsets = [0, 64], sizes = [2, 32], strides = [1, 1]} : vector<2x128xf32> to vector<2x32xf32>
    %307 = vector.extract_strided_slice %295 {offsets = [0, 96], sizes = [2, 32], strides = [1, 1]} : vector<2x128xf32> to vector<2x32xf32>
    %cst_112 = arith.constant 5.000000e-01 : f32
    %308 = vector.broadcast %cst_112 : f32 to vector<2x32xf32>
    %309 = arith.mulf %308, %307 : vector<2x32xf32>
    %cst_113 = arith.constant 5.000000e-01 : f32
    %310 = vector.broadcast %cst_113 : f32 to vector<2x32xf32>
    %311 = arith.addf %309, %310 : vector<2x32xf32>
    %312 = arith.mulf %305, %288 : vector<2x32xf32>
    %313 = arith.mulf %300, %306 : vector<2x32xf32>
    %314 = arith.addf %312, %313 : vector<2x32xf32>
    %315 = math.tanh %314 : vector<2x32xf32>
    %316 = arith.mulf %311, %315 : vector<2x32xf32>
    %c4_114 = arith.constant 4 : index
    %c0_115 = arith.constant 0 : index
    %317 = vector.load %arg8[%c4_114, %c0_115] : memref<16x32xf32, #tpu.memory_space<vmem>>, vector<2x32xf32>
    tpu.vector_store %arg8[%c4_114, %c0_115], %316 {strides = array<i32>} : memref<16x32xf32, #tpu.memory_space<vmem>>, vector<2x32xf32>,
    %318 = vector.extract_strided_slice %235 {offsets = [6, 0], sizes = [2, 128], strides = [1, 1]} : vector<16x128xf32> to vector<2x128xf32>
    %cst_116 = arith.constant dense<0.000000e+00> : vector<2x128xf32>
    %319 = tpu.matmul %316, %237, %cst_116 {dimension_numbers = #tpu.dot_dimension_numbers<[1], [0], [0], [1], [0, 0, 1, 1], [], []>} : vector<2x32xf32>, vector<32x128xf32>, vector<2x128xf32> -> vector<2x128xf32>
    %320 = arith.addf %318, %319 : vector<2x128xf32>
    %321 = math.tanh %320 : vector<2x128xf32>
    %322 = vector.extract_strided_slice %321 {offsets = [0, 0], sizes = [2, 32], strides = [1, 1]} : vector<2x128xf32> to vector<2x32xf32>
    %cst_117 = arith.constant 5.000000e-01 : f32
    %323 = vector.broadcast %cst_117 : f32 to vector<2x32xf32>
    %324 = arith.mulf %323, %322 : vector<2x32xf32>
    %cst_118 = arith.constant 5.000000e-01 : f32
    %325 = vector.broadcast %cst_118 : f32 to vector<2x32xf32>
    %326 = arith.addf %324, %325 : vector<2x32xf32>
    %327 = vector.extract_strided_slice %321 {offsets = [0, 32], sizes = [2, 32], strides = [1, 1]} : vector<2x128xf32> to vector<2x32xf32>
    %cst_119 = arith.constant 5.000000e-01 : f32
    %328 = vector.broadcast %cst_119 : f32 to vector<2x32xf32>
    %329 = arith.mulf %328, %327 : vector<2x32xf32>
    %cst_120 = arith.constant 5.000000e-01 : f32
    %330 = vector.broadcast %cst_120 : f32 to vector<2x32xf32>
    %331 = arith.addf %329, %330 : vector<2x32xf32>
    %332 = vector.extract_strided_slice %321 {offsets = [0, 64], sizes = [2, 32], strides = [1, 1]} : vector<2x128xf32> to vector<2x32xf32>
    %333 = vector.extract_strided_slice %321 {offsets = [0, 96], sizes = [2, 32], strides = [1, 1]} : vector<2x128xf32> to vector<2x32xf32>
    %cst_121 = arith.constant 5.000000e-01 : f32
    %334 = vector.broadcast %cst_121 : f32 to vector<2x32xf32>
    %335 = arith.mulf %334, %333 : vector<2x32xf32>
    %cst_122 = arith.constant 5.000000e-01 : f32
    %336 = vector.broadcast %cst_122 : f32 to vector<2x32xf32>
    %337 = arith.addf %335, %336 : vector<2x32xf32>
    %338 = arith.mulf %331, %314 : vector<2x32xf32>
    %339 = arith.mulf %326, %332 : vector<2x32xf32>
    %340 = arith.addf %338, %339 : vector<2x32xf32>
    %341 = math.tanh %340 : vector<2x32xf32>
    %342 = arith.mulf %337, %341 : vector<2x32xf32>
    %c6_123 = arith.constant 6 : index
    %c0_124 = arith.constant 0 : index
    %343 = vector.load %arg8[%c6_123, %c0_124] : memref<16x32xf32, #tpu.memory_space<vmem>>, vector<2x32xf32>
    tpu.vector_store %arg8[%c6_123, %c0_124], %342 {strides = array<i32>} : memref<16x32xf32, #tpu.memory_space<vmem>>, vector<2x32xf32>,
    %344 = vector.extract_strided_slice %235 {offsets = [8, 0], sizes = [2, 128], strides = [1, 1]} : vector<16x128xf32> to vector<2x128xf32>
    %cst_125 = arith.constant dense<0.000000e+00> : vector<2x128xf32>
    %345 = tpu.matmul %342, %237, %cst_125 {dimension_numbers = #tpu.dot_dimension_numbers<[1], [0], [0], [1], [0, 0, 1, 1], [], []>} : vector<2x32xf32>, vector<32x128xf32>, vector<2x128xf32> -> vector<2x128xf32>
    %346 = arith.addf %344, %345 : vector<2x128xf32>
    %347 = math.tanh %346 : vector<2x128xf32>
    %348 = vector.extract_strided_slice %347 {offsets = [0, 0], sizes = [2, 32], strides = [1, 1]} : vector<2x128xf32> to vector<2x32xf32>
    %cst_126 = arith.constant 5.000000e-01 : f32
    %349 = vector.broadcast %cst_126 : f32 to vector<2x32xf32>
    %350 = arith.mulf %349, %348 : vector<2x32xf32>
    %cst_127 = arith.constant 5.000000e-01 : f32
    %351 = vector.broadcast %cst_127 : f32 to vector<2x32xf32>
    %352 = arith.addf %350, %351 : vector<2x32xf32>
    %353 = vector.extract_strided_slice %347 {offsets = [0, 32], sizes = [2, 32], strides = [1, 1]} : vector<2x128xf32> to vector<2x32xf32>
    %cst_128 = arith.constant 5.000000e-01 : f32
    %354 = vector.broadcast %cst_128 : f32 to vector<2x32xf32>
    %355 = arith.mulf %354, %353 : vector<2x32xf32>
    %cst_129 = arith.constant 5.000000e-01 : f32
    %356 = vector.broadcast %cst_129 : f32 to vector<2x32xf32>
    %357 = arith.addf %355, %356 : vector<2x32xf32>
    %358 = vector.extract_strided_slice %347 {offsets = [0, 64], sizes = [2, 32], strides = [1, 1]} : vector<2x128xf32> to vector<2x32xf32>
    %359 = vector.extract_strided_slice %347 {offsets = [0, 96], sizes = [2, 32], strides = [1, 1]} : vector<2x128xf32> to vector<2x32xf32>
    %cst_130 = arith.constant 5.000000e-01 : f32
    %360 = vector.broadcast %cst_130 : f32 to vector<2x32xf32>
    %361 = arith.mulf %360, %359 : vector<2x32xf32>
    %cst_131 = arith.constant 5.000000e-01 : f32
    %362 = vector.broadcast %cst_131 : f32 to vector<2x32xf32>
    %363 = arith.addf %361, %362 : vector<2x32xf32>
    %364 = arith.mulf %357, %340 : vector<2x32xf32>
    %365 = arith.mulf %352, %358 : vector<2x32xf32>
    %366 = arith.addf %364, %365 : vector<2x32xf32>
    %367 = math.tanh %366 : vector<2x32xf32>
    %368 = arith.mulf %363, %367 : vector<2x32xf32>
    %c8_132 = arith.constant 8 : index
    %c0_133 = arith.constant 0 : index
    %369 = vector.load %arg8[%c8_132, %c0_133] : memref<16x32xf32, #tpu.memory_space<vmem>>, vector<2x32xf32>
    tpu.vector_store %arg8[%c8_132, %c0_133], %368 {strides = array<i32>} : memref<16x32xf32, #tpu.memory_space<vmem>>, vector<2x32xf32>,
    %370 = vector.extract_strided_slice %235 {offsets = [10, 0], sizes = [2, 128], strides = [1, 1]} : vector<16x128xf32> to vector<2x128xf32>
    %cst_134 = arith.constant dense<0.000000e+00> : vector<2x128xf32>
    %371 = tpu.matmul %368, %237, %cst_134 {dimension_numbers = #tpu.dot_dimension_numbers<[1], [0], [0], [1], [0, 0, 1, 1], [], []>} : vector<2x32xf32>, vector<32x128xf32>, vector<2x128xf32> -> vector<2x128xf32>
    %372 = arith.addf %370, %371 : vector<2x128xf32>
    %373 = math.tanh %372 : vector<2x128xf32>
    %374 = vector.extract_strided_slice %373 {offsets = [0, 0], sizes = [2, 32], strides = [1, 1]} : vector<2x128xf32> to vector<2x32xf32>
    %cst_135 = arith.constant 5.000000e-01 : f32
    %375 = vector.broadcast %cst_135 : f32 to vector<2x32xf32>
    %376 = arith.mulf %375, %374 : vector<2x32xf32>
    %cst_136 = arith.constant 5.000000e-01 : f32
    %377 = vector.broadcast %cst_136 : f32 to vector<2x32xf32>
    %378 = arith.addf %376, %377 : vector<2x32xf32>
    %379 = vector.extract_strided_slice %373 {offsets = [0, 32], sizes = [2, 32], strides = [1, 1]} : vector<2x128xf32> to vector<2x32xf32>
    %cst_137 = arith.constant 5.000000e-01 : f32
    %380 = vector.broadcast %cst_137 : f32 to vector<2x32xf32>
    %381 = arith.mulf %380, %379 : vector<2x32xf32>
    %cst_138 = arith.constant 5.000000e-01 : f32
    %382 = vector.broadcast %cst_138 : f32 to vector<2x32xf32>
    %383 = arith.addf %381, %382 : vector<2x32xf32>
    %384 = vector.extract_strided_slice %373 {offsets = [0, 64], sizes = [2, 32], strides = [1, 1]} : vector<2x128xf32> to vector<2x32xf32>
    %385 = vector.extract_strided_slice %373 {offsets = [0, 96], sizes = [2, 32], strides = [1, 1]} : vector<2x128xf32> to vector<2x32xf32>
    %cst_139 = arith.constant 5.000000e-01 : f32
    %386 = vector.broadcast %cst_139 : f32 to vector<2x32xf32>
    %387 = arith.mulf %386, %385 : vector<2x32xf32>
    %cst_140 = arith.constant 5.000000e-01 : f32
    %388 = vector.broadcast %cst_140 : f32 to vector<2x32xf32>
    %389 = arith.addf %387, %388 : vector<2x32xf32>
    %390 = arith.mulf %383, %366 : vector<2x32xf32>
    %391 = arith.mulf %378, %384 : vector<2x32xf32>
    %392 = arith.addf %390, %391 : vector<2x32xf32>
    %393 = math.tanh %392 : vector<2x32xf32>
    %394 = arith.mulf %389, %393 : vector<2x32xf32>
    %c10_141 = arith.constant 10 : index
    %c0_142 = arith.constant 0 : index
    %395 = vector.load %arg8[%c10_141, %c0_142] : memref<16x32xf32, #tpu.memory_space<vmem>>, vector<2x32xf32>
    tpu.vector_store %arg8[%c10_141, %c0_142], %394 {strides = array<i32>} : memref<16x32xf32, #tpu.memory_space<vmem>>, vector<2x32xf32>,
    %396 = vector.extract_strided_slice %235 {offsets = [12, 0], sizes = [2, 128], strides = [1, 1]} : vector<16x128xf32> to vector<2x128xf32>
    %cst_143 = arith.constant dense<0.000000e+00> : vector<2x128xf32>
    %397 = tpu.matmul %394, %237, %cst_143 {dimension_numbers = #tpu.dot_dimension_numbers<[1], [0], [0], [1], [0, 0, 1, 1], [], []>} : vector<2x32xf32>, vector<32x128xf32>, vector<2x128xf32> -> vector<2x128xf32>
    %398 = arith.addf %396, %397 : vector<2x128xf32>
    %399 = math.tanh %398 : vector<2x128xf32>
    %400 = vector.extract_strided_slice %399 {offsets = [0, 0], sizes = [2, 32], strides = [1, 1]} : vector<2x128xf32> to vector<2x32xf32>
    %cst_144 = arith.constant 5.000000e-01 : f32
    %401 = vector.broadcast %cst_144 : f32 to vector<2x32xf32>
    %402 = arith.mulf %401, %400 : vector<2x32xf32>
    %cst_145 = arith.constant 5.000000e-01 : f32
    %403 = vector.broadcast %cst_145 : f32 to vector<2x32xf32>
    %404 = arith.addf %402, %403 : vector<2x32xf32>
    %405 = vector.extract_strided_slice %399 {offsets = [0, 32], sizes = [2, 32], strides = [1, 1]} : vector<2x128xf32> to vector<2x32xf32>
    %cst_146 = arith.constant 5.000000e-01 : f32
    %406 = vector.broadcast %cst_146 : f32 to vector<2x32xf32>
    %407 = arith.mulf %406, %405 : vector<2x32xf32>
    %cst_147 = arith.constant 5.000000e-01 : f32
    %408 = vector.broadcast %cst_147 : f32 to vector<2x32xf32>
    %409 = arith.addf %407, %408 : vector<2x32xf32>
    %410 = vector.extract_strided_slice %399 {offsets = [0, 64], sizes = [2, 32], strides = [1, 1]} : vector<2x128xf32> to vector<2x32xf32>
    %411 = vector.extract_strided_slice %399 {offsets = [0, 96], sizes = [2, 32], strides = [1, 1]} : vector<2x128xf32> to vector<2x32xf32>
    %cst_148 = arith.constant 5.000000e-01 : f32
    %412 = vector.broadcast %cst_148 : f32 to vector<2x32xf32>
    %413 = arith.mulf %412, %411 : vector<2x32xf32>
    %cst_149 = arith.constant 5.000000e-01 : f32
    %414 = vector.broadcast %cst_149 : f32 to vector<2x32xf32>
    %415 = arith.addf %413, %414 : vector<2x32xf32>
    %416 = arith.mulf %409, %392 : vector<2x32xf32>
    %417 = arith.mulf %404, %410 : vector<2x32xf32>
    %418 = arith.addf %416, %417 : vector<2x32xf32>
    %419 = math.tanh %418 : vector<2x32xf32>
    %420 = arith.mulf %415, %419 : vector<2x32xf32>
    %c12_150 = arith.constant 12 : index
    %c0_151 = arith.constant 0 : index
    %421 = vector.load %arg8[%c12_150, %c0_151] : memref<16x32xf32, #tpu.memory_space<vmem>>, vector<2x32xf32>
    tpu.vector_store %arg8[%c12_150, %c0_151], %420 {strides = array<i32>} : memref<16x32xf32, #tpu.memory_space<vmem>>, vector<2x32xf32>,
    %422 = vector.extract_strided_slice %235 {offsets = [14, 0], sizes = [2, 128], strides = [1, 1]} : vector<16x128xf32> to vector<2x128xf32>
    %cst_152 = arith.constant dense<0.000000e+00> : vector<2x128xf32>
    %423 = tpu.matmul %420, %237, %cst_152 {dimension_numbers = #tpu.dot_dimension_numbers<[1], [0], [0], [1], [0, 0, 1, 1], [], []>} : vector<2x32xf32>, vector<32x128xf32>, vector<2x128xf32> -> vector<2x128xf32>
    %424 = arith.addf %422, %423 : vector<2x128xf32>
    %425 = math.tanh %424 : vector<2x128xf32>
    %426 = vector.extract_strided_slice %425 {offsets = [0, 0], sizes = [2, 32], strides = [1, 1]} : vector<2x128xf32> to vector<2x32xf32>
    %cst_153 = arith.constant 5.000000e-01 : f32
    %427 = vector.broadcast %cst_153 : f32 to vector<2x32xf32>
    %428 = arith.mulf %427, %426 : vector<2x32xf32>
    %cst_154 = arith.constant 5.000000e-01 : f32
    %429 = vector.broadcast %cst_154 : f32 to vector<2x32xf32>
    %430 = arith.addf %428, %429 : vector<2x32xf32>
    %431 = vector.extract_strided_slice %425 {offsets = [0, 32], sizes = [2, 32], strides = [1, 1]} : vector<2x128xf32> to vector<2x32xf32>
    %cst_155 = arith.constant 5.000000e-01 : f32
    %432 = vector.broadcast %cst_155 : f32 to vector<2x32xf32>
    %433 = arith.mulf %432, %431 : vector<2x32xf32>
    %cst_156 = arith.constant 5.000000e-01 : f32
    %434 = vector.broadcast %cst_156 : f32 to vector<2x32xf32>
    %435 = arith.addf %433, %434 : vector<2x32xf32>
    %436 = vector.extract_strided_slice %425 {offsets = [0, 64], sizes = [2, 32], strides = [1, 1]} : vector<2x128xf32> to vector<2x32xf32>
    %437 = vector.extract_strided_slice %425 {offsets = [0, 96], sizes = [2, 32], strides = [1, 1]} : vector<2x128xf32> to vector<2x32xf32>
    %cst_157 = arith.constant 5.000000e-01 : f32
    %438 = vector.broadcast %cst_157 : f32 to vector<2x32xf32>
    %439 = arith.mulf %438, %437 : vector<2x32xf32>
    %cst_158 = arith.constant 5.000000e-01 : f32
    %440 = vector.broadcast %cst_158 : f32 to vector<2x32xf32>
    %441 = arith.addf %439, %440 : vector<2x32xf32>
    %442 = arith.mulf %435, %418 : vector<2x32xf32>
    %443 = arith.mulf %430, %436 : vector<2x32xf32>
    %444 = arith.addf %442, %443 : vector<2x32xf32>
    %445 = math.tanh %444 : vector<2x32xf32>
    %446 = arith.mulf %441, %445 : vector<2x32xf32>
    %c14_159 = arith.constant 14 : index
    %c0_160 = arith.constant 0 : index
    %447 = vector.load %arg8[%c14_159, %c0_160] : memref<16x32xf32, #tpu.memory_space<vmem>>, vector<2x32xf32>
    tpu.vector_store %arg8[%c14_159, %c0_160], %446 {strides = array<i32>} : memref<16x32xf32, #tpu.memory_space<vmem>>, vector<2x32xf32>,
    %c0_161 = arith.constant 0 : index
    %c0_162 = arith.constant 0 : index
    %448 = vector.load %arg8[%c0_161, %c0_162] : memref<16x32xf32, #tpu.memory_space<vmem>>, vector<16x32xf32>
    %c1_163 = arith.constant 1 : index
    %c0_164 = arith.constant 0 : index
    %c0_165 = arith.constant 0 : index
    %449 = vector.load %arg3[%c1_163, %c0_164, %c0_165] : memref<3x32x128xf32, #tpu.memory_space<vmem>>, vector<1x32x128xf32>
    %450 = vector.shape_cast %449 : vector<1x32x128xf32> to vector<32x128xf32>
    %cst_166 = arith.constant dense<0.000000e+00> : vector<16x128xf32>
    %451 = tpu.matmul %448, %450, %cst_166 {dimension_numbers = #tpu.dot_dimension_numbers<[1], [0], [0], [1], [0, 0, 1, 1], [], []>} : vector<16x32xf32>, vector<32x128xf32>, vector<16x128xf32> -> vector<16x128xf32>
    %c2_167 = arith.constant 2 : index
    %c0_168 = arith.constant 0 : index
    %c0_169 = arith.constant 0 : index
    %452 = vector.load %arg4[%c2_167, %c0_168, %c0_169] : memref<4x1x128xf32, #tpu.memory_space<vmem>>, vector<1x1x128xf32>
    %453 = vector.shape_cast %452 : vector<1x1x128xf32> to vector<1x128xf32>
    %454 = vector.broadcast %453 : vector<1x128xf32> to vector<16x128xf32>
    %455 = arith.addf %451, %454 : vector<16x128xf32>
    %c2_170 = arith.constant 2 : index
    %c0_171 = arith.constant 0 : index
    %c0_172 = arith.constant 0 : index
    %456 = vector.load %arg2[%c2_170, %c0_171, %c0_172] : memref<4x32x128xf32, #tpu.memory_space<vmem>>, vector<1x32x128xf32>
    %457 = vector.shape_cast %456 : vector<1x32x128xf32> to vector<32x128xf32>
    %cst_173 = arith.constant 0.000000e+00 : f32
    %458 = vector.broadcast %cst_173 : f32 to vector<2x32xf32>
    %cst_174 = arith.constant 0.000000e+00 : f32
    %459 = vector.broadcast %cst_174 : f32 to vector<2x32xf32>
    %460 = vector.extract_strided_slice %455 {offsets = [0, 0], sizes = [2, 128], strides = [1, 1]} : vector<16x128xf32> to vector<2x128xf32>
    %cst_175 = arith.constant dense<0.000000e+00> : vector<2x128xf32>
    %461 = tpu.matmul %458, %457, %cst_175 {dimension_numbers = #tpu.dot_dimension_numbers<[1], [0], [0], [1], [0, 0, 1, 1], [], []>} : vector<2x32xf32>, vector<32x128xf32>, vector<2x128xf32> -> vector<2x128xf32>
    %462 = arith.addf %460, %461 : vector<2x128xf32>
    %463 = math.tanh %462 : vector<2x128xf32>
    %464 = vector.extract_strided_slice %463 {offsets = [0, 0], sizes = [2, 32], strides = [1, 1]} : vector<2x128xf32> to vector<2x32xf32>
    %cst_176 = arith.constant 5.000000e-01 : f32
    %465 = vector.broadcast %cst_176 : f32 to vector<2x32xf32>
    %466 = arith.mulf %465, %464 : vector<2x32xf32>
    %cst_177 = arith.constant 5.000000e-01 : f32
    %467 = vector.broadcast %cst_177 : f32 to vector<2x32xf32>
    %468 = arith.addf %466, %467 : vector<2x32xf32>
    %469 = vector.extract_strided_slice %463 {offsets = [0, 32], sizes = [2, 32], strides = [1, 1]} : vector<2x128xf32> to vector<2x32xf32>
    %cst_178 = arith.constant 5.000000e-01 : f32
    %470 = vector.broadcast %cst_178 : f32 to vector<2x32xf32>
    %471 = arith.mulf %470, %469 : vector<2x32xf32>
    %cst_179 = arith.constant 5.000000e-01 : f32
    %472 = vector.broadcast %cst_179 : f32 to vector<2x32xf32>
    %473 = arith.addf %471, %472 : vector<2x32xf32>
    %474 = vector.extract_strided_slice %463 {offsets = [0, 64], sizes = [2, 32], strides = [1, 1]} : vector<2x128xf32> to vector<2x32xf32>
    %475 = vector.extract_strided_slice %463 {offsets = [0, 96], sizes = [2, 32], strides = [1, 1]} : vector<2x128xf32> to vector<2x32xf32>
    %cst_180 = arith.constant 5.000000e-01 : f32
    %476 = vector.broadcast %cst_180 : f32 to vector<2x32xf32>
    %477 = arith.mulf %476, %475 : vector<2x32xf32>
    %cst_181 = arith.constant 5.000000e-01 : f32
    %478 = vector.broadcast %cst_181 : f32 to vector<2x32xf32>
    %479 = arith.addf %477, %478 : vector<2x32xf32>
    %480 = arith.mulf %473, %459 : vector<2x32xf32>
    %481 = arith.mulf %468, %474 : vector<2x32xf32>
    %482 = arith.addf %480, %481 : vector<2x32xf32>
    %483 = math.tanh %482 : vector<2x32xf32>
    %484 = arith.mulf %479, %483 : vector<2x32xf32>
    %c0_182 = arith.constant 0 : index
    %c0_183 = arith.constant 0 : index
    %485 = vector.load %arg8[%c0_182, %c0_183] : memref<16x32xf32, #tpu.memory_space<vmem>>, vector<2x32xf32>
    tpu.vector_store %arg8[%c0_182, %c0_183], %484 {strides = array<i32>} : memref<16x32xf32, #tpu.memory_space<vmem>>, vector<2x32xf32>,
    %486 = vector.extract_strided_slice %455 {offsets = [2, 0], sizes = [2, 128], strides = [1, 1]} : vector<16x128xf32> to vector<2x128xf32>
    %cst_184 = arith.constant dense<0.000000e+00> : vector<2x128xf32>
    %487 = tpu.matmul %484, %457, %cst_184 {dimension_numbers = #tpu.dot_dimension_numbers<[1], [0], [0], [1], [0, 0, 1, 1], [], []>} : vector<2x32xf32>, vector<32x128xf32>, vector<2x128xf32> -> vector<2x128xf32>
    %488 = arith.addf %486, %487 : vector<2x128xf32>
    %489 = math.tanh %488 : vector<2x128xf32>
    %490 = vector.extract_strided_slice %489 {offsets = [0, 0], sizes = [2, 32], strides = [1, 1]} : vector<2x128xf32> to vector<2x32xf32>
    %cst_185 = arith.constant 5.000000e-01 : f32
    %491 = vector.broadcast %cst_185 : f32 to vector<2x32xf32>
    %492 = arith.mulf %491, %490 : vector<2x32xf32>
    %cst_186 = arith.constant 5.000000e-01 : f32
    %493 = vector.broadcast %cst_186 : f32 to vector<2x32xf32>
    %494 = arith.addf %492, %493 : vector<2x32xf32>
    %495 = vector.extract_strided_slice %489 {offsets = [0, 32], sizes = [2, 32], strides = [1, 1]} : vector<2x128xf32> to vector<2x32xf32>
    %cst_187 = arith.constant 5.000000e-01 : f32
    %496 = vector.broadcast %cst_187 : f32 to vector<2x32xf32>
    %497 = arith.mulf %496, %495 : vector<2x32xf32>
    %cst_188 = arith.constant 5.000000e-01 : f32
    %498 = vector.broadcast %cst_188 : f32 to vector<2x32xf32>
    %499 = arith.addf %497, %498 : vector<2x32xf32>
    %500 = vector.extract_strided_slice %489 {offsets = [0, 64], sizes = [2, 32], strides = [1, 1]} : vector<2x128xf32> to vector<2x32xf32>
    %501 = vector.extract_strided_slice %489 {offsets = [0, 96], sizes = [2, 32], strides = [1, 1]} : vector<2x128xf32> to vector<2x32xf32>
    %cst_189 = arith.constant 5.000000e-01 : f32
    %502 = vector.broadcast %cst_189 : f32 to vector<2x32xf32>
    %503 = arith.mulf %502, %501 : vector<2x32xf32>
    %cst_190 = arith.constant 5.000000e-01 : f32
    %504 = vector.broadcast %cst_190 : f32 to vector<2x32xf32>
    %505 = arith.addf %503, %504 : vector<2x32xf32>
    %506 = arith.mulf %499, %482 : vector<2x32xf32>
    %507 = arith.mulf %494, %500 : vector<2x32xf32>
    %508 = arith.addf %506, %507 : vector<2x32xf32>
    %509 = math.tanh %508 : vector<2x32xf32>
    %510 = arith.mulf %505, %509 : vector<2x32xf32>
    %c2_191 = arith.constant 2 : index
    %c0_192 = arith.constant 0 : index
    %511 = vector.load %arg8[%c2_191, %c0_192] : memref<16x32xf32, #tpu.memory_space<vmem>>, vector<2x32xf32>
    tpu.vector_store %arg8[%c2_191, %c0_192], %510 {strides = array<i32>} : memref<16x32xf32, #tpu.memory_space<vmem>>, vector<2x32xf32>,
    %512 = vector.extract_strided_slice %455 {offsets = [4, 0], sizes = [2, 128], strides = [1, 1]} : vector<16x128xf32> to vector<2x128xf32>
    %cst_193 = arith.constant dense<0.000000e+00> : vector<2x128xf32>
    %513 = tpu.matmul %510, %457, %cst_193 {dimension_numbers = #tpu.dot_dimension_numbers<[1], [0], [0], [1], [0, 0, 1, 1], [], []>} : vector<2x32xf32>, vector<32x128xf32>, vector<2x128xf32> -> vector<2x128xf32>
    %514 = arith.addf %512, %513 : vector<2x128xf32>
    %515 = math.tanh %514 : vector<2x128xf32>
    %516 = vector.extract_strided_slice %515 {offsets = [0, 0], sizes = [2, 32], strides = [1, 1]} : vector<2x128xf32> to vector<2x32xf32>
    %cst_194 = arith.constant 5.000000e-01 : f32
    %517 = vector.broadcast %cst_194 : f32 to vector<2x32xf32>
    %518 = arith.mulf %517, %516 : vector<2x32xf32>
    %cst_195 = arith.constant 5.000000e-01 : f32
    %519 = vector.broadcast %cst_195 : f32 to vector<2x32xf32>
    %520 = arith.addf %518, %519 : vector<2x32xf32>
    %521 = vector.extract_strided_slice %515 {offsets = [0, 32], sizes = [2, 32], strides = [1, 1]} : vector<2x128xf32> to vector<2x32xf32>
    %cst_196 = arith.constant 5.000000e-01 : f32
    %522 = vector.broadcast %cst_196 : f32 to vector<2x32xf32>
    %523 = arith.mulf %522, %521 : vector<2x32xf32>
    %cst_197 = arith.constant 5.000000e-01 : f32
    %524 = vector.broadcast %cst_197 : f32 to vector<2x32xf32>
    %525 = arith.addf %523, %524 : vector<2x32xf32>
    %526 = vector.extract_strided_slice %515 {offsets = [0, 64], sizes = [2, 32], strides = [1, 1]} : vector<2x128xf32> to vector<2x32xf32>
    %527 = vector.extract_strided_slice %515 {offsets = [0, 96], sizes = [2, 32], strides = [1, 1]} : vector<2x128xf32> to vector<2x32xf32>
    %cst_198 = arith.constant 5.000000e-01 : f32
    %528 = vector.broadcast %cst_198 : f32 to vector<2x32xf32>
    %529 = arith.mulf %528, %527 : vector<2x32xf32>
    %cst_199 = arith.constant 5.000000e-01 : f32
    %530 = vector.broadcast %cst_199 : f32 to vector<2x32xf32>
    %531 = arith.addf %529, %530 : vector<2x32xf32>
    %532 = arith.mulf %525, %508 : vector<2x32xf32>
    %533 = arith.mulf %520, %526 : vector<2x32xf32>
    %534 = arith.addf %532, %533 : vector<2x32xf32>
    %535 = math.tanh %534 : vector<2x32xf32>
    %536 = arith.mulf %531, %535 : vector<2x32xf32>
    %c4_200 = arith.constant 4 : index
    %c0_201 = arith.constant 0 : index
    %537 = vector.load %arg8[%c4_200, %c0_201] : memref<16x32xf32, #tpu.memory_space<vmem>>, vector<2x32xf32>
    tpu.vector_store %arg8[%c4_200, %c0_201], %536 {strides = array<i32>} : memref<16x32xf32, #tpu.memory_space<vmem>>, vector<2x32xf32>,
    %538 = vector.extract_strided_slice %455 {offsets = [6, 0], sizes = [2, 128], strides = [1, 1]} : vector<16x128xf32> to vector<2x128xf32>
    %cst_202 = arith.constant dense<0.000000e+00> : vector<2x128xf32>
    %539 = tpu.matmul %536, %457, %cst_202 {dimension_numbers = #tpu.dot_dimension_numbers<[1], [0], [0], [1], [0, 0, 1, 1], [], []>} : vector<2x32xf32>, vector<32x128xf32>, vector<2x128xf32> -> vector<2x128xf32>
    %540 = arith.addf %538, %539 : vector<2x128xf32>
    %541 = math.tanh %540 : vector<2x128xf32>
    %542 = vector.extract_strided_slice %541 {offsets = [0, 0], sizes = [2, 32], strides = [1, 1]} : vector<2x128xf32> to vector<2x32xf32>
    %cst_203 = arith.constant 5.000000e-01 : f32
    %543 = vector.broadcast %cst_203 : f32 to vector<2x32xf32>
    %544 = arith.mulf %543, %542 : vector<2x32xf32>
    %cst_204 = arith.constant 5.000000e-01 : f32
    %545 = vector.broadcast %cst_204 : f32 to vector<2x32xf32>
    %546 = arith.addf %544, %545 : vector<2x32xf32>
    %547 = vector.extract_strided_slice %541 {offsets = [0, 32], sizes = [2, 32], strides = [1, 1]} : vector<2x128xf32> to vector<2x32xf32>
    %cst_205 = arith.constant 5.000000e-01 : f32
    %548 = vector.broadcast %cst_205 : f32 to vector<2x32xf32>
    %549 = arith.mulf %548, %547 : vector<2x32xf32>
    %cst_206 = arith.constant 5.000000e-01 : f32
    %550 = vector.broadcast %cst_206 : f32 to vector<2x32xf32>
    %551 = arith.addf %549, %550 : vector<2x32xf32>
    %552 = vector.extract_strided_slice %541 {offsets = [0, 64], sizes = [2, 32], strides = [1, 1]} : vector<2x128xf32> to vector<2x32xf32>
    %553 = vector.extract_strided_slice %541 {offsets = [0, 96], sizes = [2, 32], strides = [1, 1]} : vector<2x128xf32> to vector<2x32xf32>
    %cst_207 = arith.constant 5.000000e-01 : f32
    %554 = vector.broadcast %cst_207 : f32 to vector<2x32xf32>
    %555 = arith.mulf %554, %553 : vector<2x32xf32>
    %cst_208 = arith.constant 5.000000e-01 : f32
    %556 = vector.broadcast %cst_208 : f32 to vector<2x32xf32>
    %557 = arith.addf %555, %556 : vector<2x32xf32>
    %558 = arith.mulf %551, %534 : vector<2x32xf32>
    %559 = arith.mulf %546, %552 : vector<2x32xf32>
    %560 = arith.addf %558, %559 : vector<2x32xf32>
    %561 = math.tanh %560 : vector<2x32xf32>
    %562 = arith.mulf %557, %561 : vector<2x32xf32>
    %c6_209 = arith.constant 6 : index
    %c0_210 = arith.constant 0 : index
    %563 = vector.load %arg8[%c6_209, %c0_210] : memref<16x32xf32, #tpu.memory_space<vmem>>, vector<2x32xf32>
    tpu.vector_store %arg8[%c6_209, %c0_210], %562 {strides = array<i32>} : memref<16x32xf32, #tpu.memory_space<vmem>>, vector<2x32xf32>,
    %564 = vector.extract_strided_slice %455 {offsets = [8, 0], sizes = [2, 128], strides = [1, 1]} : vector<16x128xf32> to vector<2x128xf32>
    %cst_211 = arith.constant dense<0.000000e+00> : vector<2x128xf32>
    %565 = tpu.matmul %562, %457, %cst_211 {dimension_numbers = #tpu.dot_dimension_numbers<[1], [0], [0], [1], [0, 0, 1, 1], [], []>} : vector<2x32xf32>, vector<32x128xf32>, vector<2x128xf32> -> vector<2x128xf32>
    %566 = arith.addf %564, %565 : vector<2x128xf32>
    %567 = math.tanh %566 : vector<2x128xf32>
    %568 = vector.extract_strided_slice %567 {offsets = [0, 0], sizes = [2, 32], strides = [1, 1]} : vector<2x128xf32> to vector<2x32xf32>
    %cst_212 = arith.constant 5.000000e-01 : f32
    %569 = vector.broadcast %cst_212 : f32 to vector<2x32xf32>
    %570 = arith.mulf %569, %568 : vector<2x32xf32>
    %cst_213 = arith.constant 5.000000e-01 : f32
    %571 = vector.broadcast %cst_213 : f32 to vector<2x32xf32>
    %572 = arith.addf %570, %571 : vector<2x32xf32>
    %573 = vector.extract_strided_slice %567 {offsets = [0, 32], sizes = [2, 32], strides = [1, 1]} : vector<2x128xf32> to vector<2x32xf32>
    %cst_214 = arith.constant 5.000000e-01 : f32
    %574 = vector.broadcast %cst_214 : f32 to vector<2x32xf32>
    %575 = arith.mulf %574, %573 : vector<2x32xf32>
    %cst_215 = arith.constant 5.000000e-01 : f32
    %576 = vector.broadcast %cst_215 : f32 to vector<2x32xf32>
    %577 = arith.addf %575, %576 : vector<2x32xf32>
    %578 = vector.extract_strided_slice %567 {offsets = [0, 64], sizes = [2, 32], strides = [1, 1]} : vector<2x128xf32> to vector<2x32xf32>
    %579 = vector.extract_strided_slice %567 {offsets = [0, 96], sizes = [2, 32], strides = [1, 1]} : vector<2x128xf32> to vector<2x32xf32>
    %cst_216 = arith.constant 5.000000e-01 : f32
    %580 = vector.broadcast %cst_216 : f32 to vector<2x32xf32>
    %581 = arith.mulf %580, %579 : vector<2x32xf32>
    %cst_217 = arith.constant 5.000000e-01 : f32
    %582 = vector.broadcast %cst_217 : f32 to vector<2x32xf32>
    %583 = arith.addf %581, %582 : vector<2x32xf32>
    %584 = arith.mulf %577, %560 : vector<2x32xf32>
    %585 = arith.mulf %572, %578 : vector<2x32xf32>
    %586 = arith.addf %584, %585 : vector<2x32xf32>
    %587 = math.tanh %586 : vector<2x32xf32>
    %588 = arith.mulf %583, %587 : vector<2x32xf32>
    %c8_218 = arith.constant 8 : index
    %c0_219 = arith.constant 0 : index
    %589 = vector.load %arg8[%c8_218, %c0_219] : memref<16x32xf32, #tpu.memory_space<vmem>>, vector<2x32xf32>
    tpu.vector_store %arg8[%c8_218, %c0_219], %588 {strides = array<i32>} : memref<16x32xf32, #tpu.memory_space<vmem>>, vector<2x32xf32>,
    %590 = vector.extract_strided_slice %455 {offsets = [10, 0], sizes = [2, 128], strides = [1, 1]} : vector<16x128xf32> to vector<2x128xf32>
    %cst_220 = arith.constant dense<0.000000e+00> : vector<2x128xf32>
    %591 = tpu.matmul %588, %457, %cst_220 {dimension_numbers = #tpu.dot_dimension_numbers<[1], [0], [0], [1], [0, 0, 1, 1], [], []>} : vector<2x32xf32>, vector<32x128xf32>, vector<2x128xf32> -> vector<2x128xf32>
    %592 = arith.addf %590, %591 : vector<2x128xf32>
    %593 = math.tanh %592 : vector<2x128xf32>
    %594 = vector.extract_strided_slice %593 {offsets = [0, 0], sizes = [2, 32], strides = [1, 1]} : vector<2x128xf32> to vector<2x32xf32>
    %cst_221 = arith.constant 5.000000e-01 : f32
    %595 = vector.broadcast %cst_221 : f32 to vector<2x32xf32>
    %596 = arith.mulf %595, %594 : vector<2x32xf32>
    %cst_222 = arith.constant 5.000000e-01 : f32
    %597 = vector.broadcast %cst_222 : f32 to vector<2x32xf32>
    %598 = arith.addf %596, %597 : vector<2x32xf32>
    %599 = vector.extract_strided_slice %593 {offsets = [0, 32], sizes = [2, 32], strides = [1, 1]} : vector<2x128xf32> to vector<2x32xf32>
    %cst_223 = arith.constant 5.000000e-01 : f32
    %600 = vector.broadcast %cst_223 : f32 to vector<2x32xf32>
    %601 = arith.mulf %600, %599 : vector<2x32xf32>
    %cst_224 = arith.constant 5.000000e-01 : f32
    %602 = vector.broadcast %cst_224 : f32 to vector<2x32xf32>
    %603 = arith.addf %601, %602 : vector<2x32xf32>
    %604 = vector.extract_strided_slice %593 {offsets = [0, 64], sizes = [2, 32], strides = [1, 1]} : vector<2x128xf32> to vector<2x32xf32>
    %605 = vector.extract_strided_slice %593 {offsets = [0, 96], sizes = [2, 32], strides = [1, 1]} : vector<2x128xf32> to vector<2x32xf32>
    %cst_225 = arith.constant 5.000000e-01 : f32
    %606 = vector.broadcast %cst_225 : f32 to vector<2x32xf32>
    %607 = arith.mulf %606, %605 : vector<2x32xf32>
    %cst_226 = arith.constant 5.000000e-01 : f32
    %608 = vector.broadcast %cst_226 : f32 to vector<2x32xf32>
    %609 = arith.addf %607, %608 : vector<2x32xf32>
    %610 = arith.mulf %603, %586 : vector<2x32xf32>
    %611 = arith.mulf %598, %604 : vector<2x32xf32>
    %612 = arith.addf %610, %611 : vector<2x32xf32>
    %613 = math.tanh %612 : vector<2x32xf32>
    %614 = arith.mulf %609, %613 : vector<2x32xf32>
    %c10_227 = arith.constant 10 : index
    %c0_228 = arith.constant 0 : index
    %615 = vector.load %arg8[%c10_227, %c0_228] : memref<16x32xf32, #tpu.memory_space<vmem>>, vector<2x32xf32>
    tpu.vector_store %arg8[%c10_227, %c0_228], %614 {strides = array<i32>} : memref<16x32xf32, #tpu.memory_space<vmem>>, vector<2x32xf32>,
    %616 = vector.extract_strided_slice %455 {offsets = [12, 0], sizes = [2, 128], strides = [1, 1]} : vector<16x128xf32> to vector<2x128xf32>
    %cst_229 = arith.constant dense<0.000000e+00> : vector<2x128xf32>
    %617 = tpu.matmul %614, %457, %cst_229 {dimension_numbers = #tpu.dot_dimension_numbers<[1], [0], [0], [1], [0, 0, 1, 1], [], []>} : vector<2x32xf32>, vector<32x128xf32>, vector<2x128xf32> -> vector<2x128xf32>
    %618 = arith.addf %616, %617 : vector<2x128xf32>
    %619 = math.tanh %618 : vector<2x128xf32>
    %620 = vector.extract_strided_slice %619 {offsets = [0, 0], sizes = [2, 32], strides = [1, 1]} : vector<2x128xf32> to vector<2x32xf32>
    %cst_230 = arith.constant 5.000000e-01 : f32
    %621 = vector.broadcast %cst_230 : f32 to vector<2x32xf32>
    %622 = arith.mulf %621, %620 : vector<2x32xf32>
    %cst_231 = arith.constant 5.000000e-01 : f32
    %623 = vector.broadcast %cst_231 : f32 to vector<2x32xf32>
    %624 = arith.addf %622, %623 : vector<2x32xf32>
    %625 = vector.extract_strided_slice %619 {offsets = [0, 32], sizes = [2, 32], strides = [1, 1]} : vector<2x128xf32> to vector<2x32xf32>
    %cst_232 = arith.constant 5.000000e-01 : f32
    %626 = vector.broadcast %cst_232 : f32 to vector<2x32xf32>
    %627 = arith.mulf %626, %625 : vector<2x32xf32>
    %cst_233 = arith.constant 5.000000e-01 : f32
    %628 = vector.broadcast %cst_233 : f32 to vector<2x32xf32>
    %629 = arith.addf %627, %628 : vector<2x32xf32>
    %630 = vector.extract_strided_slice %619 {offsets = [0, 64], sizes = [2, 32], strides = [1, 1]} : vector<2x128xf32> to vector<2x32xf32>
    %631 = vector.extract_strided_slice %619 {offsets = [0, 96], sizes = [2, 32], strides = [1, 1]} : vector<2x128xf32> to vector<2x32xf32>
    %cst_234 = arith.constant 5.000000e-01 : f32
    %632 = vector.broadcast %cst_234 : f32 to vector<2x32xf32>
    %633 = arith.mulf %632, %631 : vector<2x32xf32>
    %cst_235 = arith.constant 5.000000e-01 : f32
    %634 = vector.broadcast %cst_235 : f32 to vector<2x32xf32>
    %635 = arith.addf %633, %634 : vector<2x32xf32>
    %636 = arith.mulf %629, %612 : vector<2x32xf32>
    %637 = arith.mulf %624, %630 : vector<2x32xf32>
    %638 = arith.addf %636, %637 : vector<2x32xf32>
    %639 = math.tanh %638 : vector<2x32xf32>
    %640 = arith.mulf %635, %639 : vector<2x32xf32>
    %c12_236 = arith.constant 12 : index
    %c0_237 = arith.constant 0 : index
    %641 = vector.load %arg8[%c12_236, %c0_237] : memref<16x32xf32, #tpu.memory_space<vmem>>, vector<2x32xf32>
    tpu.vector_store %arg8[%c12_236, %c0_237], %640 {strides = array<i32>} : memref<16x32xf32, #tpu.memory_space<vmem>>, vector<2x32xf32>,
    %642 = vector.extract_strided_slice %455 {offsets = [14, 0], sizes = [2, 128], strides = [1, 1]} : vector<16x128xf32> to vector<2x128xf32>
    %cst_238 = arith.constant dense<0.000000e+00> : vector<2x128xf32>
    %643 = tpu.matmul %640, %457, %cst_238 {dimension_numbers = #tpu.dot_dimension_numbers<[1], [0], [0], [1], [0, 0, 1, 1], [], []>} : vector<2x32xf32>, vector<32x128xf32>, vector<2x128xf32> -> vector<2x128xf32>
    %644 = arith.addf %642, %643 : vector<2x128xf32>
    %645 = math.tanh %644 : vector<2x128xf32>
    %646 = vector.extract_strided_slice %645 {offsets = [0, 0], sizes = [2, 32], strides = [1, 1]} : vector<2x128xf32> to vector<2x32xf32>
    %cst_239 = arith.constant 5.000000e-01 : f32
    %647 = vector.broadcast %cst_239 : f32 to vector<2x32xf32>
    %648 = arith.mulf %647, %646 : vector<2x32xf32>
    %cst_240 = arith.constant 5.000000e-01 : f32
    %649 = vector.broadcast %cst_240 : f32 to vector<2x32xf32>
    %650 = arith.addf %648, %649 : vector<2x32xf32>
    %651 = vector.extract_strided_slice %645 {offsets = [0, 32], sizes = [2, 32], strides = [1, 1]} : vector<2x128xf32> to vector<2x32xf32>
    %cst_241 = arith.constant 5.000000e-01 : f32
    %652 = vector.broadcast %cst_241 : f32 to vector<2x32xf32>
    %653 = arith.mulf %652, %651 : vector<2x32xf32>
    %cst_242 = arith.constant 5.000000e-01 : f32
    %654 = vector.broadcast %cst_242 : f32 to vector<2x32xf32>
    %655 = arith.addf %653, %654 : vector<2x32xf32>
    %656 = vector.extract_strided_slice %645 {offsets = [0, 64], sizes = [2, 32], strides = [1, 1]} : vector<2x128xf32> to vector<2x32xf32>
    %657 = vector.extract_strided_slice %645 {offsets = [0, 96], sizes = [2, 32], strides = [1, 1]} : vector<2x128xf32> to vector<2x32xf32>
    %cst_243 = arith.constant 5.000000e-01 : f32
    %658 = vector.broadcast %cst_243 : f32 to vector<2x32xf32>
    %659 = arith.mulf %658, %657 : vector<2x32xf32>
    %cst_244 = arith.constant 5.000000e-01 : f32
    %660 = vector.broadcast %cst_244 : f32 to vector<2x32xf32>
    %661 = arith.addf %659, %660 : vector<2x32xf32>
    %662 = arith.mulf %655, %638 : vector<2x32xf32>
    %663 = arith.mulf %650, %656 : vector<2x32xf32>
    %664 = arith.addf %662, %663 : vector<2x32xf32>
    %665 = math.tanh %664 : vector<2x32xf32>
    %666 = arith.mulf %661, %665 : vector<2x32xf32>
    %c14_245 = arith.constant 14 : index
    %c0_246 = arith.constant 0 : index
    %667 = vector.load %arg8[%c14_245, %c0_246] : memref<16x32xf32, #tpu.memory_space<vmem>>, vector<2x32xf32>
    tpu.vector_store %arg8[%c14_245, %c0_246], %666 {strides = array<i32>} : memref<16x32xf32, #tpu.memory_space<vmem>>, vector<2x32xf32>,
    %c0_247 = arith.constant 0 : index
    %c0_248 = arith.constant 0 : index
    %668 = vector.load %arg8[%c0_247, %c0_248] : memref<16x32xf32, #tpu.memory_space<vmem>>, vector<16x32xf32>
    %c2_249 = arith.constant 2 : index
    %c0_250 = arith.constant 0 : index
    %c0_251 = arith.constant 0 : index
    %669 = vector.load %arg3[%c2_249, %c0_250, %c0_251] : memref<3x32x128xf32, #tpu.memory_space<vmem>>, vector<1x32x128xf32>
    %670 = vector.shape_cast %669 : vector<1x32x128xf32> to vector<32x128xf32>
    %cst_252 = arith.constant dense<0.000000e+00> : vector<16x128xf32>
    %671 = tpu.matmul %668, %670, %cst_252 {dimension_numbers = #tpu.dot_dimension_numbers<[1], [0], [0], [1], [0, 0, 1, 1], [], []>} : vector<16x32xf32>, vector<32x128xf32>, vector<16x128xf32> -> vector<16x128xf32>
    %c3 = arith.constant 3 : index
    %c0_253 = arith.constant 0 : index
    %c0_254 = arith.constant 0 : index
    %672 = vector.load %arg4[%c3, %c0_253, %c0_254] : memref<4x1x128xf32, #tpu.memory_space<vmem>>, vector<1x1x128xf32>
    %673 = vector.shape_cast %672 : vector<1x1x128xf32> to vector<1x128xf32>
    %674 = vector.broadcast %673 : vector<1x128xf32> to vector<16x128xf32>
    %675 = arith.addf %671, %674 : vector<16x128xf32>
    %c3_255 = arith.constant 3 : index
    %c0_256 = arith.constant 0 : index
    %c0_257 = arith.constant 0 : index
    %676 = vector.load %arg2[%c3_255, %c0_256, %c0_257] : memref<4x32x128xf32, #tpu.memory_space<vmem>>, vector<1x32x128xf32>
    %677 = vector.shape_cast %676 : vector<1x32x128xf32> to vector<32x128xf32>
    %cst_258 = arith.constant 0.000000e+00 : f32
    %678 = vector.broadcast %cst_258 : f32 to vector<2x32xf32>
    %cst_259 = arith.constant 0.000000e+00 : f32
    %679 = vector.broadcast %cst_259 : f32 to vector<2x32xf32>
    %680 = vector.extract_strided_slice %675 {offsets = [0, 0], sizes = [2, 128], strides = [1, 1]} : vector<16x128xf32> to vector<2x128xf32>
    %cst_260 = arith.constant dense<0.000000e+00> : vector<2x128xf32>
    %681 = tpu.matmul %678, %677, %cst_260 {dimension_numbers = #tpu.dot_dimension_numbers<[1], [0], [0], [1], [0, 0, 1, 1], [], []>} : vector<2x32xf32>, vector<32x128xf32>, vector<2x128xf32> -> vector<2x128xf32>
    %682 = arith.addf %680, %681 : vector<2x128xf32>
    %683 = math.tanh %682 : vector<2x128xf32>
    %684 = vector.extract_strided_slice %683 {offsets = [0, 0], sizes = [2, 32], strides = [1, 1]} : vector<2x128xf32> to vector<2x32xf32>
    %cst_261 = arith.constant 5.000000e-01 : f32
    %685 = vector.broadcast %cst_261 : f32 to vector<2x32xf32>
    %686 = arith.mulf %685, %684 : vector<2x32xf32>
    %cst_262 = arith.constant 5.000000e-01 : f32
    %687 = vector.broadcast %cst_262 : f32 to vector<2x32xf32>
    %688 = arith.addf %686, %687 : vector<2x32xf32>
    %689 = vector.extract_strided_slice %683 {offsets = [0, 32], sizes = [2, 32], strides = [1, 1]} : vector<2x128xf32> to vector<2x32xf32>
    %cst_263 = arith.constant 5.000000e-01 : f32
    %690 = vector.broadcast %cst_263 : f32 to vector<2x32xf32>
    %691 = arith.mulf %690, %689 : vector<2x32xf32>
    %cst_264 = arith.constant 5.000000e-01 : f32
    %692 = vector.broadcast %cst_264 : f32 to vector<2x32xf32>
    %693 = arith.addf %691, %692 : vector<2x32xf32>
    %694 = vector.extract_strided_slice %683 {offsets = [0, 64], sizes = [2, 32], strides = [1, 1]} : vector<2x128xf32> to vector<2x32xf32>
    %695 = vector.extract_strided_slice %683 {offsets = [0, 96], sizes = [2, 32], strides = [1, 1]} : vector<2x128xf32> to vector<2x32xf32>
    %cst_265 = arith.constant 5.000000e-01 : f32
    %696 = vector.broadcast %cst_265 : f32 to vector<2x32xf32>
    %697 = arith.mulf %696, %695 : vector<2x32xf32>
    %cst_266 = arith.constant 5.000000e-01 : f32
    %698 = vector.broadcast %cst_266 : f32 to vector<2x32xf32>
    %699 = arith.addf %697, %698 : vector<2x32xf32>
    %700 = arith.mulf %693, %679 : vector<2x32xf32>
    %701 = arith.mulf %688, %694 : vector<2x32xf32>
    %702 = arith.addf %700, %701 : vector<2x32xf32>
    %703 = math.tanh %702 : vector<2x32xf32>
    %704 = arith.mulf %699, %703 : vector<2x32xf32>
    %705 = vector.extract_strided_slice %675 {offsets = [2, 0], sizes = [2, 128], strides = [1, 1]} : vector<16x128xf32> to vector<2x128xf32>
    %cst_267 = arith.constant dense<0.000000e+00> : vector<2x128xf32>
    %706 = tpu.matmul %704, %677, %cst_267 {dimension_numbers = #tpu.dot_dimension_numbers<[1], [0], [0], [1], [0, 0, 1, 1], [], []>} : vector<2x32xf32>, vector<32x128xf32>, vector<2x128xf32> -> vector<2x128xf32>
    %707 = arith.addf %705, %706 : vector<2x128xf32>
    %708 = math.tanh %707 : vector<2x128xf32>
    %709 = vector.extract_strided_slice %708 {offsets = [0, 0], sizes = [2, 32], strides = [1, 1]} : vector<2x128xf32> to vector<2x32xf32>
    %cst_268 = arith.constant 5.000000e-01 : f32
    %710 = vector.broadcast %cst_268 : f32 to vector<2x32xf32>
    %711 = arith.mulf %710, %709 : vector<2x32xf32>
    %cst_269 = arith.constant 5.000000e-01 : f32
    %712 = vector.broadcast %cst_269 : f32 to vector<2x32xf32>
    %713 = arith.addf %711, %712 : vector<2x32xf32>
    %714 = vector.extract_strided_slice %708 {offsets = [0, 32], sizes = [2, 32], strides = [1, 1]} : vector<2x128xf32> to vector<2x32xf32>
    %cst_270 = arith.constant 5.000000e-01 : f32
    %715 = vector.broadcast %cst_270 : f32 to vector<2x32xf32>
    %716 = arith.mulf %715, %714 : vector<2x32xf32>
    %cst_271 = arith.constant 5.000000e-01 : f32
    %717 = vector.broadcast %cst_271 : f32 to vector<2x32xf32>
    %718 = arith.addf %716, %717 : vector<2x32xf32>
    %719 = vector.extract_strided_slice %708 {offsets = [0, 64], sizes = [2, 32], strides = [1, 1]} : vector<2x128xf32> to vector<2x32xf32>
    %720 = vector.extract_strided_slice %708 {offsets = [0, 96], sizes = [2, 32], strides = [1, 1]} : vector<2x128xf32> to vector<2x32xf32>
    %cst_272 = arith.constant 5.000000e-01 : f32
    %721 = vector.broadcast %cst_272 : f32 to vector<2x32xf32>
    %722 = arith.mulf %721, %720 : vector<2x32xf32>
    %cst_273 = arith.constant 5.000000e-01 : f32
    %723 = vector.broadcast %cst_273 : f32 to vector<2x32xf32>
    %724 = arith.addf %722, %723 : vector<2x32xf32>
    %725 = arith.mulf %718, %702 : vector<2x32xf32>
    %726 = arith.mulf %713, %719 : vector<2x32xf32>
    %727 = arith.addf %725, %726 : vector<2x32xf32>
    %728 = math.tanh %727 : vector<2x32xf32>
    %729 = arith.mulf %724, %728 : vector<2x32xf32>
    %730 = vector.extract_strided_slice %675 {offsets = [4, 0], sizes = [2, 128], strides = [1, 1]} : vector<16x128xf32> to vector<2x128xf32>
    %cst_274 = arith.constant dense<0.000000e+00> : vector<2x128xf32>
    %731 = tpu.matmul %729, %677, %cst_274 {dimension_numbers = #tpu.dot_dimension_numbers<[1], [0], [0], [1], [0, 0, 1, 1], [], []>} : vector<2x32xf32>, vector<32x128xf32>, vector<2x128xf32> -> vector<2x128xf32>
    %732 = arith.addf %730, %731 : vector<2x128xf32>
    %733 = math.tanh %732 : vector<2x128xf32>
    %734 = vector.extract_strided_slice %733 {offsets = [0, 0], sizes = [2, 32], strides = [1, 1]} : vector<2x128xf32> to vector<2x32xf32>
    %cst_275 = arith.constant 5.000000e-01 : f32
    %735 = vector.broadcast %cst_275 : f32 to vector<2x32xf32>
    %736 = arith.mulf %735, %734 : vector<2x32xf32>
    %cst_276 = arith.constant 5.000000e-01 : f32
    %737 = vector.broadcast %cst_276 : f32 to vector<2x32xf32>
    %738 = arith.addf %736, %737 : vector<2x32xf32>
    %739 = vector.extract_strided_slice %733 {offsets = [0, 32], sizes = [2, 32], strides = [1, 1]} : vector<2x128xf32> to vector<2x32xf32>
    %cst_277 = arith.constant 5.000000e-01 : f32
    %740 = vector.broadcast %cst_277 : f32 to vector<2x32xf32>
    %741 = arith.mulf %740, %739 : vector<2x32xf32>
    %cst_278 = arith.constant 5.000000e-01 : f32
    %742 = vector.broadcast %cst_278 : f32 to vector<2x32xf32>
    %743 = arith.addf %741, %742 : vector<2x32xf32>
    %744 = vector.extract_strided_slice %733 {offsets = [0, 64], sizes = [2, 32], strides = [1, 1]} : vector<2x128xf32> to vector<2x32xf32>
    %745 = vector.extract_strided_slice %733 {offsets = [0, 96], sizes = [2, 32], strides = [1, 1]} : vector<2x128xf32> to vector<2x32xf32>
    %cst_279 = arith.constant 5.000000e-01 : f32
    %746 = vector.broadcast %cst_279 : f32 to vector<2x32xf32>
    %747 = arith.mulf %746, %745 : vector<2x32xf32>
    %cst_280 = arith.constant 5.000000e-01 : f32
    %748 = vector.broadcast %cst_280 : f32 to vector<2x32xf32>
    %749 = arith.addf %747, %748 : vector<2x32xf32>
    %750 = arith.mulf %743, %727 : vector<2x32xf32>
    %751 = arith.mulf %738, %744 : vector<2x32xf32>
    %752 = arith.addf %750, %751 : vector<2x32xf32>
    %753 = math.tanh %752 : vector<2x32xf32>
    %754 = arith.mulf %749, %753 : vector<2x32xf32>
    %755 = vector.extract_strided_slice %675 {offsets = [6, 0], sizes = [2, 128], strides = [1, 1]} : vector<16x128xf32> to vector<2x128xf32>
    %cst_281 = arith.constant dense<0.000000e+00> : vector<2x128xf32>
    %756 = tpu.matmul %754, %677, %cst_281 {dimension_numbers = #tpu.dot_dimension_numbers<[1], [0], [0], [1], [0, 0, 1, 1], [], []>} : vector<2x32xf32>, vector<32x128xf32>, vector<2x128xf32> -> vector<2x128xf32>
    %757 = arith.addf %755, %756 : vector<2x128xf32>
    %758 = math.tanh %757 : vector<2x128xf32>
    %759 = vector.extract_strided_slice %758 {offsets = [0, 0], sizes = [2, 32], strides = [1, 1]} : vector<2x128xf32> to vector<2x32xf32>
    %cst_282 = arith.constant 5.000000e-01 : f32
    %760 = vector.broadcast %cst_282 : f32 to vector<2x32xf32>
    %761 = arith.mulf %760, %759 : vector<2x32xf32>
    %cst_283 = arith.constant 5.000000e-01 : f32
    %762 = vector.broadcast %cst_283 : f32 to vector<2x32xf32>
    %763 = arith.addf %761, %762 : vector<2x32xf32>
    %764 = vector.extract_strided_slice %758 {offsets = [0, 32], sizes = [2, 32], strides = [1, 1]} : vector<2x128xf32> to vector<2x32xf32>
    %cst_284 = arith.constant 5.000000e-01 : f32
    %765 = vector.broadcast %cst_284 : f32 to vector<2x32xf32>
    %766 = arith.mulf %765, %764 : vector<2x32xf32>
    %cst_285 = arith.constant 5.000000e-01 : f32
    %767 = vector.broadcast %cst_285 : f32 to vector<2x32xf32>
    %768 = arith.addf %766, %767 : vector<2x32xf32>
    %769 = vector.extract_strided_slice %758 {offsets = [0, 64], sizes = [2, 32], strides = [1, 1]} : vector<2x128xf32> to vector<2x32xf32>
    %770 = vector.extract_strided_slice %758 {offsets = [0, 96], sizes = [2, 32], strides = [1, 1]} : vector<2x128xf32> to vector<2x32xf32>
    %cst_286 = arith.constant 5.000000e-01 : f32
    %771 = vector.broadcast %cst_286 : f32 to vector<2x32xf32>
    %772 = arith.mulf %771, %770 : vector<2x32xf32>
    %cst_287 = arith.constant 5.000000e-01 : f32
    %773 = vector.broadcast %cst_287 : f32 to vector<2x32xf32>
    %774 = arith.addf %772, %773 : vector<2x32xf32>
    %775 = arith.mulf %768, %752 : vector<2x32xf32>
    %776 = arith.mulf %763, %769 : vector<2x32xf32>
    %777 = arith.addf %775, %776 : vector<2x32xf32>
    %778 = math.tanh %777 : vector<2x32xf32>
    %779 = arith.mulf %774, %778 : vector<2x32xf32>
    %780 = vector.extract_strided_slice %675 {offsets = [8, 0], sizes = [2, 128], strides = [1, 1]} : vector<16x128xf32> to vector<2x128xf32>
    %cst_288 = arith.constant dense<0.000000e+00> : vector<2x128xf32>
    %781 = tpu.matmul %779, %677, %cst_288 {dimension_numbers = #tpu.dot_dimension_numbers<[1], [0], [0], [1], [0, 0, 1, 1], [], []>} : vector<2x32xf32>, vector<32x128xf32>, vector<2x128xf32> -> vector<2x128xf32>
    %782 = arith.addf %780, %781 : vector<2x128xf32>
    %783 = math.tanh %782 : vector<2x128xf32>
    %784 = vector.extract_strided_slice %783 {offsets = [0, 0], sizes = [2, 32], strides = [1, 1]} : vector<2x128xf32> to vector<2x32xf32>
    %cst_289 = arith.constant 5.000000e-01 : f32
    %785 = vector.broadcast %cst_289 : f32 to vector<2x32xf32>
    %786 = arith.mulf %785, %784 : vector<2x32xf32>
    %cst_290 = arith.constant 5.000000e-01 : f32
    %787 = vector.broadcast %cst_290 : f32 to vector<2x32xf32>
    %788 = arith.addf %786, %787 : vector<2x32xf32>
    %789 = vector.extract_strided_slice %783 {offsets = [0, 32], sizes = [2, 32], strides = [1, 1]} : vector<2x128xf32> to vector<2x32xf32>
    %cst_291 = arith.constant 5.000000e-01 : f32
    %790 = vector.broadcast %cst_291 : f32 to vector<2x32xf32>
    %791 = arith.mulf %790, %789 : vector<2x32xf32>
    %cst_292 = arith.constant 5.000000e-01 : f32
    %792 = vector.broadcast %cst_292 : f32 to vector<2x32xf32>
    %793 = arith.addf %791, %792 : vector<2x32xf32>
    %794 = vector.extract_strided_slice %783 {offsets = [0, 64], sizes = [2, 32], strides = [1, 1]} : vector<2x128xf32> to vector<2x32xf32>
    %795 = vector.extract_strided_slice %783 {offsets = [0, 96], sizes = [2, 32], strides = [1, 1]} : vector<2x128xf32> to vector<2x32xf32>
    %cst_293 = arith.constant 5.000000e-01 : f32
    %796 = vector.broadcast %cst_293 : f32 to vector<2x32xf32>
    %797 = arith.mulf %796, %795 : vector<2x32xf32>
    %cst_294 = arith.constant 5.000000e-01 : f32
    %798 = vector.broadcast %cst_294 : f32 to vector<2x32xf32>
    %799 = arith.addf %797, %798 : vector<2x32xf32>
    %800 = arith.mulf %793, %777 : vector<2x32xf32>
    %801 = arith.mulf %788, %794 : vector<2x32xf32>
    %802 = arith.addf %800, %801 : vector<2x32xf32>
    %803 = math.tanh %802 : vector<2x32xf32>
    %804 = arith.mulf %799, %803 : vector<2x32xf32>
    %805 = vector.extract_strided_slice %675 {offsets = [10, 0], sizes = [2, 128], strides = [1, 1]} : vector<16x128xf32> to vector<2x128xf32>
    %cst_295 = arith.constant dense<0.000000e+00> : vector<2x128xf32>
    %806 = tpu.matmul %804, %677, %cst_295 {dimension_numbers = #tpu.dot_dimension_numbers<[1], [0], [0], [1], [0, 0, 1, 1], [], []>} : vector<2x32xf32>, vector<32x128xf32>, vector<2x128xf32> -> vector<2x128xf32>
    %807 = arith.addf %805, %806 : vector<2x128xf32>
    %808 = math.tanh %807 : vector<2x128xf32>
    %809 = vector.extract_strided_slice %808 {offsets = [0, 0], sizes = [2, 32], strides = [1, 1]} : vector<2x128xf32> to vector<2x32xf32>
    %cst_296 = arith.constant 5.000000e-01 : f32
    %810 = vector.broadcast %cst_296 : f32 to vector<2x32xf32>
    %811 = arith.mulf %810, %809 : vector<2x32xf32>
    %cst_297 = arith.constant 5.000000e-01 : f32
    %812 = vector.broadcast %cst_297 : f32 to vector<2x32xf32>
    %813 = arith.addf %811, %812 : vector<2x32xf32>
    %814 = vector.extract_strided_slice %808 {offsets = [0, 32], sizes = [2, 32], strides = [1, 1]} : vector<2x128xf32> to vector<2x32xf32>
    %cst_298 = arith.constant 5.000000e-01 : f32
    %815 = vector.broadcast %cst_298 : f32 to vector<2x32xf32>
    %816 = arith.mulf %815, %814 : vector<2x32xf32>
    %cst_299 = arith.constant 5.000000e-01 : f32
    %817 = vector.broadcast %cst_299 : f32 to vector<2x32xf32>
    %818 = arith.addf %816, %817 : vector<2x32xf32>
    %819 = vector.extract_strided_slice %808 {offsets = [0, 64], sizes = [2, 32], strides = [1, 1]} : vector<2x128xf32> to vector<2x32xf32>
    %820 = vector.extract_strided_slice %808 {offsets = [0, 96], sizes = [2, 32], strides = [1, 1]} : vector<2x128xf32> to vector<2x32xf32>
    %cst_300 = arith.constant 5.000000e-01 : f32
    %821 = vector.broadcast %cst_300 : f32 to vector<2x32xf32>
    %822 = arith.mulf %821, %820 : vector<2x32xf32>
    %cst_301 = arith.constant 5.000000e-01 : f32
    %823 = vector.broadcast %cst_301 : f32 to vector<2x32xf32>
    %824 = arith.addf %822, %823 : vector<2x32xf32>
    %825 = arith.mulf %818, %802 : vector<2x32xf32>
    %826 = arith.mulf %813, %819 : vector<2x32xf32>
    %827 = arith.addf %825, %826 : vector<2x32xf32>
    %828 = math.tanh %827 : vector<2x32xf32>
    %829 = arith.mulf %824, %828 : vector<2x32xf32>
    %830 = vector.extract_strided_slice %675 {offsets = [12, 0], sizes = [2, 128], strides = [1, 1]} : vector<16x128xf32> to vector<2x128xf32>
    %cst_302 = arith.constant dense<0.000000e+00> : vector<2x128xf32>
    %831 = tpu.matmul %829, %677, %cst_302 {dimension_numbers = #tpu.dot_dimension_numbers<[1], [0], [0], [1], [0, 0, 1, 1], [], []>} : vector<2x32xf32>, vector<32x128xf32>, vector<2x128xf32> -> vector<2x128xf32>
    %832 = arith.addf %830, %831 : vector<2x128xf32>
    %833 = math.tanh %832 : vector<2x128xf32>
    %834 = vector.extract_strided_slice %833 {offsets = [0, 0], sizes = [2, 32], strides = [1, 1]} : vector<2x128xf32> to vector<2x32xf32>
    %cst_303 = arith.constant 5.000000e-01 : f32
    %835 = vector.broadcast %cst_303 : f32 to vector<2x32xf32>
    %836 = arith.mulf %835, %834 : vector<2x32xf32>
    %cst_304 = arith.constant 5.000000e-01 : f32
    %837 = vector.broadcast %cst_304 : f32 to vector<2x32xf32>
    %838 = arith.addf %836, %837 : vector<2x32xf32>
    %839 = vector.extract_strided_slice %833 {offsets = [0, 32], sizes = [2, 32], strides = [1, 1]} : vector<2x128xf32> to vector<2x32xf32>
    %cst_305 = arith.constant 5.000000e-01 : f32
    %840 = vector.broadcast %cst_305 : f32 to vector<2x32xf32>
    %841 = arith.mulf %840, %839 : vector<2x32xf32>
    %cst_306 = arith.constant 5.000000e-01 : f32
    %842 = vector.broadcast %cst_306 : f32 to vector<2x32xf32>
    %843 = arith.addf %841, %842 : vector<2x32xf32>
    %844 = vector.extract_strided_slice %833 {offsets = [0, 64], sizes = [2, 32], strides = [1, 1]} : vector<2x128xf32> to vector<2x32xf32>
    %845 = vector.extract_strided_slice %833 {offsets = [0, 96], sizes = [2, 32], strides = [1, 1]} : vector<2x128xf32> to vector<2x32xf32>
    %cst_307 = arith.constant 5.000000e-01 : f32
    %846 = vector.broadcast %cst_307 : f32 to vector<2x32xf32>
    %847 = arith.mulf %846, %845 : vector<2x32xf32>
    %cst_308 = arith.constant 5.000000e-01 : f32
    %848 = vector.broadcast %cst_308 : f32 to vector<2x32xf32>
    %849 = arith.addf %847, %848 : vector<2x32xf32>
    %850 = arith.mulf %843, %827 : vector<2x32xf32>
    %851 = arith.mulf %838, %844 : vector<2x32xf32>
    %852 = arith.addf %850, %851 : vector<2x32xf32>
    %853 = math.tanh %852 : vector<2x32xf32>
    %854 = arith.mulf %849, %853 : vector<2x32xf32>
    %855 = vector.extract_strided_slice %675 {offsets = [14, 0], sizes = [2, 128], strides = [1, 1]} : vector<16x128xf32> to vector<2x128xf32>
    %cst_309 = arith.constant dense<0.000000e+00> : vector<2x128xf32>
    %856 = tpu.matmul %854, %677, %cst_309 {dimension_numbers = #tpu.dot_dimension_numbers<[1], [0], [0], [1], [0, 0, 1, 1], [], []>} : vector<2x32xf32>, vector<32x128xf32>, vector<2x128xf32> -> vector<2x128xf32>
    %857 = arith.addf %855, %856 : vector<2x128xf32>
    %858 = math.tanh %857 : vector<2x128xf32>
    %859 = vector.extract_strided_slice %858 {offsets = [0, 0], sizes = [2, 32], strides = [1, 1]} : vector<2x128xf32> to vector<2x32xf32>
    %cst_310 = arith.constant 5.000000e-01 : f32
    %860 = vector.broadcast %cst_310 : f32 to vector<2x32xf32>
    %861 = arith.mulf %860, %859 : vector<2x32xf32>
    %cst_311 = arith.constant 5.000000e-01 : f32
    %862 = vector.broadcast %cst_311 : f32 to vector<2x32xf32>
    %863 = arith.addf %861, %862 : vector<2x32xf32>
    %864 = vector.extract_strided_slice %858 {offsets = [0, 32], sizes = [2, 32], strides = [1, 1]} : vector<2x128xf32> to vector<2x32xf32>
    %cst_312 = arith.constant 5.000000e-01 : f32
    %865 = vector.broadcast %cst_312 : f32 to vector<2x32xf32>
    %866 = arith.mulf %865, %864 : vector<2x32xf32>
    %cst_313 = arith.constant 5.000000e-01 : f32
    %867 = vector.broadcast %cst_313 : f32 to vector<2x32xf32>
    %868 = arith.addf %866, %867 : vector<2x32xf32>
    %869 = vector.extract_strided_slice %858 {offsets = [0, 64], sizes = [2, 32], strides = [1, 1]} : vector<2x128xf32> to vector<2x32xf32>
    %870 = vector.extract_strided_slice %858 {offsets = [0, 96], sizes = [2, 32], strides = [1, 1]} : vector<2x128xf32> to vector<2x32xf32>
    %cst_314 = arith.constant 5.000000e-01 : f32
    %871 = vector.broadcast %cst_314 : f32 to vector<2x32xf32>
    %872 = arith.mulf %871, %870 : vector<2x32xf32>
    %cst_315 = arith.constant 5.000000e-01 : f32
    %873 = vector.broadcast %cst_315 : f32 to vector<2x32xf32>
    %874 = arith.addf %872, %873 : vector<2x32xf32>
    %875 = arith.mulf %868, %852 : vector<2x32xf32>
    %876 = arith.mulf %863, %869 : vector<2x32xf32>
    %877 = arith.addf %875, %876 : vector<2x32xf32>
    %878 = math.tanh %877 : vector<2x32xf32>
    %879 = arith.mulf %874, %878 : vector<2x32xf32>
    %c0_316 = arith.constant 0 : index
    %c0_317 = arith.constant 0 : index
    %880 = vector.load %arg5[%c0_316, %c0_317] : memref<32x4xf32, #tpu.memory_space<vmem>>, vector<32x4xf32>
    %cst_318 = arith.constant dense<0.000000e+00> : vector<2x4xf32>
    %881 = tpu.matmul %879, %880, %cst_318 {dimension_numbers = #tpu.dot_dimension_numbers<[1], [0], [0], [1], [0, 0, 1, 1], [], []>} : vector<2x32xf32>, vector<32x4xf32>, vector<2x4xf32> -> vector<2x4xf32>
    %c0_319 = arith.constant 0 : index
    %c0_320 = arith.constant 0 : index
    %882 = vector.load %arg6[%c0_319, %c0_320] : memref<1x4xf32, #tpu.memory_space<vmem>>, vector<1x4xf32>
    %883 = vector.broadcast %882 : vector<1x4xf32> to vector<2x4xf32>
    %884 = arith.addf %881, %883 : vector<2x4xf32>
    %c0_321 = arith.constant 0 : index
    %c0_322 = arith.constant 0 : index
    %885 = vector.load %arg7[%c0_321, %c0_322] : memref<2x4xf32, #tpu.memory_space<vmem>>, vector<2x4xf32>
    tpu.vector_store %arg7[%c0_321, %c0_322], %884 {strides = array<i32>} : memref<2x4xf32, #tpu.memory_space<vmem>>, vector<2x4xf32>,
    return
  }
}

</mosaic_0001>

<llo_original>
// kernel: sensor_network_forward.1
$region0: #{sensor_network_forward.1}
  #allocation0 [shape = 'u32[]', space=smem, size = 0x4, offset = 0x4, fixed_abs, tag = 'smem constant byte address 0x4 - core index']
  #allocation1 [shape = 'u32[144,128]{1,0:T(1,128)}', space=vmem, size = 0x12000, scoped, tag = 'internal scratch']
  #allocation2 [shape = 'f32[16,32]{1,0:T(8,128)}', space=vmem, size = 0x2000, scoped, tag = 'scratch operand']
  %s0 = inlined_call_operand.vmem [shape: f32[16,16], index: 0, kind: input, shape index: {}]
  %s1 = inlined_call_operand.vmem [shape: f32[16,128], index: 1, kind: input, shape index: {}]
  %s2 = inlined_call_operand.vmem [shape: f32[4,32,128], index: 2, kind: input, shape index: {}]
  %s3 = inlined_call_operand.vmem [shape: f32[3,32,128], index: 3, kind: input, shape index: {}]
  %s4 = inlined_call_operand.vmem [shape: f32[4,1,128], index: 4, kind: input, shape index: {}]
  %s5 = inlined_call_operand.vmem [shape: f32[32,4], index: 5, kind: input, shape index: {}]
  %s6 = inlined_call_operand.vmem [shape: f32[1,4], index: 6, kind: input, shape index: {}]
  %s7 = inlined_call_operand.hbm [shape: f32[2,4], index: 7, kind: output, shape index: {}]
  %s8 = sld [smem:[#allocation0]]
  $region38: #{sensor_network_forward.1} parent=0
    _
  %s10 = ssub.s32 1, %s8
  %s11 = scalar_select 0, %s10, %s8
  $region1: #{sensor_network_forward.1} parent=0
    #allocation3 [shape = 'u8[1024]{0}', space=vmem, size = 0x400, scoped, tag = 'output window, operand 0, single buffered']
    #allocation4 [shape = 's32[1]{0}', space=sflag, size = 0x4, scoped, tag = 'scoped memory for sensor_network_forward.1']
    %12 = vsyncpa [#allocation4], 0
    // Predicated region
    $region2: #{sensor_network_forward.1} parent=1 // pred_check
      _
    $region3: #{sensor_network_forward.1} parent=1 // pred_check_branch
      %14 = sbr.rel (0) target = $region5
    $region4: #{sensor_network_forward.1} parent=1 // pred_region
      _
    $region5: #{sensor_network_forward.1} parent=1 // pred_fallthru
      _
    // Predicated region
    $region6: #{sensor_network_forward.1} parent=1 // pred_check
      _
    $region7: #{sensor_network_forward.1} parent=1 // pred_check_branch
      %16 = sbr.rel (0) target = $region9
    $region8: #{sensor_network_forward.1} parent=1 // pred_region
      _
    $region9: #{sensor_network_forward.1} parent=1 // pred_fallthru
      _
    // Predicated region
    $region10: #{sensor_network_forward.1} parent=1 // pred_check
      _
    $region11: #{sensor_network_forward.1} parent=1 // pred_check_branch
      %18 = sbr.rel (0) target = $region13
    $region12: #{sensor_network_forward.1} parent=1 // pred_region
      _
    $region13: #{sensor_network_forward.1} parent=1 // pred_fallthru
      _
    // Predicated region
    $region14: #{sensor_network_forward.1} parent=1 // pred_check
      _
    $region15: #{sensor_network_forward.1} parent=1 // pred_check_branch
      %20 = sbr.rel (0) target = $region17
    $region16: #{sensor_network_forward.1} parent=1 // pred_region
      _
    $region17: #{sensor_network_forward.1} parent=1 // pred_fallthru
      _
    // Predicated region
    $region18: #{sensor_network_forward.1} parent=1 // pred_check
      _
    $region19: #{sensor_network_forward.1} parent=1 // pred_check_branch
      %22 = sbr.rel (0) target = $region21
    $region20: #{sensor_network_forward.1} parent=1 // pred_region
      _
    $region21: #{sensor_network_forward.1} parent=1 // pred_fallthru
      _
    // Predicated region
    $region22: #{sensor_network_forward.1} parent=1 // pred_check
      _
    $region23: #{sensor_network_forward.1} parent=1 // pred_check_branch
      %24 = sbr.rel (0) target = $region25
    $region24: #{sensor_network_forward.1} parent=1 // pred_region
      _
    $region25: #{sensor_network_forward.1} parent=1 // pred_fallthru
      _
    // Predicated region
    $region26: #{sensor_network_forward.1} parent=1 // pred_check
      _
    $region27: #{sensor_network_forward.1} parent=1 // pred_check_branch
      %26 = sbr.rel (0) target = $region29
    $region28: #{sensor_network_forward.1} parent=1 // pred_region
      _
    $region29: #{sensor_network_forward.1} parent=1 // pred_fallthru
      _
    %v27 = vld [vmem:[%s0] sm:$0xff]
    %v28 = vld [vmem:[%s0 + $0x8] sm:$0xff]
    %v29 = vld [vmem:[%s1] sm:$0xff]
    %v30 = vld [vmem:[%s1 + $0x8] sm:$0xff]
    %v31 = vld [vmem:[%s4] sm:$0x1]
    %v33 = vlaneseq
    %v34 = vshrl.u32 %v33, 7
    %v35 = vsub.s32 0, %v34
    %v36 = vrot.slane %v31, %v35
    %vm38 = vcmask 130048
    %v40 = vsel %vm38, %v27, 0
    %v43 = vsel %vm38, %v28, 0
    %45 = vmatprep.subr.mxu0 0.0
    %46 = vmatpush1.msra.mxu0 0.0
    %47 = vmatprep.subr.mxu0 0.0
    %48 = vmatpush1.msra.mxu0 0.0
    %49 = vmatprep.subr.mxu0 0.0
    %50 = vmatpush1.msra.mxu0 0.0
    %51 = vmatprep.subr.mxu0 0.0
    %52 = vmatpush1.msra.mxu0 0.0
    %53 = vmatprep.subr.mxu0 0.0
    %54 = vmatpush1.msra.mxu0 0.0
    %55 = vmatprep.subr.mxu0 0.0
    %56 = vmatpush1.msra.mxu0 0.0
    %57 = vmatprep.subr.mxu0 0.0
    %58 = vmatpush1.msra.mxu0 0.0
    %59 = vmatprep.subr.mxu0 0.0
    %60 = vmatpush1.msra.mxu0 0.0
    %61 = vmatprep.subr.mxu0 0.0
    %62 = vmatpush1.msra.mxu0 0.0
    %63 = vmatprep.subr.mxu0 0.0
    %64 = vmatpush1.msra.mxu0 0.0
    %65 = vmatprep.subr.mxu0 0.0
    %66 = vmatpush1.msra.mxu0 0.0
    %67 = vmatprep.subr.mxu0 0.0
    %68 = vmatpush1.msra.mxu0 0.0
    %69 = vmatprep.subr.mxu0 0.0
    %70 = vmatpush1.msra.mxu0 0.0
    %71 = vmatprep.subr.mxu0 0.0
    %72 = vmatpush1.msra.mxu0 0.0
    %73 = vmatprep.subr.mxu0 0.0
    %74 = vmatpush1.msra.mxu0 %v30
    %75 = vmatprep.subr.mxu0 0.0
    %76 = vmatpush1.msra.mxu0 %v29
    %77 = vmatprep.subr.mxu0 0.0
    %78 = vmatpush2.msra.mxu0 0.0
    %79 = vmatprep.subr.mxu0 0.0
    %80 = vmatpush2.msra.mxu0 0.0
    %81 = vmatprep.subr.mxu0 0.0
    %82 = vmatpush2.msra.mxu0 0.0
    %83 = vmatprep.subr.mxu0 0.0
    %84 = vmatpush2.msra.mxu0 0.0
    %85 = vmatprep.subr.mxu0 0.0
    %86 = vmatpush2.msra.mxu0 0.0
    %87 = vmatprep.subr.mxu0 0.0
    %88 = vmatpush2.msra.mxu0 0.0
    %89 = vmatprep.subr.mxu0 0.0
    %90 = vmatpush2.msra.mxu0 0.0
    %91 = vmatprep.subr.mxu0 0.0
    %92 = vmatpush2.msra.mxu0 0.0
    %93 = vmatprep.subr.mxu0 0.0
    %94 = vmatpush2.msra.mxu0 0.0
    %95 = vmatprep.subr.mxu0 0.0
    %96 = vmatpush2.msra.mxu0 0.0
    %97 = vmatprep.subr.mxu0 0.0
    %98 = vmatpush2.msra.mxu0 0.0
    %99 = vmatprep.subr.mxu0 0.0
    %100 = vmatpush2.msra.mxu0 0.0
    %101 = vmatprep.subr.mxu0 0.0
    %102 = vmatpush2.msra.mxu0 0.0
    %103 = vmatprep.subr.mxu0 0.0
    %104 = vmatpush2.msra.mxu0 0.0
    %105 = vmatprep.subr.mxu0 0.0
    %106 = vmatpush2.msra.mxu0 0.0
    %107 = vmatprep.subr.mxu0 0.0
    %108 = vmatpush2.msra.mxu0 0.0
    %109 = vmatprep.mubr.f32.mxu0 0.0
    %110 = vmatmul.mubr.f32.gmra.mxu0 %v40
    %v111 = vpop.f32.mrf.mxu0
    %v112 = vadd.f32 %v36, %v111
    %v113 = vpop.f32.mrf.mxu0
    %114 = vmatprep.mubr.f32.mxu0 0.0
    %115 = vmatmul.mubr.f32.gmra.mxu0 %v43
    %v116 = vpop.f32.mrf.mxu0
    %v117 = vadd.f32 %v36, %v116
    %v118 = vpop.f32.mrf.mxu0
    %119 = vdwg.mxu0
    %v120 = vld [vmem:[%s2] sm:$0xff]
    %v121 = vld [vmem:[%s2 + $0x8] sm:$0xff]
    %v122 = vld [vmem:[%s2 + $0x10] sm:$0xff]
    %v123 = vld [vmem:[%s2 + $0x18] sm:$0xff]
    %vm124 = vcmask 261120
    %v126 = vsel %vm124, 0.0, 0
    %128 = vmatprep.subr.mxu0 0.0
    %129 = vmatpush1.msra.mxu0 0.0
    %130 = vmatprep.subr.mxu0 0.0
    %131 = vmatpush1.msra.mxu0 0.0
    %132 = vmatprep.subr.mxu0 0.0
    %133 = vmatpush1.msra.mxu0 0.0
    %134 = vmatprep.subr.mxu0 0.0
    %135 = vmatpush1.msra.mxu0 0.0
    %136 = vmatprep.subr.mxu0 0.0
    %137 = vmatpush1.msra.mxu0 0.0
    %138 = vmatprep.subr.mxu0 0.0
    %139 = vmatpush1.msra.mxu0 0.0
    %140 = vmatprep.subr.mxu0 0.0
    %141 = vmatpush1.msra.mxu0 0.0
    %142 = vmatprep.subr.mxu0 0.0
    %143 = vmatpush1.msra.mxu0 0.0
    %144 = vmatprep.subr.mxu0 0.0
    %145 = vmatpush1.msra.mxu0 0.0
    %146 = vmatprep.subr.mxu0 0.0
    %147 = vmatpush1.msra.mxu0 0.0
    %148 = vmatprep.subr.mxu0 0.0
    %149 = vmatpush1.msra.mxu0 0.0
    %150 = vmatprep.subr.mxu0 0.0
    %151 = vmatpush1.msra.mxu0 0.0
    %152 = vmatprep.subr.mxu0 0.0
    %153 = vmatpush1.msra.mxu0 %v123
    %154 = vmatprep.subr.mxu0 0.0
    %155 = vmatpush1.msra.mxu0 %v122
    %156 = vmatprep.subr.mxu0 0.0
    %157 = vmatpush1.msra.mxu0 %v121
    %158 = vmatprep.subr.mxu0 0.0
    %159 = vmatpush1.msra.mxu0 %v120
    %160 = vmatprep.subr.mxu0 0.0
    %161 = vmatpush2.msra.mxu0 0.0
    %162 = vmatprep.subr.mxu0 0.0
    %163 = vmatpush2.msra.mxu0 0.0
    %164 = vmatprep.subr.mxu0 0.0
    %165 = vmatpush2.msra.mxu0 0.0
    %166 = vmatprep.subr.mxu0 0.0
    %167 = vmatpush2.msra.mxu0 0.0
    %168 = vmatprep.subr.mxu0 0.0
    %169 = vmatpush2.msra.mxu0 0.0
    %170 = vmatprep.subr.mxu0 0.0
    %171 = vmatpush2.msra.mxu0 0.0
    %172 = vmatprep.subr.mxu0 0.0
    %173 = vmatpush2.msra.mxu0 0.0
    %174 = vmatprep.subr.mxu0 0.0
    %175 = vmatpush2.msra.mxu0 0.0
    %176 = vmatprep.subr.mxu0 0.0
    %177 = vmatpush2.msra.mxu0 0.0
    %178 = vmatprep.subr.mxu0 0.0
    %179 = vmatpush2.msra.mxu0 0.0
    %180 = vmatprep.subr.mxu0 0.0
    %181 = vmatpush2.msra.mxu0 0.0
    %182 = vmatprep.subr.mxu0 0.0
    %183 = vmatpush2.msra.mxu0 0.0
    %184 = vmatprep.subr.mxu0 0.0
    %185 = vmatpush2.msra.mxu0 0.0
    %186 = vmatprep.subr.mxu0 0.0
    %187 = vmatpush2.msra.mxu0 0.0
    %188 = vmatprep.subr.mxu0 0.0
    %189 = vmatpush2.msra.mxu0 0.0
    %190 = vmatprep.subr.mxu0 0.0
    %191 = vmatpush2.msra.mxu0 0.0
    %192 = vmatprep.mubr.f32.mxu0 0.0
    %193 = vmatmul.mubr.f32.gmra.mxu0 %v126
    %v194 = vpop.f32.mrf.mxu0
    %v195 = vadd.f32 0.0, %v194
    %v196 = vpop.f32.mrf.mxu0
    %197 = vdwg.mxu0
    %v199 = vrot.slane %v195, 1
    %v202 = vadd.f32 %v112, %v195
    %v203 = vadd.f32 %v117, %v199
    %v204 = vtanh.pop %v202
    %v205 = vtanh.pop %v203
    %v206 = vmul.f32 %v204, 0.5
    %v207 = vmul.f32 %v205, 0.5
    %v208 = vadd.f32 %v206, 0.5
    %v209 = vadd.f32 %v207, 0.5
    %v210 = vmul.f32 %v208, 0.0
    %v211 = vmul.f32 %v209, 0.0
    %214 = vrot.lane.b32.xlu0 %v204, 64
    %v215 = vpop.permute.xlu0 %214
    %216 = vrot.lane.b32.xlu0 %v205, 64
    %v217 = vpop.permute.xlu0 %216
    %v220 = vmul.f32 %v208, %v215
    %v221 = vmul.f32 %v209, %v217
    %224 = vrot.lane.b32.xlu0 %v220, 32
    %v225 = vpop.permute.xlu0 %224
    %226 = vrot.lane.b32.xlu0 %v221, 32
    %v227 = vpop.permute.xlu0 %226
    %v230 = vadd.f32 %v210, %v225
    %v231 = vadd.f32 %v211, %v227
    %v232 = vtanh.pop %v230
    %v233 = vtanh.pop %v231
    %236 = vrot.lane.b32.xlu0 %v232, 64
    %v237 = vpop.permute.xlu0 %236
    %238 = vrot.lane.b32.xlu0 %v233, 64
    %v239 = vpop.permute.xlu0 %238
    %v242 = vmul.f32 %v208, %v237
    %v243 = vmul.f32 %v209, %v239
    %v246 = vrot.slane %v243, 7
    %vm247 = vcmask 1041409
    %v248 = vsel %vm247, %v246, %v242
    %249 = vrot.lane.b32.xlu0 %v248, 32
    %v250 = vpop.permute.xlu0 %249
    %vm252 = vcmask 254976
    %253 = vst.msk [vmem:[#allocation2] sm:$0x3] %vm252, %v250
    %v254 = vsel %vm124, %v250, 0
    %256 = vmatprep.subr.mxu0 0.0
    %257 = vmatpush1.msra.mxu0 0.0
    %258 = vmatprep.subr.mxu0 0.0
    %259 = vmatpush1.msra.mxu0 0.0
    %260 = vmatprep.subr.mxu0 0.0
    %261 = vmatpush1.msra.mxu0 0.0
    %262 = vmatprep.subr.mxu0 0.0
    %263 = vmatpush1.msra.mxu0 0.0
    %264 = vmatprep.subr.mxu0 0.0
    %265 = vmatpush1.msra.mxu0 0.0
    %266 = vmatprep.subr.mxu0 0.0
    %267 = vmatpush1.msra.mxu0 0.0
    %268 = vmatprep.subr.mxu0 0.0
    %269 = vmatpush1.msra.mxu0 0.0
    %270 = vmatprep.subr.mxu0 0.0
    %271 = vmatpush1.msra.mxu0 0.0
    %272 = vmatprep.subr.mxu0 0.0
    %273 = vmatpush1.msra.mxu0 0.0
    %274 = vmatprep.subr.mxu0 0.0
    %275 = vmatpush1.msra.mxu0 0.0
    %276 = vmatprep.subr.mxu0 0.0
    %277 = vmatpush1.msra.mxu0 0.0
    %278 = vmatprep.subr.mxu0 0.0
    %279 = vmatpush1.msra.mxu0 0.0
    %280 = vmatprep.subr.mxu0 0.0
    %281 = vmatpush1.msra.mxu0 %v123
    %282 = vmatprep.subr.mxu0 0.0
    %283 = vmatpush1.msra.mxu0 %v122
    %284 = vmatprep.subr.mxu0 0.0
    %285 = vmatpush1.msra.mxu0 %v121
    %286 = vmatprep.subr.mxu0 0.0
    %287 = vmatpush1.msra.mxu0 %v120
    %288 = vmatprep.subr.mxu0 0.0
    %289 = vmatpush2.msra.mxu0 0.0
    %290 = vmatprep.subr.mxu0 0.0
    %291 = vmatpush2.msra.mxu0 0.0
    %292 = vmatprep.subr.mxu0 0.0
    %293 = vmatpush2.msra.mxu0 0.0
    %294 = vmatprep.subr.mxu0 0.0
    %295 = vmatpush2.msra.mxu0 0.0
    %296 = vmatprep.subr.mxu0 0.0
    %297 = vmatpush2.msra.mxu0 0.0
    %298 = vmatprep.subr.mxu0 0.0
    %299 = vmatpush2.msra.mxu0 0.0
    %300 = vmatprep.subr.mxu0 0.0
    %301 = vmatpush2.msra.mxu0 0.0
    %302 = vmatprep.subr.mxu0 0.0
    %303 = vmatpush2.msra.mxu0 0.0
    %304 = vmatprep.subr.mxu0 0.0
    %305 = vmatpush2.msra.mxu0 0.0
    %306 = vmatprep.subr.mxu0 0.0
    %307 = vmatpush2.msra.mxu0 0.0
    %308 = vmatprep.subr.mxu0 0.0
    %309 = vmatpush2.msra.mxu0 0.0
    %310 = vmatprep.subr.mxu0 0.0
    %311 = vmatpush2.msra.mxu0 0.0
    %312 = vmatprep.subr.mxu0 0.0
    %313 = vmatpush2.msra.mxu0 0.0
    %314 = vmatprep.subr.mxu0 0.0
    %315 = vmatpush2.msra.mxu0 0.0
    %316 = vmatprep.subr.mxu0 0.0
    %317 = vmatpush2.msra.mxu0 0.0
    %318 = vmatprep.subr.mxu0 0.0
    %319 = vmatpush2.msra.mxu0 0.0
    %320 = vmatprep.mubr.f32.mxu0 0.0
    %321 = vmatmul.mubr.f32.gmra.mxu0 %v254
    %v322 = vpop.f32.mrf.mxu0
    %v323 = vadd.f32 0.0, %v322
    %v324 = vpop.f32.mrf.mxu0
    %325 = vdwg.mxu0
    %v327 = vrot.slane %v323, 7
    %v330 = vadd.f32 %v112, %v327
    %v331 = vadd.f32 %v117, %v323
    %v332 = vtanh.pop %v330
    %v333 = vtanh.pop %v331
    %v334 = vmul.f32 %v332, 0.5
    %v335 = vmul.f32 %v333, 0.5
    %v336 = vadd.f32 %v334, 0.5
    %v337 = vadd.f32 %v335, 0.5
    %v340 = vrot.slane %v230, 7
    %v341 = vrot.slane %v231, 7
    %v344 = vmul.f32 %v336, %v340
    %v345 = vmul.f32 %v337, %v341
    %348 = vrot.lane.b32.xlu0 %v332, 64
    %v349 = vpop.permute.xlu0 %348
    %350 = vrot.lane.b32.xlu0 %v333, 64
    %v351 = vpop.permute.xlu0 %350
    %v354 = vmul.f32 %v336, %v349
    %v355 = vmul.f32 %v337, %v351
    %358 = vrot.lane.b32.xlu0 %v354, 32
    %v359 = vpop.permute.xlu0 %358
    %360 = vrot.lane.b32.xlu0 %v355, 32
    %v361 = vpop.permute.xlu0 %360
    %v364 = vadd.f32 %v344, %v359
    %v365 = vadd.f32 %v345, %v361
    %v366 = vtanh.pop %v364
    %v367 = vtanh.pop %v365
    %370 = vrot.lane.b32.xlu0 %v366, 64
    %v371 = vpop.permute.xlu0 %370
    %372 = vrot.lane.b32.xlu0 %v367, 64
    %v373 = vpop.permute.xlu0 %372
    %v376 = vmul.f32 %v336, %v371
    %v377 = vmul.f32 %v337, %v373
    %v380 = vrot.slane %v377, 7
    %vm381 = vcmask 1042434
    %v382 = vsel %vm381, %v380, %v376
    %383 = vrot.lane.b32.xlu0 %v382, 32
    %v384 = vpop.permute.xlu0 %383
    %vm386 = vcmask 256001
    %387 = vst.msk [vmem:[#allocation2 + $0x1] sm:$0x6] %vm386, %v384
    %v388 = vrot.slane %v376, 1
    %v389 = vsel %vm247, %v377, %v388
    %390 = vrot.lane.b32.xlu0 %v389, 32
    %v391 = vpop.permute.xlu0 %390
    %v392 = vsel %vm124, %v391, 0
    %394 = vmatprep.subr.mxu0 0.0
    %395 = vmatpush1.msra.mxu0 0.0
    %396 = vmatprep.subr.mxu0 0.0
    %397 = vmatpush1.msra.mxu0 0.0
    %398 = vmatprep.subr.mxu0 0.0
    %399 = vmatpush1.msra.mxu0 0.0
    %400 = vmatprep.subr.mxu0 0.0
    %401 = vmatpush1.msra.mxu0 0.0
    %402 = vmatprep.subr.mxu0 0.0
    %403 = vmatpush1.msra.mxu0 0.0
    %404 = vmatprep.subr.mxu0 0.0
    %405 = vmatpush1.msra.mxu0 0.0
    %406 = vmatprep.subr.mxu0 0.0
    %407 = vmatpush1.msra.mxu0 0.0
    %408 = vmatprep.subr.mxu0 0.0
    %409 = vmatpush1.msra.mxu0 0.0
    %410 = vmatprep.subr.mxu0 0.0
    %411 = vmatpush1.msra.mxu0 0.0
    %412 = vmatprep.subr.mxu0 0.0
    %413 = vmatpush1.msra.mxu0 0.0
    %414 = vmatprep.subr.mxu0 0.0
    %415 = vmatpush1.msra.mxu0 0.0
    %416 = vmatprep.subr.mxu0 0.0
    %417 = vmatpush1.msra.mxu0 0.0
    %418 = vmatprep.subr.mxu0 0.0
    %419 = vmatpush1.msra.mxu0 %v123
    %420 = vmatprep.subr.mxu0 0.0
    %421 = vmatpush1.msra.mxu0 %v122
    %422 = vmatprep.subr.mxu0 0.0
    %423 = vmatpush1.msra.mxu0 %v121
    %424 = vmatprep.subr.mxu0 0.0
    %425 = vmatpush1.msra.mxu0 %v120
    %426 = vmatprep.subr.mxu0 0.0
    %427 = vmatpush2.msra.mxu0 0.0
    %428 = vmatprep.subr.mxu0 0.0
    %429 = vmatpush2.msra.mxu0 0.0
    %430 = vmatprep.subr.mxu0 0.0
    %431 = vmatpush2.msra.mxu0 0.0
    %432 = vmatprep.subr.mxu0 0.0
    %433 = vmatpush2.msra.mxu0 0.0
    %434 = vmatprep.subr.mxu0 0.0
    %435 = vmatpush2.msra.mxu0 0.0
    %436 = vmatprep.subr.mxu0 0.0
    %437 = vmatpush2.msra.mxu0 0.0
    %438 = vmatprep.subr.mxu0 0.0
    %439 = vmatpush2.msra.mxu0 0.0
    %440 = vmatprep.subr.mxu0 0.0
    %441 = vmatpush2.msra.mxu0 0.0
    %442 = vmatprep.subr.mxu0 0.0
    %443 = vmatpush2.msra.mxu0 0.0
    %444 = vmatprep.subr.mxu0 0.0
    %445 = vmatpush2.msra.mxu0 0.0
    %446 = vmatprep.subr.mxu0 0.0
    %447 = vmatpush2.msra.mxu0 0.0
    %448 = vmatprep.subr.mxu0 0.0
    %449 = vmatpush2.msra.mxu0 0.0
    %450 = vmatprep.subr.mxu0 0.0
    %451 = vmatpush2.msra.mxu0 0.0
    %452 = vmatprep.subr.mxu0 0.0
    %453 = vmatpush2.msra.mxu0 0.0
    %454 = vmatprep.subr.mxu0 0.0
    %455 = vmatpush2.msra.mxu0 0.0
    %456 = vmatprep.subr.mxu0 0.0
    %457 = vmatpush2.msra.mxu0 0.0
    %458 = vmatprep.mubr.f32.mxu0 0.0
    %459 = vmatmul.mubr.f32.gmra.mxu0 %v392
    %v460 = vpop.f32.mrf.mxu0
    %v461 = vadd.f32 0.0, %v460
    %v462 = vpop.f32.mrf.mxu0
    %463 = vdwg.mxu0
    %v465 = vrot.slane %v461, 6
    %v466 = vrot.slane %v461, 7
    %v469 = vadd.f32 %v112, %v465
    %v470 = vadd.f32 %v117, %v466
    %v471 = vtanh.pop %v469
    %v472 = vtanh.pop %v470
    %v473 = vmul.f32 %v471, 0.5
    %v474 = vmul.f32 %v472, 0.5
    %v475 = vadd.f32 %v473, 0.5
    %v476 = vadd.f32 %v474, 0.5
    %v479 = vrot.slane %v364, 7
    %v480 = vrot.slane %v365, 7
    %v483 = vmul.f32 %v475, %v479
    %v484 = vmul.f32 %v476, %v480
    %487 = vrot.lane.b32.xlu0 %v471, 64
    %v488 = vpop.permute.xlu0 %487
    %489 = vrot.lane.b32.xlu0 %v472, 64
    %v490 = vpop.permute.xlu0 %489
    %v493 = vmul.f32 %v475, %v488
    %v494 = vmul.f32 %v476, %v490
    %497 = vrot.lane.b32.xlu0 %v493, 32
    %v498 = vpop.permute.xlu0 %497
    %499 = vrot.lane.b32.xlu0 %v494, 32
    %v500 = vpop.permute.xlu0 %499
    %v503 = vadd.f32 %v483, %v498
    %v504 = vadd.f32 %v484, %v500
    %v505 = vtanh.pop %v503
    %v506 = vtanh.pop %v504
    %509 = vrot.lane.b32.xlu0 %v505, 64
    %v510 = vpop.permute.xlu0 %509
    %511 = vrot.lane.b32.xlu0 %v506, 64
    %v512 = vpop.permute.xlu0 %511
    %v515 = vmul.f32 %v475, %v510
    %v516 = vmul.f32 %v476, %v512
    %v519 = vrot.slane %v516, 7
    %vm520 = vcmask 1043459
    %v521 = vsel %vm520, %v519, %v515
    %522 = vrot.lane.b32.xlu0 %v521, 32
    %v523 = vpop.permute.xlu0 %522
    %vm525 = vcmask 257026
    %526 = vst.msk [vmem:[#allocation2 + $0x2] sm:$0xc] %vm525, %v523
    %v527 = vrot.slane %v515, 2
    %v528 = vrot.slane %v516, 1
    %v529 = vsel %vm247, %v528, %v527
    %530 = vrot.lane.b32.xlu0 %v529, 32
    %v531 = vpop.permute.xlu0 %530
    %v532 = vsel %vm124, %v531, 0
    %534 = vmatprep.subr.mxu0 0.0
    %535 = vmatpush1.msra.mxu0 0.0
    %536 = vmatprep.subr.mxu0 0.0
    %537 = vmatpush1.msra.mxu0 0.0
    %538 = vmatprep.subr.mxu0 0.0
    %539 = vmatpush1.msra.mxu0 0.0
    %540 = vmatprep.subr.mxu0 0.0
    %541 = vmatpush1.msra.mxu0 0.0
    %542 = vmatprep.subr.mxu0 0.0
    %543 = vmatpush1.msra.mxu0 0.0
    %544 = vmatprep.subr.mxu0 0.0
    %545 = vmatpush1.msra.mxu0 0.0
    %546 = vmatprep.subr.mxu0 0.0
    %547 = vmatpush1.msra.mxu0 0.0
    %548 = vmatprep.subr.mxu0 0.0
    %549 = vmatpush1.msra.mxu0 0.0
    %550 = vmatprep.subr.mxu0 0.0
    %551 = vmatpush1.msra.mxu0 0.0
    %552 = vmatprep.subr.mxu0 0.0
    %553 = vmatpush1.msra.mxu0 0.0
    %554 = vmatprep.subr.mxu0 0.0
    %555 = vmatpush1.msra.mxu0 0.0
    %556 = vmatprep.subr.mxu0 0.0
    %557 = vmatpush1.msra.mxu0 0.0
    %558 = vmatprep.subr.mxu0 0.0
    %559 = vmatpush1.msra.mxu0 %v123
    %560 = vmatprep.subr.mxu0 0.0
    %561 = vmatpush1.msra.mxu0 %v122
    %562 = vmatprep.subr.mxu0 0.0
    %563 = vmatpush1.msra.mxu0 %v121
    %564 = vmatprep.subr.mxu0 0.0
    %565 = vmatpush1.msra.mxu0 %v120
    %566 = vmatprep.subr.mxu0 0.0
    %567 = vmatpush2.msra.mxu0 0.0
    %568 = vmatprep.subr.mxu0 0.0
    %569 = vmatpush2.msra.mxu0 0.0
    %570 = vmatprep.subr.mxu0 0.0
    %571 = vmatpush2.msra.mxu0 0.0
    %572 = vmatprep.subr.mxu0 0.0
    %573 = vmatpush2.msra.mxu0 0.0
    %574 = vmatprep.subr.mxu0 0.0
    %575 = vmatpush2.msra.mxu0 0.0
    %576 = vmatprep.subr.mxu0 0.0
    %577 = vmatpush2.msra.mxu0 0.0
    %578 = vmatprep.subr.mxu0 0.0
    %579 = vmatpush2.msra.mxu0 0.0
    %580 = vmatprep.subr.mxu0 0.0
    %581 = vmatpush2.msra.mxu0 0.0
    %582 = vmatprep.subr.mxu0 0.0
    %583 = vmatpush2.msra.mxu0 0.0
    %584 = vmatprep.subr.mxu0 0.0
    %585 = vmatpush2.msra.mxu0 0.0
    %586 = vmatprep.subr.mxu0 0.0
    %587 = vmatpush2.msra.mxu0 0.0
    %588 = vmatprep.subr.mxu0 0.0
    %589 = vmatpush2.msra.mxu0 0.0
    %590 = vmatprep.subr.mxu0 0.0
    %591 = vmatpush2.msra.mxu0 0.0
    %592 = vmatprep.subr.mxu0 0.0
    %593 = vmatpush2.msra.mxu0 0.0
    %594 = vmatprep.subr.mxu0 0.0
    %595 = vmatpush2.msra.mxu0 0.0
    %596 = vmatprep.subr.mxu0 0.0
    %597 = vmatpush2.msra.mxu0 0.0
    %598 = vmatprep.mubr.f32.mxu0 0.0
    %599 = vmatmul.mubr.f32.gmra.mxu0 %v532
    %v600 = vpop.f32.mrf.mxu0
    %v601 = vadd.f32 0.0, %v600
    %v602 = vpop.f32.mrf.mxu0
    %603 = vdwg.mxu0
    %v605 = vrot.slane %v601, 5
    %v606 = vrot.slane %v601, 6
    %v609 = vadd.f32 %v112, %v605
    %v610 = vadd.f32 %v117, %v606
    %v611 = vtanh.pop %v609
    %v612 = vtanh.pop %v610
    %v613 = vmul.f32 %v611, 0.5
    %v614 = vmul.f32 %v612, 0.5
    %v615 = vadd.f32 %v613, 0.5
    %v616 = vadd.f32 %v614, 0.5
    %v619 = vrot.slane %v503, 7
    %v620 = vrot.slane %v504, 7
    %v623 = vmul.f32 %v615, %v619
    %v624 = vmul.f32 %v616, %v620
    %627 = vrot.lane.b32.xlu0 %v611, 64
    %v628 = vpop.permute.xlu0 %627
    %629 = vrot.lane.b32.xlu0 %v612, 64
    %v630 = vpop.permute.xlu0 %629
    %v633 = vmul.f32 %v615, %v628
    %v634 = vmul.f32 %v616, %v630
    %637 = vrot.lane.b32.xlu0 %v633, 32
    %v638 = vpop.permute.xlu0 %637
    %639 = vrot.lane.b32.xlu0 %v634, 32
    %v640 = vpop.permute.xlu0 %639
    %v643 = vadd.f32 %v623, %v638
    %v644 = vadd.f32 %v624, %v640
    %v645 = vtanh.pop %v643
    %v646 = vtanh.pop %v644
    %649 = vrot.lane.b32.xlu0 %v645, 64
    %v650 = vpop.permute.xlu0 %649
    %651 = vrot.lane.b32.xlu0 %v646, 64
    %v652 = vpop.permute.xlu0 %651
    %v655 = vmul.f32 %v615, %v650
    %v656 = vmul.f32 %v616, %v652
    %v659 = vrot.slane %v656, 7
    %vm660 = vcmask 1044484
    %v661 = vsel %vm660, %v659, %v655
    %662 = vrot.lane.b32.xlu0 %v661, 32
    %v663 = vpop.permute.xlu0 %662
    %vm665 = vcmask 258051
    %666 = vst.msk [vmem:[#allocation2 + $0x3] sm:$0x18] %vm665, %v663
    %v667 = vrot.slane %v655, 3
    %v668 = vrot.slane %v656, 2
    %v669 = vsel %vm247, %v668, %v667
    %670 = vrot.lane.b32.xlu0 %v669, 32
    %v671 = vpop.permute.xlu0 %670
    %v672 = vsel %vm124, %v671, 0
    %674 = vmatprep.subr.mxu0 0.0
    %675 = vmatpush1.msra.mxu0 0.0
    %676 = vmatprep.subr.mxu0 0.0
    %677 = vmatpush1.msra.mxu0 0.0
    %678 = vmatprep.subr.mxu0 0.0
    %679 = vmatpush1.msra.mxu0 0.0
    %680 = vmatprep.subr.mxu0 0.0
    %681 = vmatpush1.msra.mxu0 0.0
    %682 = vmatprep.subr.mxu0 0.0
    %683 = vmatpush1.msra.mxu0 0.0
    %684 = vmatprep.subr.mxu0 0.0
    %685 = vmatpush1.msra.mxu0 0.0
    %686 = vmatprep.subr.mxu0 0.0
    %687 = vmatpush1.msra.mxu0 0.0
    %688 = vmatprep.subr.mxu0 0.0
    %689 = vmatpush1.msra.mxu0 0.0
    %690 = vmatprep.subr.mxu0 0.0
    %691 = vmatpush1.msra.mxu0 0.0
    %692 = vmatprep.subr.mxu0 0.0
    %693 = vmatpush1.msra.mxu0 0.0
    %694 = vmatprep.subr.mxu0 0.0
    %695 = vmatpush1.msra.mxu0 0.0
    %696 = vmatprep.subr.mxu0 0.0
    %697 = vmatpush1.msra.mxu0 0.0
    %698 = vmatprep.subr.mxu0 0.0
    %699 = vmatpush1.msra.mxu0 %v123
    %700 = vmatprep.subr.mxu0 0.0
    %701 = vmatpush1.msra.mxu0 %v122
    %702 = vmatprep.subr.mxu0 0.0
    %703 = vmatpush1.msra.mxu0 %v121
    %704 = vmatprep.subr.mxu0 0.0
    %705 = vmatpush1.msra.mxu0 %v120
    %706 = vmatprep.subr.mxu0 0.0
    %707 = vmatpush2.msra.mxu0 0.0
    %708 = vmatprep.subr.mxu0 0.0
    %709 = vmatpush2.msra.mxu0 0.0
    %710 = vmatprep.subr.mxu0 0.0
    %711 = vmatpush2.msra.mxu0 0.0
    %712 = vmatprep.subr.mxu0 0.0
    %713 = vmatpush2.msra.mxu0 0.0
    %714 = vmatprep.subr.mxu0 0.0
    %715 = vmatpush2.msra.mxu0 0.0
    %716 = vmatprep.subr.mxu0 0.0
    %717 = vmatpush2.msra.mxu0 0.0
    %718 = vmatprep.subr.mxu0 0.0
    %719 = vmatpush2.msra.mxu0 0.0
    %720 = vmatprep.subr.mxu0 0.0
    %721 = vmatpush2.msra.mxu0 0.0
    %722 = vmatprep.subr.mxu0 0.0
    %723 = vmatpush2.msra.mxu0 0.0
    %724 = vmatprep.subr.mxu0 0.0
    %725 = vmatpush2.msra.mxu0 0.0
    %726 = vmatprep.subr.mxu0 0.0
    %727 = vmatpush2.msra.mxu0 0.0
    %728 = vmatprep.subr.mxu0 0.0
    %729 = vmatpush2.msra.mxu0 0.0
    %730 = vmatprep.subr.mxu0 0.0
    %731 = vmatpush2.msra.mxu0 0.0
    %732 = vmatprep.subr.mxu0 0.0
    %733 = vmatpush2.msra.mxu0 0.0
    %734 = vmatprep.subr.mxu0 0.0
    %735 = vmatpush2.msra.mxu0 0.0
    %736 = vmatprep.subr.mxu0 0.0
    %737 = vmatpush2.msra.mxu0 0.0
    %738 = vmatprep.mubr.f32.mxu0 0.0
    %739 = vmatmul.mubr.f32.gmra.mxu0 %v672
    %v740 = vpop.f32.mrf.mxu0
    %v741 = vadd.f32 0.0, %v740
    %v742 = vpop.f32.mrf.mxu0
    %743 = vdwg.mxu0
    %v745 = vrot.slane %v741, 4
    %v746 = vrot.slane %v741, 5
    %v749 = vadd.f32 %v112, %v745
    %v750 = vadd.f32 %v117, %v746
    %v751 = vtanh.pop %v749
    %v752 = vtanh.pop %v750
    %v753 = vmul.f32 %v751, 0.5
    %v754 = vmul.f32 %v752, 0.5
    %v755 = vadd.f32 %v753, 0.5
    %v756 = vadd.f32 %v754, 0.5
    %v759 = vrot.slane %v643, 7
    %v760 = vrot.slane %v644, 7
    %v763 = vmul.f32 %v755, %v759
    %v764 = vmul.f32 %v756, %v760
    %767 = vrot.lane.b32.xlu0 %v751, 64
    %v768 = vpop.permute.xlu0 %767
    %769 = vrot.lane.b32.xlu0 %v752, 64
    %v770 = vpop.permute.xlu0 %769
    %v773 = vmul.f32 %v755, %v768
    %v774 = vmul.f32 %v756, %v770
    %777 = vrot.lane.b32.xlu0 %v773, 32
    %v778 = vpop.permute.xlu0 %777
    %779 = vrot.lane.b32.xlu0 %v774, 32
    %v780 = vpop.permute.xlu0 %779
    %v783 = vadd.f32 %v763, %v778
    %v784 = vadd.f32 %v764, %v780
    %v785 = vtanh.pop %v783
    %v786 = vtanh.pop %v784
    %789 = vrot.lane.b32.xlu0 %v785, 64
    %v790 = vpop.permute.xlu0 %789
    %791 = vrot.lane.b32.xlu0 %v786, 64
    %v792 = vpop.permute.xlu0 %791
    %v795 = vmul.f32 %v755, %v790
    %v796 = vmul.f32 %v756, %v792
    %v799 = vrot.slane %v796, 7
    %vm800 = vcmask 1045509
    %v801 = vsel %vm800, %v799, %v795
    %802 = vrot.lane.b32.xlu0 %v801, 32
    %v803 = vpop.permute.xlu0 %802
    %vm805 = vcmask 259076
    %806 = vst.msk [vmem:[#allocation2 + $0x4] sm:$0x30] %vm805, %v803
    %v807 = vrot.slane %v795, 4
    %v808 = vrot.slane %v796, 3
    %v809 = vsel %vm247, %v808, %v807
    %810 = vrot.lane.b32.xlu0 %v809, 32
    %v811 = vpop.permute.xlu0 %810
    %v812 = vsel %vm124, %v811, 0
    %814 = vmatprep.subr.mxu0 0.0
    %815 = vmatpush1.msra.mxu0 0.0
    %816 = vmatprep.subr.mxu0 0.0
    %817 = vmatpush1.msra.mxu0 0.0
    %818 = vmatprep.subr.mxu0 0.0
    %819 = vmatpush1.msra.mxu0 0.0
    %820 = vmatprep.subr.mxu0 0.0
    %821 = vmatpush1.msra.mxu0 0.0
    %822 = vmatprep.subr.mxu0 0.0
    %823 = vmatpush1.msra.mxu0 0.0
    %824 = vmatprep.subr.mxu0 0.0
    %825 = vmatpush1.msra.mxu0 0.0
    %826 = vmatprep.subr.mxu0 0.0
    %827 = vmatpush1.msra.mxu0 0.0
    %828 = vmatprep.subr.mxu0 0.0
    %829 = vmatpush1.msra.mxu0 0.0
    %830 = vmatprep.subr.mxu0 0.0
    %831 = vmatpush1.msra.mxu0 0.0
    %832 = vmatprep.subr.mxu0 0.0
    %833 = vmatpush1.msra.mxu0 0.0
    %834 = vmatprep.subr.mxu0 0.0
    %835 = vmatpush1.msra.mxu0 0.0
    %836 = vmatprep.subr.mxu0 0.0
    %837 = vmatpush1.msra.mxu0 0.0
    %838 = vmatprep.subr.mxu0 0.0
    %839 = vmatpush1.msra.mxu0 %v123
    %840 = vmatprep.subr.mxu0 0.0
    %841 = vmatpush1.msra.mxu0 %v122
    %842 = vmatprep.subr.mxu0 0.0
    %843 = vmatpush1.msra.mxu0 %v121
    %844 = vmatprep.subr.mxu0 0.0
    %845 = vmatpush1.msra.mxu0 %v120
    %846 = vmatprep.subr.mxu0 0.0
    %847 = vmatpush2.msra.mxu0 0.0
    %848 = vmatprep.subr.mxu0 0.0
    %849 = vmatpush2.msra.mxu0 0.0
    %850 = vmatprep.subr.mxu0 0.0
    %851 = vmatpush2.msra.mxu0 0.0
    %852 = vmatprep.subr.mxu0 0.0
    %853 = vmatpush2.msra.mxu0 0.0
    %854 = vmatprep.subr.mxu0 0.0
    %855 = vmatpush2.msra.mxu0 0.0
    %856 = vmatprep.subr.mxu0 0.0
    %857 = vmatpush2.msra.mxu0 0.0
    %858 = vmatprep.subr.mxu0 0.0
    %859 = vmatpush2.msra.mxu0 0.0
    %860 = vmatprep.subr.mxu0 0.0
    %861 = vmatpush2.msra.mxu0 0.0
    %862 = vmatprep.subr.mxu0 0.0
    %863 = vmatpush2.msra.mxu0 0.0
    %864 = vmatprep.subr.mxu0 0.0
    %865 = vmatpush2.msra.mxu0 0.0
    %866 = vmatprep.subr.mxu0 0.0
    %867 = vmatpush2.msra.mxu0 0.0
    %868 = vmatprep.subr.mxu0 0.0
    %869 = vmatpush2.msra.mxu0 0.0
    %870 = vmatprep.subr.mxu0 0.0
    %871 = vmatpush2.msra.mxu0 0.0
    %872 = vmatprep.subr.mxu0 0.0
    %873 = vmatpush2.msra.mxu0 0.0
    %874 = vmatprep.subr.mxu0 0.0
    %875 = vmatpush2.msra.mxu0 0.0
    %876 = vmatprep.subr.mxu0 0.0
    %877 = vmatpush2.msra.mxu0 0.0
    %878 = vmatprep.mubr.f32.mxu0 0.0
    %879 = vmatmul.mubr.f32.gmra.mxu0 %v812
    %v880 = vpop.f32.mrf.mxu0
    %v881 = vadd.f32 0.0, %v880
    %v882 = vpop.f32.mrf.mxu0
    %883 = vdwg.mxu0
    %v885 = vrot.slane %v881, 3
    %v886 = vrot.slane %v881, 4
    %v889 = vadd.f32 %v112, %v885
    %v890 = vadd.f32 %v117, %v886
    %v891 = vtanh.pop %v889
    %v892 = vtanh.pop %v890
    %v893 = vmul.f32 %v891, 0.5
    %v894 = vmul.f32 %v892, 0.5
    %v895 = vadd.f32 %v893, 0.5
    %v896 = vadd.f32 %v894, 0.5
    %v899 = vrot.slane %v783, 7
    %v900 = vrot.slane %v784, 7
    %v903 = vmul.f32 %v895, %v899
    %v904 = vmul.f32 %v896, %v900
    %907 = vrot.lane.b32.xlu0 %v891, 64
    %v908 = vpop.permute.xlu0 %907
    %909 = vrot.lane.b32.xlu0 %v892, 64
    %v910 = vpop.permute.xlu0 %909
    %v913 = vmul.f32 %v895, %v908
    %v914 = vmul.f32 %v896, %v910
    %917 = vrot.lane.b32.xlu0 %v913, 32
    %v918 = vpop.permute.xlu0 %917
    %919 = vrot.lane.b32.xlu0 %v914, 32
    %v920 = vpop.permute.xlu0 %919
    %v923 = vadd.f32 %v903, %v918
    %v924 = vadd.f32 %v904, %v920
    %v925 = vtanh.pop %v923
    %v926 = vtanh.pop %v924
    %929 = vrot.lane.b32.xlu0 %v925, 64
    %v930 = vpop.permute.xlu0 %929
    %931 = vrot.lane.b32.xlu0 %v926, 64
    %v932 = vpop.permute.xlu0 %931
    %v935 = vmul.f32 %v895, %v930
    %v936 = vmul.f32 %v896, %v932
    %v939 = vrot.slane %v936, 7
    %vm940 = vcmask 1046534
    %v941 = vsel %vm940, %v939, %v935
    %942 = vrot.lane.b32.xlu0 %v941, 32
    %v943 = vpop.permute.xlu0 %942
    %vm945 = vcmask 260101
    %946 = vst.msk [vmem:[#allocation2 + $0x5] sm:$0x60] %vm945, %v943
    %v947 = vrot.slane %v935, 5
    %v948 = vrot.slane %v936, 4
    %v949 = vsel %vm247, %v948, %v947
    %950 = vrot.lane.b32.xlu0 %v949, 32
    %v951 = vpop.permute.xlu0 %950
    %v952 = vsel %vm124, %v951, 0
    %954 = vmatprep.subr.mxu0 0.0
    %955 = vmatpush1.msra.mxu0 0.0
    %956 = vmatprep.subr.mxu0 0.0
    %957 = vmatpush1.msra.mxu0 0.0
    %958 = vmatprep.subr.mxu0 0.0
    %959 = vmatpush1.msra.mxu0 0.0
    %960 = vmatprep.subr.mxu0 0.0
    %961 = vmatpush1.msra.mxu0 0.0
    %962 = vmatprep.subr.mxu0 0.0
    %963 = vmatpush1.msra.mxu0 0.0
    %964 = vmatprep.subr.mxu0 0.0
    %965 = vmatpush1.msra.mxu0 0.0
    %966 = vmatprep.subr.mxu0 0.0
    %967 = vmatpush1.msra.mxu0 0.0
    %968 = vmatprep.subr.mxu0 0.0
    %969 = vmatpush1.msra.mxu0 0.0
    %970 = vmatprep.subr.mxu0 0.0
    %971 = vmatpush1.msra.mxu0 0.0
    %972 = vmatprep.subr.mxu0 0.0
    %973 = vmatpush1.msra.mxu0 0.0
    %974 = vmatprep.subr.mxu0 0.0
    %975 = vmatpush1.msra.mxu0 0.0
    %976 = vmatprep.subr.mxu0 0.0
    %977 = vmatpush1.msra.mxu0 0.0
    %978 = vmatprep.subr.mxu0 0.0
    %979 = vmatpush1.msra.mxu0 %v123
    %980 = vmatprep.subr.mxu0 0.0
    %981 = vmatpush1.msra.mxu0 %v122
    %982 = vmatprep.subr.mxu0 0.0
    %983 = vmatpush1.msra.mxu0 %v121
    %984 = vmatprep.subr.mxu0 0.0
    %985 = vmatpush1.msra.mxu0 %v120
    %986 = vmatprep.subr.mxu0 0.0
    %987 = vmatpush2.msra.mxu0 0.0
    %988 = vmatprep.subr.mxu0 0.0
    %989 = vmatpush2.msra.mxu0 0.0
    %990 = vmatprep.subr.mxu0 0.0
    %991 = vmatpush2.msra.mxu0 0.0
    %992 = vmatprep.subr.mxu0 0.0
    %993 = vmatpush2.msra.mxu0 0.0
    %994 = vmatprep.subr.mxu0 0.0
    %995 = vmatpush2.msra.mxu0 0.0
    %996 = vmatprep.subr.mxu0 0.0
    %997 = vmatpush2.msra.mxu0 0.0
    %998 = vmatprep.subr.mxu0 0.0
    %999 = vmatpush2.msra.mxu0 0.0
    %1000 = vmatprep.subr.mxu0 0.0
    %1001 = vmatpush2.msra.mxu0 0.0
    %1002 = vmatprep.subr.mxu0 0.0
    %1003 = vmatpush2.msra.mxu0 0.0
    %1004 = vmatprep.subr.mxu0 0.0
    %1005 = vmatpush2.msra.mxu0 0.0
    %1006 = vmatprep.subr.mxu0 0.0
    %1007 = vmatpush2.msra.mxu0 0.0
    %1008 = vmatprep.subr.mxu0 0.0
    %1009 = vmatpush2.msra.mxu0 0.0
    %1010 = vmatprep.subr.mxu0 0.0
    %1011 = vmatpush2.msra.mxu0 0.0
    %1012 = vmatprep.subr.mxu0 0.0
    %1013 = vmatpush2.msra.mxu0 0.0
    %1014 = vmatprep.subr.mxu0 0.0
    %1015 = vmatpush2.msra.mxu0 0.0
    %1016 = vmatprep.subr.mxu0 0.0
    %1017 = vmatpush2.msra.mxu0 0.0
    %1018 = vmatprep.mubr.f32.mxu0 0.0
    %1019 = vmatmul.mubr.f32.gmra.mxu0 %v952
    %v1020 = vpop.f32.mrf.mxu0
    %v1021 = vadd.f32 0.0, %v1020
    %v1022 = vpop.f32.mrf.mxu0
    %1023 = vdwg.mxu0
    %v1025 = vrot.slane %v1021, 2
    %v1026 = vrot.slane %v1021, 3
    %v1029 = vadd.f32 %v112, %v1025
    %v1030 = vadd.f32 %v117, %v1026
    %v1031 = vtanh.pop %v1029
    %v1032 = vtanh.pop %v1030
    %v1033 = vmul.f32 %v1031, 0.5
    %v1034 = vmul.f32 %v1032, 0.5
    %v1035 = vadd.f32 %v1033, 0.5
    %v1036 = vadd.f32 %v1034, 0.5
    %v1039 = vrot.slane %v923, 7
    %v1040 = vrot.slane %v924, 7
    %v1043 = vmul.f32 %v1035, %v1039
    %v1044 = vmul.f32 %v1036, %v1040
    %1047 = vrot.lane.b32.xlu0 %v1031, 64
    %v1048 = vpop.permute.xlu0 %1047
    %1049 = vrot.lane.b32.xlu0 %v1032, 64
    %v1050 = vpop.permute.xlu0 %1049
    %v1053 = vmul.f32 %v1035, %v1048
    %v1054 = vmul.f32 %v1036, %v1050
    %1057 = vrot.lane.b32.xlu0 %v1053, 32
    %v1058 = vpop.permute.xlu0 %1057
    %1059 = vrot.lane.b32.xlu0 %v1054, 32
    %v1060 = vpop.permute.xlu0 %1059
    %v1063 = vadd.f32 %v1043, %v1058
    %v1064 = vadd.f32 %v1044, %v1060
    %v1065 = vtanh.pop %v1063
    %v1066 = vtanh.pop %v1064
    %1069 = vrot.lane.b32.xlu0 %v1065, 64
    %v1070 = vpop.permute.xlu0 %1069
    %1071 = vrot.lane.b32.xlu0 %v1066, 64
    %v1072 = vpop.permute.xlu0 %1071
    %v1075 = vmul.f32 %v1035, %v1070
    %v1076 = vmul.f32 %v1036, %v1072
    %v1079 = vrot.slane %v1076, 7
    %vm1080 = vcmask 1047559
    %v1081 = vsel %vm1080, %v1079, %v1075
    %1082 = vrot.lane.b32.xlu0 %v1081, 32
    %v1083 = vpop.permute.xlu0 %1082
    %vm1085 = vcmask 261126
    %1086 = vst.msk [vmem:[#allocation2 + $0x6] sm:$0xc0] %vm1085, %v1083
    %v1087 = vrot.slane %v1075, 6
    %v1088 = vrot.slane %v1076, 5
    %v1089 = vsel %vm247, %v1088, %v1087
    %1090 = vrot.lane.b32.xlu0 %v1089, 32
    %v1091 = vpop.permute.xlu0 %1090
    %v1092 = vsel %vm124, %v1091, 0
    %1094 = vmatprep.subr.mxu0 0.0
    %1095 = vmatpush1.msra.mxu0 0.0
    %1096 = vmatprep.subr.mxu0 0.0
    %1097 = vmatpush1.msra.mxu0 0.0
    %1098 = vmatprep.subr.mxu0 0.0
    %1099 = vmatpush1.msra.mxu0 0.0
    %1100 = vmatprep.subr.mxu0 0.0
    %1101 = vmatpush1.msra.mxu0 0.0
    %1102 = vmatprep.subr.mxu0 0.0
    %1103 = vmatpush1.msra.mxu0 0.0
    %1104 = vmatprep.subr.mxu0 0.0
    %1105 = vmatpush1.msra.mxu0 0.0
    %1106 = vmatprep.subr.mxu0 0.0
    %1107 = vmatpush1.msra.mxu0 0.0
    %1108 = vmatprep.subr.mxu0 0.0
    %1109 = vmatpush1.msra.mxu0 0.0
    %1110 = vmatprep.subr.mxu0 0.0
    %1111 = vmatpush1.msra.mxu0 0.0
    %1112 = vmatprep.subr.mxu0 0.0
    %1113 = vmatpush1.msra.mxu0 0.0
    %1114 = vmatprep.subr.mxu0 0.0
    %1115 = vmatpush1.msra.mxu0 0.0
    %1116 = vmatprep.subr.mxu0 0.0
    %1117 = vmatpush1.msra.mxu0 0.0
    %1118 = vmatprep.subr.mxu0 0.0
    %1119 = vmatpush1.msra.mxu0 %v123
    %1120 = vmatprep.subr.mxu0 0.0
    %1121 = vmatpush1.msra.mxu0 %v122
    %1122 = vmatprep.subr.mxu0 0.0
    %1123 = vmatpush1.msra.mxu0 %v121
    %1124 = vmatprep.subr.mxu0 0.0
    %1125 = vmatpush1.msra.mxu0 %v120
    %1126 = vmatprep.subr.mxu0 0.0
    %1127 = vmatpush2.msra.mxu0 0.0
    %1128 = vmatprep.subr.mxu0 0.0
    %1129 = vmatpush2.msra.mxu0 0.0
    %1130 = vmatprep.subr.mxu0 0.0
    %1131 = vmatpush2.msra.mxu0 0.0
    %1132 = vmatprep.subr.mxu0 0.0
    %1133 = vmatpush2.msra.mxu0 0.0
    %1134 = vmatprep.subr.mxu0 0.0
    %1135 = vmatpush2.msra.mxu0 0.0
    %1136 = vmatprep.subr.mxu0 0.0
    %1137 = vmatpush2.msra.mxu0 0.0
    %1138 = vmatprep.subr.mxu0 0.0
    %1139 = vmatpush2.msra.mxu0 0.0
    %1140 = vmatprep.subr.mxu0 0.0
    %1141 = vmatpush2.msra.mxu0 0.0
    %1142 = vmatprep.subr.mxu0 0.0
    %1143 = vmatpush2.msra.mxu0 0.0
    %1144 = vmatprep.subr.mxu0 0.0
    %1145 = vmatpush2.msra.mxu0 0.0
    %1146 = vmatprep.subr.mxu0 0.0
    %1147 = vmatpush2.msra.mxu0 0.0
    %1148 = vmatprep.subr.mxu0 0.0
    %1149 = vmatpush2.msra.mxu0 0.0
    %1150 = vmatprep.subr.mxu0 0.0
    %1151 = vmatpush2.msra.mxu0 0.0
    %1152 = vmatprep.subr.mxu0 0.0
    %1153 = vmatpush2.msra.mxu0 0.0
    %1154 = vmatprep.subr.mxu0 0.0
    %1155 = vmatpush2.msra.mxu0 0.0
    %1156 = vmatprep.subr.mxu0 0.0
    %1157 = vmatpush2.msra.mxu0 0.0
    %1158 = vmatprep.mubr.f32.mxu0 0.0
    %1159 = vmatmul.mubr.f32.gmra.mxu0 %v1092
    %v1160 = vpop.f32.mrf.mxu0
    %v1161 = vadd.f32 0.0, %v1160
    %v1162 = vpop.f32.mrf.mxu0
    %1163 = vdwg.mxu0
    %v1165 = vrot.slane %v1161, 1
    %v1166 = vrot.slane %v1161, 2
    %v1169 = vadd.f32 %v112, %v1165
    %v1170 = vadd.f32 %v117, %v1166
    %v1171 = vtanh.pop %v1169
    %v1172 = vtanh.pop %v1170
    %v1173 = vmul.f32 %v1171, 0.5
    %v1174 = vmul.f32 %v1172, 0.5
    %v1175 = vadd.f32 %v1173, 0.5
    %v1176 = vadd.f32 %v1174, 0.5
    %v1179 = vrot.slane %v1063, 7
    %v1180 = vrot.slane %v1064, 7
    %v1183 = vmul.f32 %v1175, %v1179
    %v1184 = vmul.f32 %v1176, %v1180
    %1187 = vrot.lane.b32.xlu0 %v1171, 64
    %v1188 = vpop.permute.xlu0 %1187
    %1189 = vrot.lane.b32.xlu0 %v1172, 64
    %v1190 = vpop.permute.xlu0 %1189
    %v1193 = vmul.f32 %v1175, %v1188
    %v1194 = vmul.f32 %v1176, %v1190
    %1197 = vrot.lane.b32.xlu0 %v1193, 32
    %v1198 = vpop.permute.xlu0 %1197
    %1199 = vrot.lane.b32.xlu0 %v1194, 32
    %v1200 = vpop.permute.xlu0 %1199
    %v1203 = vadd.f32 %v1183, %v1198
    %v1204 = vadd.f32 %v1184, %v1200
    %v1205 = vtanh.pop %v1203
    %v1206 = vtanh.pop %v1204
    %1209 = vrot.lane.b32.xlu0 %v1205, 64
    %v1210 = vpop.permute.xlu0 %1209
    %1211 = vrot.lane.b32.xlu0 %v1206, 64
    %v1212 = vpop.permute.xlu0 %1211
    %v1215 = vmul.f32 %v1175, %v1210
    %v1216 = vmul.f32 %v1176, %v1212
    %v1219 = vrot.slane %v1216, 7
    %1220 = vrot.lane.b32.xlu0 %v1215, 32
    %v1221 = vpop.permute.xlu0 %1220
    %1222 = vrot.lane.b32.xlu0 %v1219, 32
    %v1223 = vpop.permute.xlu0 %1222
    %vm1226 = vcmask 261127
    %1227 = vst.msk [vmem:[#allocation2 + $0x7] sm:$0x80] %vm1226, %v1221
    %vm1228 = vcmask 253952
    %1229 = vst.msk [vmem:[#allocation2 + $0xf] sm:$0x1] %vm1228, %v1223
    %v1230 = vld [vmem:[#allocation2] sm:$0xff]
    %v1231 = vld [vmem:[#allocation2 + $0x8] sm:$0xff]
    %v1232 = vld [vmem:[%s3] sm:$0xff]
    %v1233 = vld [vmem:[%s3 + $0x8] sm:$0xff]
    %v1234 = vld [vmem:[%s3 + $0x10] sm:$0xff]
    %v1235 = vld [vmem:[%s3 + $0x18] sm:$0xff]
    %s1236 = scalar_lea.vmem %s4, 1
    %v1237 = vld [vmem:[%s1236] sm:$0x1]
    %v1239 = vlaneseq
    %v1240 = vshrl.u32 %v1239, 7
    %v1241 = vsub.s32 0, %v1240
    %v1242 = vrot.slane %v1237, %v1241
    %v1245 = vsel %vm124, %v1230, 0
    %v1248 = vsel %vm124, %v1231, 0
    %1250 = vmatprep.subr.mxu0 0.0
    %1251 = vmatpush1.msra.mxu0 0.0
    %1252 = vmatprep.subr.mxu0 0.0
    %1253 = vmatpush1.msra.mxu0 0.0
    %1254 = vmatprep.subr.mxu0 0.0
    %1255 = vmatpush1.msra.mxu0 0.0
    %1256 = vmatprep.subr.mxu0 0.0
    %1257 = vmatpush1.msra.mxu0 0.0
    %1258 = vmatprep.subr.mxu0 0.0
    %1259 = vmatpush1.msra.mxu0 0.0
    %1260 = vmatprep.subr.mxu0 0.0
    %1261 = vmatpush1.msra.mxu0 0.0
    %1262 = vmatprep.subr.mxu0 0.0
    %1263 = vmatpush1.msra.mxu0 0.0
    %1264 = vmatprep.subr.mxu0 0.0
    %1265 = vmatpush1.msra.mxu0 0.0
    %1266 = vmatprep.subr.mxu0 0.0
    %1267 = vmatpush1.msra.mxu0 0.0
    %1268 = vmatprep.subr.mxu0 0.0
    %1269 = vmatpush1.msra.mxu0 0.0
    %1270 = vmatprep.subr.mxu0 0.0
    %1271 = vmatpush1.msra.mxu0 0.0
    %1272 = vmatprep.subr.mxu0 0.0
    %1273 = vmatpush1.msra.mxu0 0.0
    %1274 = vmatprep.subr.mxu0 0.0
    %1275 = vmatpush1.msra.mxu0 %v1235
    %1276 = vmatprep.subr.mxu0 0.0
    %1277 = vmatpush1.msra.mxu0 %v1234
    %1278 = vmatprep.subr.mxu0 0.0
    %1279 = vmatpush1.msra.mxu0 %v1233
    %1280 = vmatprep.subr.mxu0 0.0
    %1281 = vmatpush1.msra.mxu0 %v1232
    %1282 = vmatprep.subr.mxu0 0.0
    %1283 = vmatpush2.msra.mxu0 0.0
    %1284 = vmatprep.subr.mxu0 0.0
    %1285 = vmatpush2.msra.mxu0 0.0
    %1286 = vmatprep.subr.mxu0 0.0
    %1287 = vmatpush2.msra.mxu0 0.0
    %1288 = vmatprep.subr.mxu0 0.0
    %1289 = vmatpush2.msra.mxu0 0.0
    %1290 = vmatprep.subr.mxu0 0.0
    %1291 = vmatpush2.msra.mxu0 0.0
    %1292 = vmatprep.subr.mxu0 0.0
    %1293 = vmatpush2.msra.mxu0 0.0
    %1294 = vmatprep.subr.mxu0 0.0
    %1295 = vmatpush2.msra.mxu0 0.0
    %1296 = vmatprep.subr.mxu0 0.0
    %1297 = vmatpush2.msra.mxu0 0.0
    %1298 = vmatprep.subr.mxu0 0.0
    %1299 = vmatpush2.msra.mxu0 0.0
    %1300 = vmatprep.subr.mxu0 0.0
    %1301 = vmatpush2.msra.mxu0 0.0
    %1302 = vmatprep.subr.mxu0 0.0
    %1303 = vmatpush2.msra.mxu0 0.0
    %1304 = vmatprep.subr.mxu0 0.0
    %1305 = vmatpush2.msra.mxu0 0.0
    %1306 = vmatprep.subr.mxu0 0.0
    %1307 = vmatpush2.msra.mxu0 0.0
    %1308 = vmatprep.subr.mxu0 0.0
    %1309 = vmatpush2.msra.mxu0 0.0
    %1310 = vmatprep.subr.mxu0 0.0
    %1311 = vmatpush2.msra.mxu0 0.0
    %1312 = vmatprep.subr.mxu0 0.0
    %1313 = vmatpush2.msra.mxu0 0.0
    %1314 = vmatprep.mubr.f32.mxu0 0.0
    %1315 = vmatmul.mubr.f32.gmra.mxu0 %v1245
    %v1316 = vpop.f32.mrf.mxu0
    %v1317 = vadd.f32 %v1242, %v1316
    %v1318 = vpop.f32.mrf.mxu0
    %1319 = vmatprep.mubr.f32.mxu0 0.0
    %1320 = vmatmul.mubr.f32.gmra.mxu0 %v1248
    %v1321 = vpop.f32.mrf.mxu0
    %v1322 = vadd.f32 %v1242, %v1321
    %v1323 = vpop.f32.mrf.mxu0
    %1324 = vdwg.mxu0
    %s1325 = scalar_lea.vmem %s2, 32
    %v1326 = vld [vmem:[%s1325] sm:$0xff]
    %v1327 = vld [vmem:[%s1325 + $0x8] sm:$0xff]
    %v1328 = vld [vmem:[%s1325 + $0x10] sm:$0xff]
    %v1329 = vld [vmem:[%s1325 + $0x18] sm:$0xff]
    %1330 = vmatprep.subr.mxu0 0.0
    %1331 = vmatpush1.msra.mxu0 0.0
    %1332 = vmatprep.subr.mxu0 0.0
    %1333 = vmatpush1.msra.mxu0 0.0
    %1334 = vmatprep.subr.mxu0 0.0
    %1335 = vmatpush1.msra.mxu0 0.0
    %1336 = vmatprep.subr.mxu0 0.0
    %1337 = vmatpush1.msra.mxu0 0.0
    %1338 = vmatprep.subr.mxu0 0.0
    %1339 = vmatpush1.msra.mxu0 0.0
    %1340 = vmatprep.subr.mxu0 0.0
    %1341 = vmatpush1.msra.mxu0 0.0
    %1342 = vmatprep.subr.mxu0 0.0
    %1343 = vmatpush1.msra.mxu0 0.0
    %1344 = vmatprep.subr.mxu0 0.0
    %1345 = vmatpush1.msra.mxu0 0.0
    %1346 = vmatprep.subr.mxu0 0.0
    %1347 = vmatpush1.msra.mxu0 0.0
    %1348 = vmatprep.subr.mxu0 0.0
    %1349 = vmatpush1.msra.mxu0 0.0
    %1350 = vmatprep.subr.mxu0 0.0
    %1351 = vmatpush1.msra.mxu0 0.0
    %1352 = vmatprep.subr.mxu0 0.0
    %1353 = vmatpush1.msra.mxu0 0.0
    %1354 = vmatprep.subr.mxu0 0.0
    %1355 = vmatpush1.msra.mxu0 %v1329
    %1356 = vmatprep.subr.mxu0 0.0
    %1357 = vmatpush1.msra.mxu0 %v1328
    %1358 = vmatprep.subr.mxu0 0.0
    %1359 = vmatpush1.msra.mxu0 %v1327
    %1360 = vmatprep.subr.mxu0 0.0
    %1361 = vmatpush1.msra.mxu0 %v1326
    %1362 = vmatprep.subr.mxu0 0.0
    %1363 = vmatpush2.msra.mxu0 0.0
    %1364 = vmatprep.subr.mxu0 0.0
    %1365 = vmatpush2.msra.mxu0 0.0
    %1366 = vmatprep.subr.mxu0 0.0
    %1367 = vmatpush2.msra.mxu0 0.0
    %1368 = vmatprep.subr.mxu0 0.0
    %1369 = vmatpush2.msra.mxu0 0.0
    %1370 = vmatprep.subr.mxu0 0.0
    %1371 = vmatpush2.msra.mxu0 0.0
    %1372 = vmatprep.subr.mxu0 0.0
    %1373 = vmatpush2.msra.mxu0 0.0
    %1374 = vmatprep.subr.mxu0 0.0
    %1375 = vmatpush2.msra.mxu0 0.0
    %1376 = vmatprep.subr.mxu0 0.0
    %1377 = vmatpush2.msra.mxu0 0.0
    %1378 = vmatprep.subr.mxu0 0.0
    %1379 = vmatpush2.msra.mxu0 0.0
    %1380 = vmatprep.subr.mxu0 0.0
    %1381 = vmatpush2.msra.mxu0 0.0
    %1382 = vmatprep.subr.mxu0 0.0
    %1383 = vmatpush2.msra.mxu0 0.0
    %1384 = vmatprep.subr.mxu0 0.0
    %1385 = vmatpush2.msra.mxu0 0.0
    %1386 = vmatprep.subr.mxu0 0.0
    %1387 = vmatpush2.msra.mxu0 0.0
    %1388 = vmatprep.subr.mxu0 0.0
    %1389 = vmatpush2.msra.mxu0 0.0
    %1390 = vmatprep.subr.mxu0 0.0
    %1391 = vmatpush2.msra.mxu0 0.0
    %1392 = vmatprep.subr.mxu0 0.0
    %1393 = vmatpush2.msra.mxu0 0.0
    %1394 = vmatprep.mubr.f32.mxu0 0.0
    %1395 = vmatmul.mubr.f32.gmra.mxu0 %v126
    %v1396 = vpop.f32.mrf.mxu0
    %v1397 = vadd.f32 0.0, %v1396
    %v1398 = vpop.f32.mrf.mxu0
    %1399 = vdwg.mxu0
    %v1400 = vadd.f32 %v1317, %v1397
    %v1401 = vtanh.pop %v1400
    %v1402 = vmul.f32 %v1401, 0.5
    %v1403 = vadd.f32 %v1402, 0.5
    %v1404 = vmul.f32 %v1403, 0.0
    %1406 = vrot.lane.b32.xlu0 %v1401, 64
    %v1407 = vpop.permute.xlu0 %1406
    %v1409 = vmul.f32 %v1403, %v1407
    %1411 = vrot.lane.b32.xlu0 %v1409, 32
    %v1412 = vpop.permute.xlu0 %1411
    %v1414 = vadd.f32 %v1404, %v1412
    %v1415 = vtanh.pop %v1414
    %1417 = vrot.lane.b32.xlu0 %v1415, 64
    %v1418 = vpop.permute.xlu0 %1417
    %v1420 = vmul.f32 %v1403, %v1418
    %1422 = vrot.lane.b32.xlu0 %v1420, 32
    %v1423 = vpop.permute.xlu0 %1422
    %1425 = vst.msk [vmem:[#allocation2] sm:$0x3] %vm252, %v1423
    %v1426 = vsel %vm124, %v1423, 0
    %1428 = vmatprep.subr.mxu0 0.0
    %1429 = vmatpush1.msra.mxu0 0.0
    %1430 = vmatprep.subr.mxu0 0.0
    %1431 = vmatpush1.msra.mxu0 0.0
    %1432 = vmatprep.subr.mxu0 0.0
    %1433 = vmatpush1.msra.mxu0 0.0
    %1434 = vmatprep.subr.mxu0 0.0
    %1435 = vmatpush1.msra.mxu0 0.0
    %1436 = vmatprep.subr.mxu0 0.0
    %1437 = vmatpush1.msra.mxu0 0.0
    %1438 = vmatprep.subr.mxu0 0.0
    %1439 = vmatpush1.msra.mxu0 0.0
    %1440 = vmatprep.subr.mxu0 0.0
    %1441 = vmatpush1.msra.mxu0 0.0
    %1442 = vmatprep.subr.mxu0 0.0
    %1443 = vmatpush1.msra.mxu0 0.0
    %1444 = vmatprep.subr.mxu0 0.0
    %1445 = vmatpush1.msra.mxu0 0.0
    %1446 = vmatprep.subr.mxu0 0.0
    %1447 = vmatpush1.msra.mxu0 0.0
    %1448 = vmatprep.subr.mxu0 0.0
    %1449 = vmatpush1.msra.mxu0 0.0
    %1450 = vmatprep.subr.mxu0 0.0
    %1451 = vmatpush1.msra.mxu0 0.0
    %1452 = vmatprep.subr.mxu0 0.0
    %1453 = vmatpush1.msra.mxu0 %v1329
    %1454 = vmatprep.subr.mxu0 0.0
    %1455 = vmatpush1.msra.mxu0 %v1328
    %1456 = vmatprep.subr.mxu0 0.0
    %1457 = vmatpush1.msra.mxu0 %v1327
    %1458 = vmatprep.subr.mxu0 0.0
    %1459 = vmatpush1.msra.mxu0 %v1326
    %1460 = vmatprep.subr.mxu0 0.0
    %1461 = vmatpush2.msra.mxu0 0.0
    %1462 = vmatprep.subr.mxu0 0.0
    %1463 = vmatpush2.msra.mxu0 0.0
    %1464 = vmatprep.subr.mxu0 0.0
    %1465 = vmatpush2.msra.mxu0 0.0
    %1466 = vmatprep.subr.mxu0 0.0
    %1467 = vmatpush2.msra.mxu0 0.0
    %1468 = vmatprep.subr.mxu0 0.0
    %1469 = vmatpush2.msra.mxu0 0.0
    %1470 = vmatprep.subr.mxu0 0.0
    %1471 = vmatpush2.msra.mxu0 0.0
    %1472 = vmatprep.subr.mxu0 0.0
    %1473 = vmatpush2.msra.mxu0 0.0
    %1474 = vmatprep.subr.mxu0 0.0
    %1475 = vmatpush2.msra.mxu0 0.0
    %1476 = vmatprep.subr.mxu0 0.0
    %1477 = vmatpush2.msra.mxu0 0.0
    %1478 = vmatprep.subr.mxu0 0.0
    %1479 = vmatpush2.msra.mxu0 0.0
    %1480 = vmatprep.subr.mxu0 0.0
    %1481 = vmatpush2.msra.mxu0 0.0
    %1482 = vmatprep.subr.mxu0 0.0
    %1483 = vmatpush2.msra.mxu0 0.0
    %1484 = vmatprep.subr.mxu0 0.0
    %1485 = vmatpush2.msra.mxu0 0.0
    %1486 = vmatprep.subr.mxu0 0.0
    %1487 = vmatpush2.msra.mxu0 0.0
    %1488 = vmatprep.subr.mxu0 0.0
    %1489 = vmatpush2.msra.mxu0 0.0
    %1490 = vmatprep.subr.mxu0 0.0
    %1491 = vmatpush2.msra.mxu0 0.0
    %1492 = vmatprep.mubr.f32.mxu0 0.0
    %1493 = vmatmul.mubr.f32.gmra.mxu0 %v1426
    %v1494 = vpop.f32.mrf.mxu0
    %v1495 = vadd.f32 0.0, %v1494
    %v1496 = vpop.f32.mrf.mxu0
    %1497 = vdwg.mxu0
    %v1499 = vrot.slane %v1495, 6
    %v1501 = vadd.f32 %v1317, %v1499
    %v1502 = vtanh.pop %v1501
    %v1503 = vmul.f32 %v1502, 0.5
    %v1504 = vadd.f32 %v1503, 0.5
    %v1506 = vrot.slane %v1414, 6
    %v1508 = vmul.f32 %v1504, %v1506
    %1510 = vrot.lane.b32.xlu0 %v1502, 64
    %v1511 = vpop.permute.xlu0 %1510
    %v1513 = vmul.f32 %v1504, %v1511
    %1515 = vrot.lane.b32.xlu0 %v1513, 32
    %v1516 = vpop.permute.xlu0 %1515
    %v1518 = vadd.f32 %v1508, %v1516
    %v1519 = vtanh.pop %v1518
    %1521 = vrot.lane.b32.xlu0 %v1519, 64
    %v1522 = vpop.permute.xlu0 %1521
    %v1524 = vmul.f32 %v1504, %v1522
    %1526 = vrot.lane.b32.xlu0 %v1524, 32
    %v1527 = vpop.permute.xlu0 %1526
    %1529 = vst.msk [vmem:[#allocation2] sm:$0xc] %vm525, %v1527
    %v1530 = vrot.slane %v1524, 2
    %1531 = vrot.lane.b32.xlu0 %v1530, 32
    %v1532 = vpop.permute.xlu0 %1531
    %v1533 = vsel %vm124, %v1532, 0
    %1535 = vmatprep.subr.mxu0 0.0
    %1536 = vmatpush1.msra.mxu0 0.0
    %1537 = vmatprep.subr.mxu0 0.0
    %1538 = vmatpush1.msra.mxu0 0.0
    %1539 = vmatprep.subr.mxu0 0.0
    %1540 = vmatpush1.msra.mxu0 0.0
    %1541 = vmatprep.subr.mxu0 0.0
    %1542 = vmatpush1.msra.mxu0 0.0
    %1543 = vmatprep.subr.mxu0 0.0
    %1544 = vmatpush1.msra.mxu0 0.0
    %1545 = vmatprep.subr.mxu0 0.0
    %1546 = vmatpush1.msra.mxu0 0.0
    %1547 = vmatprep.subr.mxu0 0.0
    %1548 = vmatpush1.msra.mxu0 0.0
    %1549 = vmatprep.subr.mxu0 0.0
    %1550 = vmatpush1.msra.mxu0 0.0
    %1551 = vmatprep.subr.mxu0 0.0
    %1552 = vmatpush1.msra.mxu0 0.0
    %1553 = vmatprep.subr.mxu0 0.0
    %1554 = vmatpush1.msra.mxu0 0.0
    %1555 = vmatprep.subr.mxu0 0.0
    %1556 = vmatpush1.msra.mxu0 0.0
    %1557 = vmatprep.subr.mxu0 0.0
    %1558 = vmatpush1.msra.mxu0 0.0
    %1559 = vmatprep.subr.mxu0 0.0
    %1560 = vmatpush1.msra.mxu0 %v1329
    %1561 = vmatprep.subr.mxu0 0.0
    %1562 = vmatpush1.msra.mxu0 %v1328
    %1563 = vmatprep.subr.mxu0 0.0
    %1564 = vmatpush1.msra.mxu0 %v1327
    %1565 = vmatprep.subr.mxu0 0.0
    %1566 = vmatpush1.msra.mxu0 %v1326
    %1567 = vmatprep.subr.mxu0 0.0
    %1568 = vmatpush2.msra.mxu0 0.0
    %1569 = vmatprep.subr.mxu0 0.0
    %1570 = vmatpush2.msra.mxu0 0.0
    %1571 = vmatprep.subr.mxu0 0.0
    %1572 = vmatpush2.msra.mxu0 0.0
    %1573 = vmatprep.subr.mxu0 0.0
    %1574 = vmatpush2.msra.mxu0 0.0
    %1575 = vmatprep.subr.mxu0 0.0
    %1576 = vmatpush2.msra.mxu0 0.0
    %1577 = vmatprep.subr.mxu0 0.0
    %1578 = vmatpush2.msra.mxu0 0.0
    %1579 = vmatprep.subr.mxu0 0.0
    %1580 = vmatpush2.msra.mxu0 0.0
    %1581 = vmatprep.subr.mxu0 0.0
    %1582 = vmatpush2.msra.mxu0 0.0
    %1583 = vmatprep.subr.mxu0 0.0
    %1584 = vmatpush2.msra.mxu0 0.0
    %1585 = vmatprep.subr.mxu0 0.0
    %1586 = vmatpush2.msra.mxu0 0.0
    %1587 = vmatprep.subr.mxu0 0.0
    %1588 = vmatpush2.msra.mxu0 0.0
    %1589 = vmatprep.subr.mxu0 0.0
    %1590 = vmatpush2.msra.mxu0 0.0
    %1591 = vmatprep.subr.mxu0 0.0
    %1592 = vmatpush2.msra.mxu0 0.0
    %1593 = vmatprep.subr.mxu0 0.0
    %1594 = vmatpush2.msra.mxu0 0.0
    %1595 = vmatprep.subr.mxu0 0.0
    %1596 = vmatpush2.msra.mxu0 0.0
    %1597 = vmatprep.subr.mxu0 0.0
    %1598 = vmatpush2.msra.mxu0 0.0
    %1599 = vmatprep.mubr.f32.mxu0 0.0
    %1600 = vmatmul.mubr.f32.gmra.mxu0 %v1533
    %v1601 = vpop.f32.mrf.mxu0
    %v1602 = vadd.f32 0.0, %v1601
    %v1603 = vpop.f32.mrf.mxu0
    %1604 = vdwg.mxu0
    %v1606 = vrot.slane %v1602, 4
    %v1608 = vadd.f32 %v1317, %v1606
    %v1609 = vtanh.pop %v1608
    %v1610 = vmul.f32 %v1609, 0.5
    %v1611 = vadd.f32 %v1610, 0.5
    %v1613 = vrot.slane %v1518, 6
    %v1615 = vmul.f32 %v1611, %v1613
    %1617 = vrot.lane.b32.xlu0 %v1609, 64
    %v1618 = vpop.permute.xlu0 %1617
    %v1620 = vmul.f32 %v1611, %v1618
    %1622 = vrot.lane.b32.xlu0 %v1620, 32
    %v1623 = vpop.permute.xlu0 %1622
    %v1625 = vadd.f32 %v1615, %v1623
    %v1626 = vtanh.pop %v1625
    %1628 = vrot.lane.b32.xlu0 %v1626, 64
    %v1629 = vpop.permute.xlu0 %1628
    %v1631 = vmul.f32 %v1611, %v1629
    %1633 = vrot.lane.b32.xlu0 %v1631, 32
    %v1634 = vpop.permute.xlu0 %1633
    %1636 = vst.msk [vmem:[#allocation2] sm:$0x30] %vm805, %v1634
    %v1637 = vrot.slane %v1631, 4
    %1638 = vrot.lane.b32.xlu0 %v1637, 32
    %v1639 = vpop.permute.xlu0 %1638
    %v1640 = vsel %vm124, %v1639, 0
    %1642 = vmatprep.subr.mxu0 0.0
    %1643 = vmatpush1.msra.mxu0 0.0
    %1644 = vmatprep.subr.mxu0 0.0
    %1645 = vmatpush1.msra.mxu0 0.0
    %1646 = vmatprep.subr.mxu0 0.0
    %1647 = vmatpush1.msra.mxu0 0.0
    %1648 = vmatprep.subr.mxu0 0.0
    %1649 = vmatpush1.msra.mxu0 0.0
    %1650 = vmatprep.subr.mxu0 0.0
    %1651 = vmatpush1.msra.mxu0 0.0
    %1652 = vmatprep.subr.mxu0 0.0
    %1653 = vmatpush1.msra.mxu0 0.0
    %1654 = vmatprep.subr.mxu0 0.0
    %1655 = vmatpush1.msra.mxu0 0.0
    %1656 = vmatprep.subr.mxu0 0.0
    %1657 = vmatpush1.msra.mxu0 0.0
    %1658 = vmatprep.subr.mxu0 0.0
    %1659 = vmatpush1.msra.mxu0 0.0
    %1660 = vmatprep.subr.mxu0 0.0
    %1661 = vmatpush1.msra.mxu0 0.0
    %1662 = vmatprep.subr.mxu0 0.0
    %1663 = vmatpush1.msra.mxu0 0.0
    %1664 = vmatprep.subr.mxu0 0.0
    %1665 = vmatpush1.msra.mxu0 0.0
    %1666 = vmatprep.subr.mxu0 0.0
    %1667 = vmatpush1.msra.mxu0 %v1329
    %1668 = vmatprep.subr.mxu0 0.0
    %1669 = vmatpush1.msra.mxu0 %v1328
    %1670 = vmatprep.subr.mxu0 0.0
    %1671 = vmatpush1.msra.mxu0 %v1327
    %1672 = vmatprep.subr.mxu0 0.0
    %1673 = vmatpush1.msra.mxu0 %v1326
    %1674 = vmatprep.subr.mxu0 0.0
    %1675 = vmatpush2.msra.mxu0 0.0
    %1676 = vmatprep.subr.mxu0 0.0
    %1677 = vmatpush2.msra.mxu0 0.0
    %1678 = vmatprep.subr.mxu0 0.0
    %1679 = vmatpush2.msra.mxu0 0.0
    %1680 = vmatprep.subr.mxu0 0.0
    %1681 = vmatpush2.msra.mxu0 0.0
    %1682 = vmatprep.subr.mxu0 0.0
    %1683 = vmatpush2.msra.mxu0 0.0
    %1684 = vmatprep.subr.mxu0 0.0
    %1685 = vmatpush2.msra.mxu0 0.0
    %1686 = vmatprep.subr.mxu0 0.0
    %1687 = vmatpush2.msra.mxu0 0.0
    %1688 = vmatprep.subr.mxu0 0.0
    %1689 = vmatpush2.msra.mxu0 0.0
    %1690 = vmatprep.subr.mxu0 0.0
    %1691 = vmatpush2.msra.mxu0 0.0
    %1692 = vmatprep.subr.mxu0 0.0
    %1693 = vmatpush2.msra.mxu0 0.0
    %1694 = vmatprep.subr.mxu0 0.0
    %1695 = vmatpush2.msra.mxu0 0.0
    %1696 = vmatprep.subr.mxu0 0.0
    %1697 = vmatpush2.msra.mxu0 0.0
    %1698 = vmatprep.subr.mxu0 0.0
    %1699 = vmatpush2.msra.mxu0 0.0
    %1700 = vmatprep.subr.mxu0 0.0
    %1701 = vmatpush2.msra.mxu0 0.0
    %1702 = vmatprep.subr.mxu0 0.0
    %1703 = vmatpush2.msra.mxu0 0.0
    %1704 = vmatprep.subr.mxu0 0.0
    %1705 = vmatpush2.msra.mxu0 0.0
    %1706 = vmatprep.mubr.f32.mxu0 0.0
    %1707 = vmatmul.mubr.f32.gmra.mxu0 %v1640
    %v1708 = vpop.f32.mrf.mxu0
    %v1709 = vadd.f32 0.0, %v1708
    %v1710 = vpop.f32.mrf.mxu0
    %1711 = vdwg.mxu0
    %v1713 = vrot.slane %v1709, 2
    %v1715 = vadd.f32 %v1317, %v1713
    %v1716 = vtanh.pop %v1715
    %v1717 = vmul.f32 %v1716, 0.5
    %v1718 = vadd.f32 %v1717, 0.5
    %v1720 = vrot.slane %v1625, 6
    %v1722 = vmul.f32 %v1718, %v1720
    %1724 = vrot.lane.b32.xlu0 %v1716, 64
    %v1725 = vpop.permute.xlu0 %1724
    %v1727 = vmul.f32 %v1718, %v1725
    %1729 = vrot.lane.b32.xlu0 %v1727, 32
    %v1730 = vpop.permute.xlu0 %1729
    %v1732 = vadd.f32 %v1722, %v1730
    %v1733 = vtanh.pop %v1732
    %1735 = vrot.lane.b32.xlu0 %v1733, 64
    %v1736 = vpop.permute.xlu0 %1735
    %v1738 = vmul.f32 %v1718, %v1736
    %1740 = vrot.lane.b32.xlu0 %v1738, 32
    %v1741 = vpop.permute.xlu0 %1740
    %1743 = vst.msk [vmem:[#allocation2] sm:$0xc0] %vm1085, %v1741
    %v1744 = vrot.slane %v1738, 6
    %1745 = vrot.lane.b32.xlu0 %v1744, 32
    %v1746 = vpop.permute.xlu0 %1745
    %v1747 = vsel %vm124, %v1746, 0
    %1749 = vmatprep.subr.mxu0 0.0
    %1750 = vmatpush1.msra.mxu0 0.0
    %1751 = vmatprep.subr.mxu0 0.0
    %1752 = vmatpush1.msra.mxu0 0.0
    %1753 = vmatprep.subr.mxu0 0.0
    %1754 = vmatpush1.msra.mxu0 0.0
    %1755 = vmatprep.subr.mxu0 0.0
    %1756 = vmatpush1.msra.mxu0 0.0
    %1757 = vmatprep.subr.mxu0 0.0
    %1758 = vmatpush1.msra.mxu0 0.0
    %1759 = vmatprep.subr.mxu0 0.0
    %1760 = vmatpush1.msra.mxu0 0.0
    %1761 = vmatprep.subr.mxu0 0.0
    %1762 = vmatpush1.msra.mxu0 0.0
    %1763 = vmatprep.subr.mxu0 0.0
    %1764 = vmatpush1.msra.mxu0 0.0
    %1765 = vmatprep.subr.mxu0 0.0
    %1766 = vmatpush1.msra.mxu0 0.0
    %1767 = vmatprep.subr.mxu0 0.0
    %1768 = vmatpush1.msra.mxu0 0.0
    %1769 = vmatprep.subr.mxu0 0.0
    %1770 = vmatpush1.msra.mxu0 0.0
    %1771 = vmatprep.subr.mxu0 0.0
    %1772 = vmatpush1.msra.mxu0 0.0
    %1773 = vmatprep.subr.mxu0 0.0
    %1774 = vmatpush1.msra.mxu0 %v1329
    %1775 = vmatprep.subr.mxu0 0.0
    %1776 = vmatpush1.msra.mxu0 %v1328
    %1777 = vmatprep.subr.mxu0 0.0
    %1778 = vmatpush1.msra.mxu0 %v1327
    %1779 = vmatprep.subr.mxu0 0.0
    %1780 = vmatpush1.msra.mxu0 %v1326
    %1781 = vmatprep.subr.mxu0 0.0
    %1782 = vmatpush2.msra.mxu0 0.0
    %1783 = vmatprep.subr.mxu0 0.0
    %1784 = vmatpush2.msra.mxu0 0.0
    %1785 = vmatprep.subr.mxu0 0.0
    %1786 = vmatpush2.msra.mxu0 0.0
    %1787 = vmatprep.subr.mxu0 0.0
    %1788 = vmatpush2.msra.mxu0 0.0
    %1789 = vmatprep.subr.mxu0 0.0
    %1790 = vmatpush2.msra.mxu0 0.0
    %1791 = vmatprep.subr.mxu0 0.0
    %1792 = vmatpush2.msra.mxu0 0.0
    %1793 = vmatprep.subr.mxu0 0.0
    %1794 = vmatpush2.msra.mxu0 0.0
    %1795 = vmatprep.subr.mxu0 0.0
    %1796 = vmatpush2.msra.mxu0 0.0
    %1797 = vmatprep.subr.mxu0 0.0
    %1798 = vmatpush2.msra.mxu0 0.0
    %1799 = vmatprep.subr.mxu0 0.0
    %1800 = vmatpush2.msra.mxu0 0.0
    %1801 = vmatprep.subr.mxu0 0.0
    %1802 = vmatpush2.msra.mxu0 0.0
    %1803 = vmatprep.subr.mxu0 0.0
    %1804 = vmatpush2.msra.mxu0 0.0
    %1805 = vmatprep.subr.mxu0 0.0
    %1806 = vmatpush2.msra.mxu0 0.0
    %1807 = vmatprep.subr.mxu0 0.0
    %1808 = vmatpush2.msra.mxu0 0.0
    %1809 = vmatprep.subr.mxu0 0.0
    %1810 = vmatpush2.msra.mxu0 0.0
    %1811 = vmatprep.subr.mxu0 0.0
    %1812 = vmatpush2.msra.mxu0 0.0
    %1813 = vmatprep.mubr.f32.mxu0 0.0
    %1814 = vmatmul.mubr.f32.gmra.mxu0 %v1747
    %v1815 = vpop.f32.mrf.mxu0
    %v1816 = vadd.f32 0.0, %v1815
    %v1817 = vpop.f32.mrf.mxu0
    %1818 = vdwg.mxu0
    %v1819 = vadd.f32 %v1322, %v1816
    %v1820 = vtanh.pop %v1819
    %v1821 = vmul.f32 %v1820, 0.5
    %v1822 = vadd.f32 %v1821, 0.5
    %v1824 = vrot.slane %v1732, 6
    %v1826 = vmul.f32 %v1822, %v1824
    %1828 = vrot.lane.b32.xlu0 %v1820, 64
    %v1829 = vpop.permute.xlu0 %1828
    %v1831 = vmul.f32 %v1822, %v1829
    %1833 = vrot.lane.b32.xlu0 %v1831, 32
    %v1834 = vpop.permute.xlu0 %1833
    %v1836 = vadd.f32 %v1826, %v1834
    %v1837 = vtanh.pop %v1836
    %1839 = vrot.lane.b32.xlu0 %v1837, 64
    %v1840 = vpop.permute.xlu0 %1839
    %v1842 = vmul.f32 %v1822, %v1840
    %1844 = vrot.lane.b32.xlu0 %v1842, 32
    %v1845 = vpop.permute.xlu0 %1844
    %1847 = vst.msk [vmem:[#allocation2 + $0x8] sm:$0x3] %vm252, %v1845
    %v1848 = vsel %vm124, %v1845, 0
    %1850 = vmatprep.subr.mxu0 0.0
    %1851 = vmatpush1.msra.mxu0 0.0
    %1852 = vmatprep.subr.mxu0 0.0
    %1853 = vmatpush1.msra.mxu0 0.0
    %1854 = vmatprep.subr.mxu0 0.0
    %1855 = vmatpush1.msra.mxu0 0.0
    %1856 = vmatprep.subr.mxu0 0.0
    %1857 = vmatpush1.msra.mxu0 0.0
    %1858 = vmatprep.subr.mxu0 0.0
    %1859 = vmatpush1.msra.mxu0 0.0
    %1860 = vmatprep.subr.mxu0 0.0
    %1861 = vmatpush1.msra.mxu0 0.0
    %1862 = vmatprep.subr.mxu0 0.0
    %1863 = vmatpush1.msra.mxu0 0.0
    %1864 = vmatprep.subr.mxu0 0.0
    %1865 = vmatpush1.msra.mxu0 0.0
    %1866 = vmatprep.subr.mxu0 0.0
    %1867 = vmatpush1.msra.mxu0 0.0
    %1868 = vmatprep.subr.mxu0 0.0
    %1869 = vmatpush1.msra.mxu0 0.0
    %1870 = vmatprep.subr.mxu0 0.0
    %1871 = vmatpush1.msra.mxu0 0.0
    %1872 = vmatprep.subr.mxu0 0.0
    %1873 = vmatpush1.msra.mxu0 0.0
    %1874 = vmatprep.subr.mxu0 0.0
    %1875 = vmatpush1.msra.mxu0 %v1329
    %1876 = vmatprep.subr.mxu0 0.0
    %1877 = vmatpush1.msra.mxu0 %v1328
    %1878 = vmatprep.subr.mxu0 0.0
    %1879 = vmatpush1.msra.mxu0 %v1327
    %1880 = vmatprep.subr.mxu0 0.0
    %1881 = vmatpush1.msra.mxu0 %v1326
    %1882 = vmatprep.subr.mxu0 0.0
    %1883 = vmatpush2.msra.mxu0 0.0
    %1884 = vmatprep.subr.mxu0 0.0
    %1885 = vmatpush2.msra.mxu0 0.0
    %1886 = vmatprep.subr.mxu0 0.0
    %1887 = vmatpush2.msra.mxu0 0.0
    %1888 = vmatprep.subr.mxu0 0.0
    %1889 = vmatpush2.msra.mxu0 0.0
    %1890 = vmatprep.subr.mxu0 0.0
    %1891 = vmatpush2.msra.mxu0 0.0
    %1892 = vmatprep.subr.mxu0 0.0
    %1893 = vmatpush2.msra.mxu0 0.0
    %1894 = vmatprep.subr.mxu0 0.0
    %1895 = vmatpush2.msra.mxu0 0.0
    %1896 = vmatprep.subr.mxu0 0.0
    %1897 = vmatpush2.msra.mxu0 0.0
    %1898 = vmatprep.subr.mxu0 0.0
    %1899 = vmatpush2.msra.mxu0 0.0
    %1900 = vmatprep.subr.mxu0 0.0
    %1901 = vmatpush2.msra.mxu0 0.0
    %1902 = vmatprep.subr.mxu0 0.0
    %1903 = vmatpush2.msra.mxu0 0.0
    %1904 = vmatprep.subr.mxu0 0.0
    %1905 = vmatpush2.msra.mxu0 0.0
    %1906 = vmatprep.subr.mxu0 0.0
    %1907 = vmatpush2.msra.mxu0 0.0
    %1908 = vmatprep.subr.mxu0 0.0
    %1909 = vmatpush2.msra.mxu0 0.0
    %1910 = vmatprep.subr.mxu0 0.0
    %1911 = vmatpush2.msra.mxu0 0.0
    %1912 = vmatprep.subr.mxu0 0.0
    %1913 = vmatpush2.msra.mxu0 0.0
    %1914 = vmatprep.mubr.f32.mxu0 0.0
    %1915 = vmatmul.mubr.f32.gmra.mxu0 %v1848
    %v1916 = vpop.f32.mrf.mxu0
    %v1917 = vadd.f32 0.0, %v1916
    %v1918 = vpop.f32.mrf.mxu0
    %1919 = vdwg.mxu0
    %v1921 = vrot.slane %v1917, 6
    %v1923 = vadd.f32 %v1322, %v1921
    %v1924 = vtanh.pop %v1923
    %v1925 = vmul.f32 %v1924, 0.5
    %v1926 = vadd.f32 %v1925, 0.5
    %v1928 = vrot.slane %v1836, 6
    %v1930 = vmul.f32 %v1926, %v1928
    %1932 = vrot.lane.b32.xlu0 %v1924, 64
    %v1933 = vpop.permute.xlu0 %1932
    %v1935 = vmul.f32 %v1926, %v1933
    %1937 = vrot.lane.b32.xlu0 %v1935, 32
    %v1938 = vpop.permute.xlu0 %1937
    %v1940 = vadd.f32 %v1930, %v1938
    %v1941 = vtanh.pop %v1940
    %1943 = vrot.lane.b32.xlu0 %v1941, 64
    %v1944 = vpop.permute.xlu0 %1943
    %v1946 = vmul.f32 %v1926, %v1944
    %1948 = vrot.lane.b32.xlu0 %v1946, 32
    %v1949 = vpop.permute.xlu0 %1948
    %1951 = vst.msk [vmem:[#allocation2 + $0x8] sm:$0xc] %vm525, %v1949
    %v1952 = vrot.slane %v1946, 2
    %1953 = vrot.lane.b32.xlu0 %v1952, 32
    %v1954 = vpop.permute.xlu0 %1953
    %v1955 = vsel %vm124, %v1954, 0
    %1957 = vmatprep.subr.mxu0 0.0
    %1958 = vmatpush1.msra.mxu0 0.0
    %1959 = vmatprep.subr.mxu0 0.0
    %1960 = vmatpush1.msra.mxu0 0.0
    %1961 = vmatprep.subr.mxu0 0.0
    %1962 = vmatpush1.msra.mxu0 0.0
    %1963 = vmatprep.subr.mxu0 0.0
    %1964 = vmatpush1.msra.mxu0 0.0
    %1965 = vmatprep.subr.mxu0 0.0
    %1966 = vmatpush1.msra.mxu0 0.0
    %1967 = vmatprep.subr.mxu0 0.0
    %1968 = vmatpush1.msra.mxu0 0.0
    %1969 = vmatprep.subr.mxu0 0.0
    %1970 = vmatpush1.msra.mxu0 0.0
    %1971 = vmatprep.subr.mxu0 0.0
    %1972 = vmatpush1.msra.mxu0 0.0
    %1973 = vmatprep.subr.mxu0 0.0
    %1974 = vmatpush1.msra.mxu0 0.0
    %1975 = vmatprep.subr.mxu0 0.0
    %1976 = vmatpush1.msra.mxu0 0.0
    %1977 = vmatprep.subr.mxu0 0.0
    %1978 = vmatpush1.msra.mxu0 0.0
    %1979 = vmatprep.subr.mxu0 0.0
    %1980 = vmatpush1.msra.mxu0 0.0
    %1981 = vmatprep.subr.mxu0 0.0
    %1982 = vmatpush1.msra.mxu0 %v1329
    %1983 = vmatprep.subr.mxu0 0.0
    %1984 = vmatpush1.msra.mxu0 %v1328
    %1985 = vmatprep.subr.mxu0 0.0
    %1986 = vmatpush1.msra.mxu0 %v1327
    %1987 = vmatprep.subr.mxu0 0.0
    %1988 = vmatpush1.msra.mxu0 %v1326
    %1989 = vmatprep.subr.mxu0 0.0
    %1990 = vmatpush2.msra.mxu0 0.0
    %1991 = vmatprep.subr.mxu0 0.0
    %1992 = vmatpush2.msra.mxu0 0.0
    %1993 = vmatprep.subr.mxu0 0.0
    %1994 = vmatpush2.msra.mxu0 0.0
    %1995 = vmatprep.subr.mxu0 0.0
    %1996 = vmatpush2.msra.mxu0 0.0
    %1997 = vmatprep.subr.mxu0 0.0
    %1998 = vmatpush2.msra.mxu0 0.0
    %1999 = vmatprep.subr.mxu0 0.0
    %2000 = vmatpush2.msra.mxu0 0.0
    %2001 = vmatprep.subr.mxu0 0.0
    %2002 = vmatpush2.msra.mxu0 0.0
    %2003 = vmatprep.subr.mxu0 0.0
    %2004 = vmatpush2.msra.mxu0 0.0
    %2005 = vmatprep.subr.mxu0 0.0
    %2006 = vmatpush2.msra.mxu0 0.0
    %2007 = vmatprep.subr.mxu0 0.0
    %2008 = vmatpush2.msra.mxu0 0.0
    %2009 = vmatprep.subr.mxu0 0.0
    %2010 = vmatpush2.msra.mxu0 0.0
    %2011 = vmatprep.subr.mxu0 0.0
    %2012 = vmatpush2.msra.mxu0 0.0
    %2013 = vmatprep.subr.mxu0 0.0
    %2014 = vmatpush2.msra.mxu0 0.0
    %2015 = vmatprep.subr.mxu0 0.0
    %2016 = vmatpush2.msra.mxu0 0.0
    %2017 = vmatprep.subr.mxu0 0.0
    %2018 = vmatpush2.msra.mxu0 0.0
    %2019 = vmatprep.subr.mxu0 0.0
    %2020 = vmatpush2.msra.mxu0 0.0
    %2021 = vmatprep.mubr.f32.mxu0 0.0
    %2022 = vmatmul.mubr.f32.gmra.mxu0 %v1955
    %v2023 = vpop.f32.mrf.mxu0
    %v2024 = vadd.f32 0.0, %v2023
    %v2025 = vpop.f32.mrf.mxu0
    %2026 = vdwg.mxu0
    %v2028 = vrot.slane %v2024, 4
    %v2030 = vadd.f32 %v1322, %v2028
    %v2031 = vtanh.pop %v2030
    %v2032 = vmul.f32 %v2031, 0.5
    %v2033 = vadd.f32 %v2032, 0.5
    %v2035 = vrot.slane %v1940, 6
    %v2037 = vmul.f32 %v2033, %v2035
    %2039 = vrot.lane.b32.xlu0 %v2031, 64
    %v2040 = vpop.permute.xlu0 %2039
    %v2042 = vmul.f32 %v2033, %v2040
    %2044 = vrot.lane.b32.xlu0 %v2042, 32
    %v2045 = vpop.permute.xlu0 %2044
    %v2047 = vadd.f32 %v2037, %v2045
    %v2048 = vtanh.pop %v2047
    %2050 = vrot.lane.b32.xlu0 %v2048, 64
    %v2051 = vpop.permute.xlu0 %2050
    %v2053 = vmul.f32 %v2033, %v2051
    %2055 = vrot.lane.b32.xlu0 %v2053, 32
    %v2056 = vpop.permute.xlu0 %2055
    %2058 = vst.msk [vmem:[#allocation2 + $0x8] sm:$0x30] %vm805, %v2056
    %v2059 = vrot.slane %v2053, 4
    %2060 = vrot.lane.b32.xlu0 %v2059, 32
    %v2061 = vpop.permute.xlu0 %2060
    %v2062 = vsel %vm124, %v2061, 0
    %2064 = vmatprep.subr.mxu0 0.0
    %2065 = vmatpush1.msra.mxu0 0.0
    %2066 = vmatprep.subr.mxu0 0.0
    %2067 = vmatpush1.msra.mxu0 0.0
    %2068 = vmatprep.subr.mxu0 0.0
    %2069 = vmatpush1.msra.mxu0 0.0
    %2070 = vmatprep.subr.mxu0 0.0
    %2071 = vmatpush1.msra.mxu0 0.0
    %2072 = vmatprep.subr.mxu0 0.0
    %2073 = vmatpush1.msra.mxu0 0.0
    %2074 = vmatprep.subr.mxu0 0.0
    %2075 = vmatpush1.msra.mxu0 0.0
    %2076 = vmatprep.subr.mxu0 0.0
    %2077 = vmatpush1.msra.mxu0 0.0
    %2078 = vmatprep.subr.mxu0 0.0
    %2079 = vmatpush1.msra.mxu0 0.0
    %2080 = vmatprep.subr.mxu0 0.0
    %2081 = vmatpush1.msra.mxu0 0.0
    %2082 = vmatprep.subr.mxu0 0.0
    %2083 = vmatpush1.msra.mxu0 0.0
    %2084 = vmatprep.subr.mxu0 0.0
    %2085 = vmatpush1.msra.mxu0 0.0
    %2086 = vmatprep.subr.mxu0 0.0
    %2087 = vmatpush1.msra.mxu0 0.0
    %2088 = vmatprep.subr.mxu0 0.0
    %2089 = vmatpush1.msra.mxu0 %v1329
    %2090 = vmatprep.subr.mxu0 0.0
    %2091 = vmatpush1.msra.mxu0 %v1328
    %2092 = vmatprep.subr.mxu0 0.0
    %2093 = vmatpush1.msra.mxu0 %v1327
    %2094 = vmatprep.subr.mxu0 0.0
    %2095 = vmatpush1.msra.mxu0 %v1326
    %2096 = vmatprep.subr.mxu0 0.0
    %2097 = vmatpush2.msra.mxu0 0.0
    %2098 = vmatprep.subr.mxu0 0.0
    %2099 = vmatpush2.msra.mxu0 0.0
    %2100 = vmatprep.subr.mxu0 0.0
    %2101 = vmatpush2.msra.mxu0 0.0
    %2102 = vmatprep.subr.mxu0 0.0
    %2103 = vmatpush2.msra.mxu0 0.0
    %2104 = vmatprep.subr.mxu0 0.0
    %2105 = vmatpush2.msra.mxu0 0.0
    %2106 = vmatprep.subr.mxu0 0.0
    %2107 = vmatpush2.msra.mxu0 0.0
    %2108 = vmatprep.subr.mxu0 0.0
    %2109 = vmatpush2.msra.mxu0 0.0
    %2110 = vmatprep.subr.mxu0 0.0
    %2111 = vmatpush2.msra.mxu0 0.0
    %2112 = vmatprep.subr.mxu0 0.0
    %2113 = vmatpush2.msra.mxu0 0.0
    %2114 = vmatprep.subr.mxu0 0.0
    %2115 = vmatpush2.msra.mxu0 0.0
    %2116 = vmatprep.subr.mxu0 0.0
    %2117 = vmatpush2.msra.mxu0 0.0
    %2118 = vmatprep.subr.mxu0 0.0
    %2119 = vmatpush2.msra.mxu0 0.0
    %2120 = vmatprep.subr.mxu0 0.0
    %2121 = vmatpush2.msra.mxu0 0.0
    %2122 = vmatprep.subr.mxu0 0.0
    %2123 = vmatpush2.msra.mxu0 0.0
    %2124 = vmatprep.subr.mxu0 0.0
    %2125 = vmatpush2.msra.mxu0 0.0
    %2126 = vmatprep.subr.mxu0 0.0
    %2127 = vmatpush2.msra.mxu0 0.0
    %2128 = vmatprep.mubr.f32.mxu0 0.0
    %2129 = vmatmul.mubr.f32.gmra.mxu0 %v2062
    %v2130 = vpop.f32.mrf.mxu0
    %v2131 = vadd.f32 0.0, %v2130
    %v2132 = vpop.f32.mrf.mxu0
    %2133 = vdwg.mxu0
    %v2135 = vrot.slane %v2131, 2
    %v2137 = vadd.f32 %v1322, %v2135
    %v2138 = vtanh.pop %v2137
    %v2139 = vmul.f32 %v2138, 0.5
    %v2140 = vadd.f32 %v2139, 0.5
    %v2142 = vrot.slane %v2047, 6
    %v2144 = vmul.f32 %v2140, %v2142
    %2146 = vrot.lane.b32.xlu0 %v2138, 64
    %v2147 = vpop.permute.xlu0 %2146
    %v2149 = vmul.f32 %v2140, %v2147
    %2151 = vrot.lane.b32.xlu0 %v2149, 32
    %v2152 = vpop.permute.xlu0 %2151
    %v2154 = vadd.f32 %v2144, %v2152
    %v2155 = vtanh.pop %v2154
    %2157 = vrot.lane.b32.xlu0 %v2155, 64
    %v2158 = vpop.permute.xlu0 %2157
    %v2160 = vmul.f32 %v2140, %v2158
    %2162 = vrot.lane.b32.xlu0 %v2160, 32
    %v2163 = vpop.permute.xlu0 %2162
    %2165 = vst.msk [vmem:[#allocation2 + $0x8] sm:$0xc0] %vm1085, %v2163
    %v2166 = vld [vmem:[#allocation2] sm:$0xff]
    %v2167 = vld [vmem:[#allocation2 + $0x8] sm:$0xff]
    %s2168 = scalar_lea.vmem %s3, 32
    %v2169 = vld [vmem:[%s2168] sm:$0xff]
    %v2170 = vld [vmem:[%s2168 + $0x8] sm:$0xff]
    %v2171 = vld [vmem:[%s2168 + $0x10] sm:$0xff]
    %v2172 = vld [vmem:[%s2168 + $0x18] sm:$0xff]
    %s2173 = scalar_lea.vmem %s4, 2
    %v2174 = vld [vmem:[%s2173] sm:$0x1]
    %v2176 = vlaneseq
    %v2177 = vshrl.u32 %v2176, 7
    %v2178 = vsub.s32 0, %v2177
    %v2179 = vrot.slane %v2174, %v2178
    %v2182 = vsel %vm124, %v2166, 0
    %v2185 = vsel %vm124, %v2167, 0
    %2187 = vmatprep.subr.mxu0 0.0
    %2188 = vmatpush1.msra.mxu0 0.0
    %2189 = vmatprep.subr.mxu0 0.0
    %2190 = vmatpush1.msra.mxu0 0.0
    %2191 = vmatprep.subr.mxu0 0.0
    %2192 = vmatpush1.msra.mxu0 0.0
    %2193 = vmatprep.subr.mxu0 0.0
    %2194 = vmatpush1.msra.mxu0 0.0
    %2195 = vmatprep.subr.mxu0 0.0
    %2196 = vmatpush1.msra.mxu0 0.0
    %2197 = vmatprep.subr.mxu0 0.0
    %2198 = vmatpush1.msra.mxu0 0.0
    %2199 = vmatprep.subr.mxu0 0.0
    %2200 = vmatpush1.msra.mxu0 0.0
    %2201 = vmatprep.subr.mxu0 0.0
    %2202 = vmatpush1.msra.mxu0 0.0
    %2203 = vmatprep.subr.mxu0 0.0
    %2204 = vmatpush1.msra.mxu0 0.0
    %2205 = vmatprep.subr.mxu0 0.0
    %2206 = vmatpush1.msra.mxu0 0.0
    %2207 = vmatprep.subr.mxu0 0.0
    %2208 = vmatpush1.msra.mxu0 0.0
    %2209 = vmatprep.subr.mxu0 0.0
    %2210 = vmatpush1.msra.mxu0 0.0
    %2211 = vmatprep.subr.mxu0 0.0
    %2212 = vmatpush1.msra.mxu0 %v2172
    %2213 = vmatprep.subr.mxu0 0.0
    %2214 = vmatpush1.msra.mxu0 %v2171
    %2215 = vmatprep.subr.mxu0 0.0
    %2216 = vmatpush1.msra.mxu0 %v2170
    %2217 = vmatprep.subr.mxu0 0.0
    %2218 = vmatpush1.msra.mxu0 %v2169
    %2219 = vmatprep.subr.mxu0 0.0
    %2220 = vmatpush2.msra.mxu0 0.0
    %2221 = vmatprep.subr.mxu0 0.0
    %2222 = vmatpush2.msra.mxu0 0.0
    %2223 = vmatprep.subr.mxu0 0.0
    %2224 = vmatpush2.msra.mxu0 0.0
    %2225 = vmatprep.subr.mxu0 0.0
    %2226 = vmatpush2.msra.mxu0 0.0
    %2227 = vmatprep.subr.mxu0 0.0
    %2228 = vmatpush2.msra.mxu0 0.0
    %2229 = vmatprep.subr.mxu0 0.0
    %2230 = vmatpush2.msra.mxu0 0.0
    %2231 = vmatprep.subr.mxu0 0.0
    %2232 = vmatpush2.msra.mxu0 0.0
    %2233 = vmatprep.subr.mxu0 0.0
    %2234 = vmatpush2.msra.mxu0 0.0
    %2235 = vmatprep.subr.mxu0 0.0
    %2236 = vmatpush2.msra.mxu0 0.0
    %2237 = vmatprep.subr.mxu0 0.0
    %2238 = vmatpush2.msra.mxu0 0.0
    %2239 = vmatprep.subr.mxu0 0.0
    %2240 = vmatpush2.msra.mxu0 0.0
    %2241 = vmatprep.subr.mxu0 0.0
    %2242 = vmatpush2.msra.mxu0 0.0
    %2243 = vmatprep.subr.mxu0 0.0
    %2244 = vmatpush2.msra.mxu0 0.0
    %2245 = vmatprep.subr.mxu0 0.0
    %2246 = vmatpush2.msra.mxu0 0.0
    %2247 = vmatprep.subr.mxu0 0.0
    %2248 = vmatpush2.msra.mxu0 0.0
    %2249 = vmatprep.subr.mxu0 0.0
    %2250 = vmatpush2.msra.mxu0 0.0
    %2251 = vmatprep.mubr.f32.mxu0 0.0
    %2252 = vmatmul.mubr.f32.gmra.mxu0 %v2182
    %v2253 = vpop.f32.mrf.mxu0
    %v2254 = vadd.f32 %v2179, %v2253
    %v2255 = vpop.f32.mrf.mxu0
    %2256 = vmatprep.mubr.f32.mxu0 0.0
    %2257 = vmatmul.mubr.f32.gmra.mxu0 %v2185
    %v2258 = vpop.f32.mrf.mxu0
    %v2259 = vadd.f32 %v2179, %v2258
    %v2260 = vpop.f32.mrf.mxu0
    %2261 = vdwg.mxu0
    %s2262 = scalar_lea.vmem %s2, 64
    %v2263 = vld [vmem:[%s2262] sm:$0xff]
    %v2264 = vld [vmem:[%s2262 + $0x8] sm:$0xff]
    %v2265 = vld [vmem:[%s2262 + $0x10] sm:$0xff]
    %v2266 = vld [vmem:[%s2262 + $0x18] sm:$0xff]
    %2267 = vmatprep.subr.mxu0 0.0
    %2268 = vmatpush1.msra.mxu0 0.0
    %2269 = vmatprep.subr.mxu0 0.0
    %2270 = vmatpush1.msra.mxu0 0.0
    %2271 = vmatprep.subr.mxu0 0.0
    %2272 = vmatpush1.msra.mxu0 0.0
    %2273 = vmatprep.subr.mxu0 0.0
    %2274 = vmatpush1.msra.mxu0 0.0
    %2275 = vmatprep.subr.mxu0 0.0
    %2276 = vmatpush1.msra.mxu0 0.0
    %2277 = vmatprep.subr.mxu0 0.0
    %2278 = vmatpush1.msra.mxu0 0.0
    %2279 = vmatprep.subr.mxu0 0.0
    %2280 = vmatpush1.msra.mxu0 0.0
    %2281 = vmatprep.subr.mxu0 0.0
    %2282 = vmatpush1.msra.mxu0 0.0
    %2283 = vmatprep.subr.mxu0 0.0
    %2284 = vmatpush1.msra.mxu0 0.0
    %2285 = vmatprep.subr.mxu0 0.0
    %2286 = vmatpush1.msra.mxu0 0.0
    %2287 = vmatprep.subr.mxu0 0.0
    %2288 = vmatpush1.msra.mxu0 0.0
    %2289 = vmatprep.subr.mxu0 0.0
    %2290 = vmatpush1.msra.mxu0 0.0
    %2291 = vmatprep.subr.mxu0 0.0
    %2292 = vmatpush1.msra.mxu0 %v2266
    %2293 = vmatprep.subr.mxu0 0.0
    %2294 = vmatpush1.msra.mxu0 %v2265
    %2295 = vmatprep.subr.mxu0 0.0
    %2296 = vmatpush1.msra.mxu0 %v2264
    %2297 = vmatprep.subr.mxu0 0.0
    %2298 = vmatpush1.msra.mxu0 %v2263
    %2299 = vmatprep.subr.mxu0 0.0
    %2300 = vmatpush2.msra.mxu0 0.0
    %2301 = vmatprep.subr.mxu0 0.0
    %2302 = vmatpush2.msra.mxu0 0.0
    %2303 = vmatprep.subr.mxu0 0.0
    %2304 = vmatpush2.msra.mxu0 0.0
    %2305 = vmatprep.subr.mxu0 0.0
    %2306 = vmatpush2.msra.mxu0 0.0
    %2307 = vmatprep.subr.mxu0 0.0
    %2308 = vmatpush2.msra.mxu0 0.0
    %2309 = vmatprep.subr.mxu0 0.0
    %2310 = vmatpush2.msra.mxu0 0.0
    %2311 = vmatprep.subr.mxu0 0.0
    %2312 = vmatpush2.msra.mxu0 0.0
    %2313 = vmatprep.subr.mxu0 0.0
    %2314 = vmatpush2.msra.mxu0 0.0
    %2315 = vmatprep.subr.mxu0 0.0
    %2316 = vmatpush2.msra.mxu0 0.0
    %2317 = vmatprep.subr.mxu0 0.0
    %2318 = vmatpush2.msra.mxu0 0.0
    %2319 = vmatprep.subr.mxu0 0.0
    %2320 = vmatpush2.msra.mxu0 0.0
    %2321 = vmatprep.subr.mxu0 0.0
    %2322 = vmatpush2.msra.mxu0 0.0
    %2323 = vmatprep.subr.mxu0 0.0
    %2324 = vmatpush2.msra.mxu0 0.0
    %2325 = vmatprep.subr.mxu0 0.0
    %2326 = vmatpush2.msra.mxu0 0.0
    %2327 = vmatprep.subr.mxu0 0.0
    %2328 = vmatpush2.msra.mxu0 0.0
    %2329 = vmatprep.subr.mxu0 0.0
    %2330 = vmatpush2.msra.mxu0 0.0
    %2331 = vmatprep.mubr.f32.mxu0 0.0
    %2332 = vmatmul.mubr.f32.gmra.mxu0 %v126
    %v2333 = vpop.f32.mrf.mxu0
    %v2334 = vadd.f32 0.0, %v2333
    %v2335 = vpop.f32.mrf.mxu0
    %2336 = vdwg.mxu0
    %v2337 = vadd.f32 %v2254, %v2334
    %v2338 = vtanh.pop %v2337
    %v2339 = vmul.f32 %v2338, 0.5
    %v2340 = vadd.f32 %v2339, 0.5
    %v2341 = vmul.f32 %v2340, 0.0
    %2343 = vrot.lane.b32.xlu0 %v2338, 64
    %v2344 = vpop.permute.xlu0 %2343
    %v2346 = vmul.f32 %v2340, %v2344
    %2348 = vrot.lane.b32.xlu0 %v2346, 32
    %v2349 = vpop.permute.xlu0 %2348
    %v2351 = vadd.f32 %v2341, %v2349
    %v2352 = vtanh.pop %v2351
    %2354 = vrot.lane.b32.xlu0 %v2352, 64
    %v2355 = vpop.permute.xlu0 %2354
    %v2357 = vmul.f32 %v2340, %v2355
    %2359 = vrot.lane.b32.xlu0 %v2357, 32
    %v2360 = vpop.permute.xlu0 %2359
    %2362 = vst.msk [vmem:[#allocation2] sm:$0x3] %vm252, %v2360
    %v2363 = vsel %vm124, %v2360, 0
    %2365 = vmatprep.subr.mxu0 0.0
    %2366 = vmatpush1.msra.mxu0 0.0
    %2367 = vmatprep.subr.mxu0 0.0
    %2368 = vmatpush1.msra.mxu0 0.0
    %2369 = vmatprep.subr.mxu0 0.0
    %2370 = vmatpush1.msra.mxu0 0.0
    %2371 = vmatprep.subr.mxu0 0.0
    %2372 = vmatpush1.msra.mxu0 0.0
    %2373 = vmatprep.subr.mxu0 0.0
    %2374 = vmatpush1.msra.mxu0 0.0
    %2375 = vmatprep.subr.mxu0 0.0
    %2376 = vmatpush1.msra.mxu0 0.0
    %2377 = vmatprep.subr.mxu0 0.0
    %2378 = vmatpush1.msra.mxu0 0.0
    %2379 = vmatprep.subr.mxu0 0.0
    %2380 = vmatpush1.msra.mxu0 0.0
    %2381 = vmatprep.subr.mxu0 0.0
    %2382 = vmatpush1.msra.mxu0 0.0
    %2383 = vmatprep.subr.mxu0 0.0
    %2384 = vmatpush1.msra.mxu0 0.0
    %2385 = vmatprep.subr.mxu0 0.0
    %2386 = vmatpush1.msra.mxu0 0.0
    %2387 = vmatprep.subr.mxu0 0.0
    %2388 = vmatpush1.msra.mxu0 0.0
    %2389 = vmatprep.subr.mxu0 0.0
    %2390 = vmatpush1.msra.mxu0 %v2266
    %2391 = vmatprep.subr.mxu0 0.0
    %2392 = vmatpush1.msra.mxu0 %v2265
    %2393 = vmatprep.subr.mxu0 0.0
    %2394 = vmatpush1.msra.mxu0 %v2264
    %2395 = vmatprep.subr.mxu0 0.0
    %2396 = vmatpush1.msra.mxu0 %v2263
    %2397 = vmatprep.subr.mxu0 0.0
    %2398 = vmatpush2.msra.mxu0 0.0
    %2399 = vmatprep.subr.mxu0 0.0
    %2400 = vmatpush2.msra.mxu0 0.0
    %2401 = vmatprep.subr.mxu0 0.0
    %2402 = vmatpush2.msra.mxu0 0.0
    %2403 = vmatprep.subr.mxu0 0.0
    %2404 = vmatpush2.msra.mxu0 0.0
    %2405 = vmatprep.subr.mxu0 0.0
    %2406 = vmatpush2.msra.mxu0 0.0
    %2407 = vmatprep.subr.mxu0 0.0
    %2408 = vmatpush2.msra.mxu0 0.0
    %2409 = vmatprep.subr.mxu0 0.0
    %2410 = vmatpush2.msra.mxu0 0.0
    %2411 = vmatprep.subr.mxu0 0.0
    %2412 = vmatpush2.msra.mxu0 0.0
    %2413 = vmatprep.subr.mxu0 0.0
    %2414 = vmatpush2.msra.mxu0 0.0
    %2415 = vmatprep.subr.mxu0 0.0
    %2416 = vmatpush2.msra.mxu0 0.0
    %2417 = vmatprep.subr.mxu0 0.0
    %2418 = vmatpush2.msra.mxu0 0.0
    %2419 = vmatprep.subr.mxu0 0.0
    %2420 = vmatpush2.msra.mxu0 0.0
    %2421 = vmatprep.subr.mxu0 0.0
    %2422 = vmatpush2.msra.mxu0 0.0
    %2423 = vmatprep.subr.mxu0 0.0
    %2424 = vmatpush2.msra.mxu0 0.0
    %2425 = vmatprep.subr.mxu0 0.0
    %2426 = vmatpush2.msra.mxu0 0.0
    %2427 = vmatprep.subr.mxu0 0.0
    %2428 = vmatpush2.msra.mxu0 0.0
    %2429 = vmatprep.mubr.f32.mxu0 0.0
    %2430 = vmatmul.mubr.f32.gmra.mxu0 %v2363
    %v2431 = vpop.f32.mrf.mxu0
    %v2432 = vadd.f32 0.0, %v2431
    %v2433 = vpop.f32.mrf.mxu0
    %2434 = vdwg.mxu0
    %v2436 = vrot.slane %v2432, 6
    %v2438 = vadd.f32 %v2254, %v2436
    %v2439 = vtanh.pop %v2438
    %v2440 = vmul.f32 %v2439, 0.5
    %v2441 = vadd.f32 %v2440, 0.5
    %v2443 = vrot.slane %v2351, 6
    %v2445 = vmul.f32 %v2441, %v2443
    %2447 = vrot.lane.b32.xlu0 %v2439, 64
    %v2448 = vpop.permute.xlu0 %2447
    %v2450 = vmul.f32 %v2441, %v2448
    %2452 = vrot.lane.b32.xlu0 %v2450, 32
    %v2453 = vpop.permute.xlu0 %2452
    %v2455 = vadd.f32 %v2445, %v2453
    %v2456 = vtanh.pop %v2455
    %2458 = vrot.lane.b32.xlu0 %v2456, 64
    %v2459 = vpop.permute.xlu0 %2458
    %v2461 = vmul.f32 %v2441, %v2459
    %2463 = vrot.lane.b32.xlu0 %v2461, 32
    %v2464 = vpop.permute.xlu0 %2463
    %2466 = vst.msk [vmem:[#allocation2] sm:$0xc] %vm525, %v2464
    %v2467 = vrot.slane %v2461, 2
    %2468 = vrot.lane.b32.xlu0 %v2467, 32
    %v2469 = vpop.permute.xlu0 %2468
    %v2470 = vsel %vm124, %v2469, 0
    %2472 = vmatprep.subr.mxu0 0.0
    %2473 = vmatpush1.msra.mxu0 0.0
    %2474 = vmatprep.subr.mxu0 0.0
    %2475 = vmatpush1.msra.mxu0 0.0
    %2476 = vmatprep.subr.mxu0 0.0
    %2477 = vmatpush1.msra.mxu0 0.0
    %2478 = vmatprep.subr.mxu0 0.0
    %2479 = vmatpush1.msra.mxu0 0.0
    %2480 = vmatprep.subr.mxu0 0.0
    %2481 = vmatpush1.msra.mxu0 0.0
    %2482 = vmatprep.subr.mxu0 0.0
    %2483 = vmatpush1.msra.mxu0 0.0
    %2484 = vmatprep.subr.mxu0 0.0
    %2485 = vmatpush1.msra.mxu0 0.0
    %2486 = vmatprep.subr.mxu0 0.0
    %2487 = vmatpush1.msra.mxu0 0.0
    %2488 = vmatprep.subr.mxu0 0.0
    %2489 = vmatpush1.msra.mxu0 0.0
    %2490 = vmatprep.subr.mxu0 0.0
    %2491 = vmatpush1.msra.mxu0 0.0
    %2492 = vmatprep.subr.mxu0 0.0
    %2493 = vmatpush1.msra.mxu0 0.0
    %2494 = vmatprep.subr.mxu0 0.0
    %2495 = vmatpush1.msra.mxu0 0.0
    %2496 = vmatprep.subr.mxu0 0.0
    %2497 = vmatpush1.msra.mxu0 %v2266
    %2498 = vmatprep.subr.mxu0 0.0
    %2499 = vmatpush1.msra.mxu0 %v2265
    %2500 = vmatprep.subr.mxu0 0.0
    %2501 = vmatpush1.msra.mxu0 %v2264
    %2502 = vmatprep.subr.mxu0 0.0
    %2503 = vmatpush1.msra.mxu0 %v2263
    %2504 = vmatprep.subr.mxu0 0.0
    %2505 = vmatpush2.msra.mxu0 0.0
    %2506 = vmatprep.subr.mxu0 0.0
    %2507 = vmatpush2.msra.mxu0 0.0
    %2508 = vmatprep.subr.mxu0 0.0
    %2509 = vmatpush2.msra.mxu0 0.0
    %2510 = vmatprep.subr.mxu0 0.0
    %2511 = vmatpush2.msra.mxu0 0.0
    %2512 = vmatprep.subr.mxu0 0.0
    %2513 = vmatpush2.msra.mxu0 0.0
    %2514 = vmatprep.subr.mxu0 0.0
    %2515 = vmatpush2.msra.mxu0 0.0
    %2516 = vmatprep.subr.mxu0 0.0
    %2517 = vmatpush2.msra.mxu0 0.0
    %2518 = vmatprep.subr.mxu0 0.0
    %2519 = vmatpush2.msra.mxu0 0.0
    %2520 = vmatprep.subr.mxu0 0.0
    %2521 = vmatpush2.msra.mxu0 0.0
    %2522 = vmatprep.subr.mxu0 0.0
    %2523 = vmatpush2.msra.mxu0 0.0
    %2524 = vmatprep.subr.mxu0 0.0
    %2525 = vmatpush2.msra.mxu0 0.0
    %2526 = vmatprep.subr.mxu0 0.0
    %2527 = vmatpush2.msra.mxu0 0.0
    %2528 = vmatprep.subr.mxu0 0.0
    %2529 = vmatpush2.msra.mxu0 0.0
    %2530 = vmatprep.subr.mxu0 0.0
    %2531 = vmatpush2.msra.mxu0 0.0
    %2532 = vmatprep.subr.mxu0 0.0
    %2533 = vmatpush2.msra.mxu0 0.0
    %2534 = vmatprep.subr.mxu0 0.0
    %2535 = vmatpush2.msra.mxu0 0.0
    %2536 = vmatprep.mubr.f32.mxu0 0.0
    %2537 = vmatmul.mubr.f32.gmra.mxu0 %v2470
    %v2538 = vpop.f32.mrf.mxu0
    %v2539 = vadd.f32 0.0, %v2538
    %v2540 = vpop.f32.mrf.mxu0
    %2541 = vdwg.mxu0
    %v2543 = vrot.slane %v2539, 4
    %v2545 = vadd.f32 %v2254, %v2543
    %v2546 = vtanh.pop %v2545
    %v2547 = vmul.f32 %v2546, 0.5
    %v2548 = vadd.f32 %v2547, 0.5
    %v2550 = vrot.slane %v2455, 6
    %v2552 = vmul.f32 %v2548, %v2550
    %2554 = vrot.lane.b32.xlu0 %v2546, 64
    %v2555 = vpop.permute.xlu0 %2554
    %v2557 = vmul.f32 %v2548, %v2555
    %2559 = vrot.lane.b32.xlu0 %v2557, 32
    %v2560 = vpop.permute.xlu0 %2559
    %v2562 = vadd.f32 %v2552, %v2560
    %v2563 = vtanh.pop %v2562
    %2565 = vrot.lane.b32.xlu0 %v2563, 64
    %v2566 = vpop.permute.xlu0 %2565
    %v2568 = vmul.f32 %v2548, %v2566
    %2570 = vrot.lane.b32.xlu0 %v2568, 32
    %v2571 = vpop.permute.xlu0 %2570
    %2573 = vst.msk [vmem:[#allocation2] sm:$0x30] %vm805, %v2571
    %v2574 = vrot.slane %v2568, 4
    %2575 = vrot.lane.b32.xlu0 %v2574, 32
    %v2576 = vpop.permute.xlu0 %2575
    %v2577 = vsel %vm124, %v2576, 0
    %2579 = vmatprep.subr.mxu0 0.0
    %2580 = vmatpush1.msra.mxu0 0.0
    %2581 = vmatprep.subr.mxu0 0.0
    %2582 = vmatpush1.msra.mxu0 0.0
    %2583 = vmatprep.subr.mxu0 0.0
    %2584 = vmatpush1.msra.mxu0 0.0
    %2585 = vmatprep.subr.mxu0 0.0
    %2586 = vmatpush1.msra.mxu0 0.0
    %2587 = vmatprep.subr.mxu0 0.0
    %2588 = vmatpush1.msra.mxu0 0.0
    %2589 = vmatprep.subr.mxu0 0.0
    %2590 = vmatpush1.msra.mxu0 0.0
    %2591 = vmatprep.subr.mxu0 0.0
    %2592 = vmatpush1.msra.mxu0 0.0
    %2593 = vmatprep.subr.mxu0 0.0
    %2594 = vmatpush1.msra.mxu0 0.0
    %2595 = vmatprep.subr.mxu0 0.0
    %2596 = vmatpush1.msra.mxu0 0.0
    %2597 = vmatprep.subr.mxu0 0.0
    %2598 = vmatpush1.msra.mxu0 0.0
    %2599 = vmatprep.subr.mxu0 0.0
    %2600 = vmatpush1.msra.mxu0 0.0
    %2601 = vmatprep.subr.mxu0 0.0
    %2602 = vmatpush1.msra.mxu0 0.0
    %2603 = vmatprep.subr.mxu0 0.0
    %2604 = vmatpush1.msra.mxu0 %v2266
    %2605 = vmatprep.subr.mxu0 0.0
    %2606 = vmatpush1.msra.mxu0 %v2265
    %2607 = vmatprep.subr.mxu0 0.0
    %2608 = vmatpush1.msra.mxu0 %v2264
    %2609 = vmatprep.subr.mxu0 0.0
    %2610 = vmatpush1.msra.mxu0 %v2263
    %2611 = vmatprep.subr.mxu0 0.0
    %2612 = vmatpush2.msra.mxu0 0.0
    %2613 = vmatprep.subr.mxu0 0.0
    %2614 = vmatpush2.msra.mxu0 0.0
    %2615 = vmatprep.subr.mxu0 0.0
    %2616 = vmatpush2.msra.mxu0 0.0
    %2617 = vmatprep.subr.mxu0 0.0
    %2618 = vmatpush2.msra.mxu0 0.0
    %2619 = vmatprep.subr.mxu0 0.0
    %2620 = vmatpush2.msra.mxu0 0.0
    %2621 = vmatprep.subr.mxu0 0.0
    %2622 = vmatpush2.msra.mxu0 0.0
    %2623 = vmatprep.subr.mxu0 0.0
    %2624 = vmatpush2.msra.mxu0 0.0
    %2625 = vmatprep.subr.mxu0 0.0
    %2626 = vmatpush2.msra.mxu0 0.0
    %2627 = vmatprep.subr.mxu0 0.0
    %2628 = vmatpush2.msra.mxu0 0.0
    %2629 = vmatprep.subr.mxu0 0.0
    %2630 = vmatpush2.msra.mxu0 0.0
    %2631 = vmatprep.subr.mxu0 0.0
    %2632 = vmatpush2.msra.mxu0 0.0
    %2633 = vmatprep.subr.mxu0 0.0
    %2634 = vmatpush2.msra.mxu0 0.0
    %2635 = vmatprep.subr.mxu0 0.0
    %2636 = vmatpush2.msra.mxu0 0.0
    %2637 = vmatprep.subr.mxu0 0.0
    %2638 = vmatpush2.msra.mxu0 0.0
    %2639 = vmatprep.subr.mxu0 0.0
    %2640 = vmatpush2.msra.mxu0 0.0
    %2641 = vmatprep.subr.mxu0 0.0
    %2642 = vmatpush2.msra.mxu0 0.0
    %2643 = vmatprep.mubr.f32.mxu0 0.0
    %2644 = vmatmul.mubr.f32.gmra.mxu0 %v2577
    %v2645 = vpop.f32.mrf.mxu0
    %v2646 = vadd.f32 0.0, %v2645
    %v2647 = vpop.f32.mrf.mxu0
    %2648 = vdwg.mxu0
    %v2650 = vrot.slane %v2646, 2
    %v2652 = vadd.f32 %v2254, %v2650
    %v2653 = vtanh.pop %v2652
    %v2654 = vmul.f32 %v2653, 0.5
    %v2655 = vadd.f32 %v2654, 0.5
    %v2657 = vrot.slane %v2562, 6
    %v2659 = vmul.f32 %v2655, %v2657
    %2661 = vrot.lane.b32.xlu0 %v2653, 64
    %v2662 = vpop.permute.xlu0 %2661
    %v2664 = vmul.f32 %v2655, %v2662
    %2666 = vrot.lane.b32.xlu0 %v2664, 32
    %v2667 = vpop.permute.xlu0 %2666
    %v2669 = vadd.f32 %v2659, %v2667
    %v2670 = vtanh.pop %v2669
    %2672 = vrot.lane.b32.xlu0 %v2670, 64
    %v2673 = vpop.permute.xlu0 %2672
    %v2675 = vmul.f32 %v2655, %v2673
    %2677 = vrot.lane.b32.xlu0 %v2675, 32
    %v2678 = vpop.permute.xlu0 %2677
    %2680 = vst.msk [vmem:[#allocation2] sm:$0xc0] %vm1085, %v2678
    %v2681 = vrot.slane %v2675, 6
    %2682 = vrot.lane.b32.xlu0 %v2681, 32
    %v2683 = vpop.permute.xlu0 %2682
    %v2684 = vsel %vm124, %v2683, 0
    %2686 = vmatprep.subr.mxu0 0.0
    %2687 = vmatpush1.msra.mxu0 0.0
    %2688 = vmatprep.subr.mxu0 0.0
    %2689 = vmatpush1.msra.mxu0 0.0
    %2690 = vmatprep.subr.mxu0 0.0
    %2691 = vmatpush1.msra.mxu0 0.0
    %2692 = vmatprep.subr.mxu0 0.0
    %2693 = vmatpush1.msra.mxu0 0.0
    %2694 = vmatprep.subr.mxu0 0.0
    %2695 = vmatpush1.msra.mxu0 0.0
    %2696 = vmatprep.subr.mxu0 0.0
    %2697 = vmatpush1.msra.mxu0 0.0
    %2698 = vmatprep.subr.mxu0 0.0
    %2699 = vmatpush1.msra.mxu0 0.0
    %2700 = vmatprep.subr.mxu0 0.0
    %2701 = vmatpush1.msra.mxu0 0.0
    %2702 = vmatprep.subr.mxu0 0.0
    %2703 = vmatpush1.msra.mxu0 0.0
    %2704 = vmatprep.subr.mxu0 0.0
    %2705 = vmatpush1.msra.mxu0 0.0
    %2706 = vmatprep.subr.mxu0 0.0
    %2707 = vmatpush1.msra.mxu0 0.0
    %2708 = vmatprep.subr.mxu0 0.0
    %2709 = vmatpush1.msra.mxu0 0.0
    %2710 = vmatprep.subr.mxu0 0.0
    %2711 = vmatpush1.msra.mxu0 %v2266
    %2712 = vmatprep.subr.mxu0 0.0
    %2713 = vmatpush1.msra.mxu0 %v2265
    %2714 = vmatprep.subr.mxu0 0.0
    %2715 = vmatpush1.msra.mxu0 %v2264
    %2716 = vmatprep.subr.mxu0 0.0
    %2717 = vmatpush1.msra.mxu0 %v2263
    %2718 = vmatprep.subr.mxu0 0.0
    %2719 = vmatpush2.msra.mxu0 0.0
    %2720 = vmatprep.subr.mxu0 0.0
    %2721 = vmatpush2.msra.mxu0 0.0
    %2722 = vmatprep.subr.mxu0 0.0
    %2723 = vmatpush2.msra.mxu0 0.0
    %2724 = vmatprep.subr.mxu0 0.0
    %2725 = vmatpush2.msra.mxu0 0.0
    %2726 = vmatprep.subr.mxu0 0.0
    %2727 = vmatpush2.msra.mxu0 0.0
    %2728 = vmatprep.subr.mxu0 0.0
    %2729 = vmatpush2.msra.mxu0 0.0
    %2730 = vmatprep.subr.mxu0 0.0
    %2731 = vmatpush2.msra.mxu0 0.0
    %2732 = vmatprep.subr.mxu0 0.0
    %2733 = vmatpush2.msra.mxu0 0.0
    %2734 = vmatprep.subr.mxu0 0.0
    %2735 = vmatpush2.msra.mxu0 0.0
    %2736 = vmatprep.subr.mxu0 0.0
    %2737 = vmatpush2.msra.mxu0 0.0
    %2738 = vmatprep.subr.mxu0 0.0
    %2739 = vmatpush2.msra.mxu0 0.0
    %2740 = vmatprep.subr.mxu0 0.0
    %2741 = vmatpush2.msra.mxu0 0.0
    %2742 = vmatprep.subr.mxu0 0.0
    %2743 = vmatpush2.msra.mxu0 0.0
    %2744 = vmatprep.subr.mxu0 0.0
    %2745 = vmatpush2.msra.mxu0 0.0
    %2746 = vmatprep.subr.mxu0 0.0
    %2747 = vmatpush2.msra.mxu0 0.0
    %2748 = vmatprep.subr.mxu0 0.0
    %2749 = vmatpush2.msra.mxu0 0.0
    %2750 = vmatprep.mubr.f32.mxu0 0.0
    %2751 = vmatmul.mubr.f32.gmra.mxu0 %v2684
    %v2752 = vpop.f32.mrf.mxu0
    %v2753 = vadd.f32 0.0, %v2752
    %v2754 = vpop.f32.mrf.mxu0
    %2755 = vdwg.mxu0
    %v2756 = vadd.f32 %v2259, %v2753
    %v2757 = vtanh.pop %v2756
    %v2758 = vmul.f32 %v2757, 0.5
    %v2759 = vadd.f32 %v2758, 0.5
    %v2761 = vrot.slane %v2669, 6
    %v2763 = vmul.f32 %v2759, %v2761
    %2765 = vrot.lane.b32.xlu0 %v2757, 64
    %v2766 = vpop.permute.xlu0 %2765
    %v2768 = vmul.f32 %v2759, %v2766
    %2770 = vrot.lane.b32.xlu0 %v2768, 32
    %v2771 = vpop.permute.xlu0 %2770
    %v2773 = vadd.f32 %v2763, %v2771
    %v2774 = vtanh.pop %v2773
    %2776 = vrot.lane.b32.xlu0 %v2774, 64
    %v2777 = vpop.permute.xlu0 %2776
    %v2779 = vmul.f32 %v2759, %v2777
    %2781 = vrot.lane.b32.xlu0 %v2779, 32
    %v2782 = vpop.permute.xlu0 %2781
    %2784 = vst.msk [vmem:[#allocation2 + $0x8] sm:$0x3] %vm252, %v2782
    %v2785 = vsel %vm124, %v2782, 0
    %2787 = vmatprep.subr.mxu0 0.0
    %2788 = vmatpush1.msra.mxu0 0.0
    %2789 = vmatprep.subr.mxu0 0.0
    %2790 = vmatpush1.msra.mxu0 0.0
    %2791 = vmatprep.subr.mxu0 0.0
    %2792 = vmatpush1.msra.mxu0 0.0
    %2793 = vmatprep.subr.mxu0 0.0
    %2794 = vmatpush1.msra.mxu0 0.0
    %2795 = vmatprep.subr.mxu0 0.0
    %2796 = vmatpush1.msra.mxu0 0.0
    %2797 = vmatprep.subr.mxu0 0.0
    %2798 = vmatpush1.msra.mxu0 0.0
    %2799 = vmatprep.subr.mxu0 0.0
    %2800 = vmatpush1.msra.mxu0 0.0
    %2801 = vmatprep.subr.mxu0 0.0
    %2802 = vmatpush1.msra.mxu0 0.0
    %2803 = vmatprep.subr.mxu0 0.0
    %2804 = vmatpush1.msra.mxu0 0.0
    %2805 = vmatprep.subr.mxu0 0.0
    %2806 = vmatpush1.msra.mxu0 0.0
    %2807 = vmatprep.subr.mxu0 0.0
    %2808 = vmatpush1.msra.mxu0 0.0
    %2809 = vmatprep.subr.mxu0 0.0
    %2810 = vmatpush1.msra.mxu0 0.0
    %2811 = vmatprep.subr.mxu0 0.0
    %2812 = vmatpush1.msra.mxu0 %v2266
    %2813 = vmatprep.subr.mxu0 0.0
    %2814 = vmatpush1.msra.mxu0 %v2265
    %2815 = vmatprep.subr.mxu0 0.0
    %2816 = vmatpush1.msra.mxu0 %v2264
    %2817 = vmatprep.subr.mxu0 0.0
    %2818 = vmatpush1.msra.mxu0 %v2263
    %2819 = vmatprep.subr.mxu0 0.0
    %2820 = vmatpush2.msra.mxu0 0.0
    %2821 = vmatprep.subr.mxu0 0.0
    %2822 = vmatpush2.msra.mxu0 0.0
    %2823 = vmatprep.subr.mxu0 0.0
    %2824 = vmatpush2.msra.mxu0 0.0
    %2825 = vmatprep.subr.mxu0 0.0
    %2826 = vmatpush2.msra.mxu0 0.0
    %2827 = vmatprep.subr.mxu0 0.0
    %2828 = vmatpush2.msra.mxu0 0.0
    %2829 = vmatprep.subr.mxu0 0.0
    %2830 = vmatpush2.msra.mxu0 0.0
    %2831 = vmatprep.subr.mxu0 0.0
    %2832 = vmatpush2.msra.mxu0 0.0
    %2833 = vmatprep.subr.mxu0 0.0
    %2834 = vmatpush2.msra.mxu0 0.0
    %2835 = vmatprep.subr.mxu0 0.0
    %2836 = vmatpush2.msra.mxu0 0.0
    %2837 = vmatprep.subr.mxu0 0.0
    %2838 = vmatpush2.msra.mxu0 0.0
    %2839 = vmatprep.subr.mxu0 0.0
    %2840 = vmatpush2.msra.mxu0 0.0
    %2841 = vmatprep.subr.mxu0 0.0
    %2842 = vmatpush2.msra.mxu0 0.0
    %2843 = vmatprep.subr.mxu0 0.0
    %2844 = vmatpush2.msra.mxu0 0.0
    %2845 = vmatprep.subr.mxu0 0.0
    %2846 = vmatpush2.msra.mxu0 0.0
    %2847 = vmatprep.subr.mxu0 0.0
    %2848 = vmatpush2.msra.mxu0 0.0
    %2849 = vmatprep.subr.mxu0 0.0
    %2850 = vmatpush2.msra.mxu0 0.0
    %2851 = vmatprep.mubr.f32.mxu0 0.0
    %2852 = vmatmul.mubr.f32.gmra.mxu0 %v2785
    %v2853 = vpop.f32.mrf.mxu0
    %v2854 = vadd.f32 0.0, %v2853
    %v2855 = vpop.f32.mrf.mxu0
    %2856 = vdwg.mxu0
    %v2858 = vrot.slane %v2854, 6
    %v2860 = vadd.f32 %v2259, %v2858
    %v2861 = vtanh.pop %v2860
    %v2862 = vmul.f32 %v2861, 0.5
    %v2863 = vadd.f32 %v2862, 0.5
    %v2865 = vrot.slane %v2773, 6
    %v2867 = vmul.f32 %v2863, %v2865
    %2869 = vrot.lane.b32.xlu0 %v2861, 64
    %v2870 = vpop.permute.xlu0 %2869
    %v2872 = vmul.f32 %v2863, %v2870
    %2874 = vrot.lane.b32.xlu0 %v2872, 32
    %v2875 = vpop.permute.xlu0 %2874
    %v2877 = vadd.f32 %v2867, %v2875
    %v2878 = vtanh.pop %v2877
    %2880 = vrot.lane.b32.xlu0 %v2878, 64
    %v2881 = vpop.permute.xlu0 %2880
    %v2883 = vmul.f32 %v2863, %v2881
    %2885 = vrot.lane.b32.xlu0 %v2883, 32
    %v2886 = vpop.permute.xlu0 %2885
    %2888 = vst.msk [vmem:[#allocation2 + $0x8] sm:$0xc] %vm525, %v2886
    %v2889 = vrot.slane %v2883, 2
    %2890 = vrot.lane.b32.xlu0 %v2889, 32
    %v2891 = vpop.permute.xlu0 %2890
    %v2892 = vsel %vm124, %v2891, 0
    %2894 = vmatprep.subr.mxu0 0.0
    %2895 = vmatpush1.msra.mxu0 0.0
    %2896 = vmatprep.subr.mxu0 0.0
    %2897 = vmatpush1.msra.mxu0 0.0
    %2898 = vmatprep.subr.mxu0 0.0
    %2899 = vmatpush1.msra.mxu0 0.0
    %2900 = vmatprep.subr.mxu0 0.0
    %2901 = vmatpush1.msra.mxu0 0.0
    %2902 = vmatprep.subr.mxu0 0.0
    %2903 = vmatpush1.msra.mxu0 0.0
    %2904 = vmatprep.subr.mxu0 0.0
    %2905 = vmatpush1.msra.mxu0 0.0
    %2906 = vmatprep.subr.mxu0 0.0
    %2907 = vmatpush1.msra.mxu0 0.0
    %2908 = vmatprep.subr.mxu0 0.0
    %2909 = vmatpush1.msra.mxu0 0.0
    %2910 = vmatprep.subr.mxu0 0.0
    %2911 = vmatpush1.msra.mxu0 0.0
    %2912 = vmatprep.subr.mxu0 0.0
    %2913 = vmatpush1.msra.mxu0 0.0
    %2914 = vmatprep.subr.mxu0 0.0
    %2915 = vmatpush1.msra.mxu0 0.0
    %2916 = vmatprep.subr.mxu0 0.0
    %2917 = vmatpush1.msra.mxu0 0.0
    %2918 = vmatprep.subr.mxu0 0.0
    %2919 = vmatpush1.msra.mxu0 %v2266
    %2920 = vmatprep.subr.mxu0 0.0
    %2921 = vmatpush1.msra.mxu0 %v2265
    %2922 = vmatprep.subr.mxu0 0.0
    %2923 = vmatpush1.msra.mxu0 %v2264
    %2924 = vmatprep.subr.mxu0 0.0
    %2925 = vmatpush1.msra.mxu0 %v2263
    %2926 = vmatprep.subr.mxu0 0.0
    %2927 = vmatpush2.msra.mxu0 0.0
    %2928 = vmatprep.subr.mxu0 0.0
    %2929 = vmatpush2.msra.mxu0 0.0
    %2930 = vmatprep.subr.mxu0 0.0
    %2931 = vmatpush2.msra.mxu0 0.0
    %2932 = vmatprep.subr.mxu0 0.0
    %2933 = vmatpush2.msra.mxu0 0.0
    %2934 = vmatprep.subr.mxu0 0.0
    %2935 = vmatpush2.msra.mxu0 0.0
    %2936 = vmatprep.subr.mxu0 0.0
    %2937 = vmatpush2.msra.mxu0 0.0
    %2938 = vmatprep.subr.mxu0 0.0
    %2939 = vmatpush2.msra.mxu0 0.0
    %2940 = vmatprep.subr.mxu0 0.0
    %2941 = vmatpush2.msra.mxu0 0.0
    %2942 = vmatprep.subr.mxu0 0.0
    %2943 = vmatpush2.msra.mxu0 0.0
    %2944 = vmatprep.subr.mxu0 0.0
    %2945 = vmatpush2.msra.mxu0 0.0
    %2946 = vmatprep.subr.mxu0 0.0
    %2947 = vmatpush2.msra.mxu0 0.0
    %2948 = vmatprep.subr.mxu0 0.0
    %2949 = vmatpush2.msra.mxu0 0.0
    %2950 = vmatprep.subr.mxu0 0.0
    %2951 = vmatpush2.msra.mxu0 0.0
    %2952 = vmatprep.subr.mxu0 0.0
    %2953 = vmatpush2.msra.mxu0 0.0
    %2954 = vmatprep.subr.mxu0 0.0
    %2955 = vmatpush2.msra.mxu0 0.0
    %2956 = vmatprep.subr.mxu0 0.0
    %2957 = vmatpush2.msra.mxu0 0.0
    %2958 = vmatprep.mubr.f32.mxu0 0.0
    %2959 = vmatmul.mubr.f32.gmra.mxu0 %v2892
    %v2960 = vpop.f32.mrf.mxu0
    %v2961 = vadd.f32 0.0, %v2960
    %v2962 = vpop.f32.mrf.mxu0
    %2963 = vdwg.mxu0
    %v2965 = vrot.slane %v2961, 4
    %v2967 = vadd.f32 %v2259, %v2965
    %v2968 = vtanh.pop %v2967
    %v2969 = vmul.f32 %v2968, 0.5
    %v2970 = vadd.f32 %v2969, 0.5
    %v2972 = vrot.slane %v2877, 6
    %v2974 = vmul.f32 %v2970, %v2972
    %2976 = vrot.lane.b32.xlu0 %v2968, 64
    %v2977 = vpop.permute.xlu0 %2976
    %v2979 = vmul.f32 %v2970, %v2977
    %2981 = vrot.lane.b32.xlu0 %v2979, 32
    %v2982 = vpop.permute.xlu0 %2981
    %v2984 = vadd.f32 %v2974, %v2982
    %v2985 = vtanh.pop %v2984
    %2987 = vrot.lane.b32.xlu0 %v2985, 64
    %v2988 = vpop.permute.xlu0 %2987
    %v2990 = vmul.f32 %v2970, %v2988
    %2992 = vrot.lane.b32.xlu0 %v2990, 32
    %v2993 = vpop.permute.xlu0 %2992
    %2995 = vst.msk [vmem:[#allocation2 + $0x8] sm:$0x30] %vm805, %v2993
    %v2996 = vrot.slane %v2990, 4
    %2997 = vrot.lane.b32.xlu0 %v2996, 32
    %v2998 = vpop.permute.xlu0 %2997
    %v2999 = vsel %vm124, %v2998, 0
    %3001 = vmatprep.subr.mxu0 0.0
    %3002 = vmatpush1.msra.mxu0 0.0
    %3003 = vmatprep.subr.mxu0 0.0
    %3004 = vmatpush1.msra.mxu0 0.0
    %3005 = vmatprep.subr.mxu0 0.0
    %3006 = vmatpush1.msra.mxu0 0.0
    %3007 = vmatprep.subr.mxu0 0.0
    %3008 = vmatpush1.msra.mxu0 0.0
    %3009 = vmatprep.subr.mxu0 0.0
    %3010 = vmatpush1.msra.mxu0 0.0
    %3011 = vmatprep.subr.mxu0 0.0
    %3012 = vmatpush1.msra.mxu0 0.0
    %3013 = vmatprep.subr.mxu0 0.0
    %3014 = vmatpush1.msra.mxu0 0.0
    %3015 = vmatprep.subr.mxu0 0.0
    %3016 = vmatpush1.msra.mxu0 0.0
    %3017 = vmatprep.subr.mxu0 0.0
    %3018 = vmatpush1.msra.mxu0 0.0
    %3019 = vmatprep.subr.mxu0 0.0
    %3020 = vmatpush1.msra.mxu0 0.0
    %3021 = vmatprep.subr.mxu0 0.0
    %3022 = vmatpush1.msra.mxu0 0.0
    %3023 = vmatprep.subr.mxu0 0.0
    %3024 = vmatpush1.msra.mxu0 0.0
    %3025 = vmatprep.subr.mxu0 0.0
    %3026 = vmatpush1.msra.mxu0 %v2266
    %3027 = vmatprep.subr.mxu0 0.0
    %3028 = vmatpush1.msra.mxu0 %v2265
    %3029 = vmatprep.subr.mxu0 0.0
    %3030 = vmatpush1.msra.mxu0 %v2264
    %3031 = vmatprep.subr.mxu0 0.0
    %3032 = vmatpush1.msra.mxu0 %v2263
    %3033 = vmatprep.subr.mxu0 0.0
    %3034 = vmatpush2.msra.mxu0 0.0
    %3035 = vmatprep.subr.mxu0 0.0
    %3036 = vmatpush2.msra.mxu0 0.0
    %3037 = vmatprep.subr.mxu0 0.0
    %3038 = vmatpush2.msra.mxu0 0.0
    %3039 = vmatprep.subr.mxu0 0.0
    %3040 = vmatpush2.msra.mxu0 0.0
    %3041 = vmatprep.subr.mxu0 0.0
    %3042 = vmatpush2.msra.mxu0 0.0
    %3043 = vmatprep.subr.mxu0 0.0
    %3044 = vmatpush2.msra.mxu0 0.0
    %3045 = vmatprep.subr.mxu0 0.0
    %3046 = vmatpush2.msra.mxu0 0.0
    %3047 = vmatprep.subr.mxu0 0.0
    %3048 = vmatpush2.msra.mxu0 0.0
    %3049 = vmatprep.subr.mxu0 0.0
    %3050 = vmatpush2.msra.mxu0 0.0
    %3051 = vmatprep.subr.mxu0 0.0
    %3052 = vmatpush2.msra.mxu0 0.0
    %3053 = vmatprep.subr.mxu0 0.0
    %3054 = vmatpush2.msra.mxu0 0.0
    %3055 = vmatprep.subr.mxu0 0.0
    %3056 = vmatpush2.msra.mxu0 0.0
    %3057 = vmatprep.subr.mxu0 0.0
    %3058 = vmatpush2.msra.mxu0 0.0
    %3059 = vmatprep.subr.mxu0 0.0
    %3060 = vmatpush2.msra.mxu0 0.0
    %3061 = vmatprep.subr.mxu0 0.0
    %3062 = vmatpush2.msra.mxu0 0.0
    %3063 = vmatprep.subr.mxu0 0.0
    %3064 = vmatpush2.msra.mxu0 0.0
    %3065 = vmatprep.mubr.f32.mxu0 0.0
    %3066 = vmatmul.mubr.f32.gmra.mxu0 %v2999
    %v3067 = vpop.f32.mrf.mxu0
    %v3068 = vadd.f32 0.0, %v3067
    %v3069 = vpop.f32.mrf.mxu0
    %3070 = vdwg.mxu0
    %v3072 = vrot.slane %v3068, 2
    %v3074 = vadd.f32 %v2259, %v3072
    %v3075 = vtanh.pop %v3074
    %v3076 = vmul.f32 %v3075, 0.5
    %v3077 = vadd.f32 %v3076, 0.5
    %v3079 = vrot.slane %v2984, 6
    %v3081 = vmul.f32 %v3077, %v3079
    %3083 = vrot.lane.b32.xlu0 %v3075, 64
    %v3084 = vpop.permute.xlu0 %3083
    %v3086 = vmul.f32 %v3077, %v3084
    %3088 = vrot.lane.b32.xlu0 %v3086, 32
    %v3089 = vpop.permute.xlu0 %3088
    %v3091 = vadd.f32 %v3081, %v3089
    %v3092 = vtanh.pop %v3091
    %3094 = vrot.lane.b32.xlu0 %v3092, 64
    %v3095 = vpop.permute.xlu0 %3094
    %v3097 = vmul.f32 %v3077, %v3095
    %3099 = vrot.lane.b32.xlu0 %v3097, 32
    %v3100 = vpop.permute.xlu0 %3099
    %3102 = vst.msk [vmem:[#allocation2 + $0x8] sm:$0xc0] %vm1085, %v3100
    %v3103 = vld [vmem:[#allocation2] sm:$0xff]
    %v3104 = vld [vmem:[#allocation2 + $0x8] sm:$0xff]
    %s3105 = scalar_lea.vmem %s3, 64
    %v3106 = vld [vmem:[%s3105] sm:$0xff]
    %v3107 = vld [vmem:[%s3105 + $0x8] sm:$0xff]
    %v3108 = vld [vmem:[%s3105 + $0x10] sm:$0xff]
    %v3109 = vld [vmem:[%s3105 + $0x18] sm:$0xff]
    %s3110 = scalar_lea.vmem %s4, 3
    %v3111 = vld [vmem:[%s3110] sm:$0x1]
    %v3113 = vlaneseq
    %v3114 = vshrl.u32 %v3113, 7
    %v3115 = vsub.s32 0, %v3114
    %v3116 = vrot.slane %v3111, %v3115
    %v3119 = vsel %vm124, %v3103, 0
    %v3122 = vsel %vm124, %v3104, 0
    %3124 = vmatprep.subr.mxu0 0.0
    %3125 = vmatpush1.msra.mxu0 0.0
    %3126 = vmatprep.subr.mxu0 0.0
    %3127 = vmatpush1.msra.mxu0 0.0
    %3128 = vmatprep.subr.mxu0 0.0
    %3129 = vmatpush1.msra.mxu0 0.0
    %3130 = vmatprep.subr.mxu0 0.0
    %3131 = vmatpush1.msra.mxu0 0.0
    %3132 = vmatprep.subr.mxu0 0.0
    %3133 = vmatpush1.msra.mxu0 0.0
    %3134 = vmatprep.subr.mxu0 0.0
    %3135 = vmatpush1.msra.mxu0 0.0
    %3136 = vmatprep.subr.mxu0 0.0
    %3137 = vmatpush1.msra.mxu0 0.0
    %3138 = vmatprep.subr.mxu0 0.0
    %3139 = vmatpush1.msra.mxu0 0.0
    %3140 = vmatprep.subr.mxu0 0.0
    %3141 = vmatpush1.msra.mxu0 0.0
    %3142 = vmatprep.subr.mxu0 0.0
    %3143 = vmatpush1.msra.mxu0 0.0
    %3144 = vmatprep.subr.mxu0 0.0
    %3145 = vmatpush1.msra.mxu0 0.0
    %3146 = vmatprep.subr.mxu0 0.0
    %3147 = vmatpush1.msra.mxu0 0.0
    %3148 = vmatprep.subr.mxu0 0.0
    %3149 = vmatpush1.msra.mxu0 %v3109
    %3150 = vmatprep.subr.mxu0 0.0
    %3151 = vmatpush1.msra.mxu0 %v3108
    %3152 = vmatprep.subr.mxu0 0.0
    %3153 = vmatpush1.msra.mxu0 %v3107
    %3154 = vmatprep.subr.mxu0 0.0
    %3155 = vmatpush1.msra.mxu0 %v3106
    %3156 = vmatprep.subr.mxu0 0.0
    %3157 = vmatpush2.msra.mxu0 0.0
    %3158 = vmatprep.subr.mxu0 0.0
    %3159 = vmatpush2.msra.mxu0 0.0
    %3160 = vmatprep.subr.mxu0 0.0
    %3161 = vmatpush2.msra.mxu0 0.0
    %3162 = vmatprep.subr.mxu0 0.0
    %3163 = vmatpush2.msra.mxu0 0.0
    %3164 = vmatprep.subr.mxu0 0.0
    %3165 = vmatpush2.msra.mxu0 0.0
    %3166 = vmatprep.subr.mxu0 0.0
    %3167 = vmatpush2.msra.mxu0 0.0
    %3168 = vmatprep.subr.mxu0 0.0
    %3169 = vmatpush2.msra.mxu0 0.0
    %3170 = vmatprep.subr.mxu0 0.0
    %3171 = vmatpush2.msra.mxu0 0.0
    %3172 = vmatprep.subr.mxu0 0.0
    %3173 = vmatpush2.msra.mxu0 0.0
    %3174 = vmatprep.subr.mxu0 0.0
    %3175 = vmatpush2.msra.mxu0 0.0
    %3176 = vmatprep.subr.mxu0 0.0
    %3177 = vmatpush2.msra.mxu0 0.0
    %3178 = vmatprep.subr.mxu0 0.0
    %3179 = vmatpush2.msra.mxu0 0.0
    %3180 = vmatprep.subr.mxu0 0.0
    %3181 = vmatpush2.msra.mxu0 0.0
    %3182 = vmatprep.subr.mxu0 0.0
    %3183 = vmatpush2.msra.mxu0 0.0
    %3184 = vmatprep.subr.mxu0 0.0
    %3185 = vmatpush2.msra.mxu0 0.0
    %3186 = vmatprep.subr.mxu0 0.0
    %3187 = vmatpush2.msra.mxu0 0.0
    %3188 = vmatprep.mubr.f32.mxu0 0.0
    %3189 = vmatmul.mubr.f32.gmra.mxu0 %v3119
    %v3190 = vpop.f32.mrf.mxu0
    %v3191 = vadd.f32 %v3116, %v3190
    %v3192 = vpop.f32.mrf.mxu0
    %3193 = vmatprep.mubr.f32.mxu0 0.0
    %3194 = vmatmul.mubr.f32.gmra.mxu0 %v3122
    %v3195 = vpop.f32.mrf.mxu0
    %v3196 = vadd.f32 %v3116, %v3195
    %v3197 = vpop.f32.mrf.mxu0
    %3198 = vdwg.mxu0
    %s3199 = scalar_lea.vmem %s2, 96
    %v3200 = vld [vmem:[%s3199] sm:$0xff]
    %v3201 = vld [vmem:[%s3199 + $0x8] sm:$0xff]
    %v3202 = vld [vmem:[%s3199 + $0x10] sm:$0xff]
    %v3203 = vld [vmem:[%s3199 + $0x18] sm:$0xff]
    %3204 = vmatprep.subr.mxu0 0.0
    %3205 = vmatpush1.msra.mxu0 0.0
    %3206 = vmatprep.subr.mxu0 0.0
    %3207 = vmatpush1.msra.mxu0 0.0
    %3208 = vmatprep.subr.mxu0 0.0
    %3209 = vmatpush1.msra.mxu0 0.0
    %3210 = vmatprep.subr.mxu0 0.0
    %3211 = vmatpush1.msra.mxu0 0.0
    %3212 = vmatprep.subr.mxu0 0.0
    %3213 = vmatpush1.msra.mxu0 0.0
    %3214 = vmatprep.subr.mxu0 0.0
    %3215 = vmatpush1.msra.mxu0 0.0
    %3216 = vmatprep.subr.mxu0 0.0
    %3217 = vmatpush1.msra.mxu0 0.0
    %3218 = vmatprep.subr.mxu0 0.0
    %3219 = vmatpush1.msra.mxu0 0.0
    %3220 = vmatprep.subr.mxu0 0.0
    %3221 = vmatpush1.msra.mxu0 0.0
    %3222 = vmatprep.subr.mxu0 0.0
    %3223 = vmatpush1.msra.mxu0 0.0
    %3224 = vmatprep.subr.mxu0 0.0
    %3225 = vmatpush1.msra.mxu0 0.0
    %3226 = vmatprep.subr.mxu0 0.0
    %3227 = vmatpush1.msra.mxu0 0.0
    %3228 = vmatprep.subr.mxu0 0.0
    %3229 = vmatpush1.msra.mxu0 %v3203
    %3230 = vmatprep.subr.mxu0 0.0
    %3231 = vmatpush1.msra.mxu0 %v3202
    %3232 = vmatprep.subr.mxu0 0.0
    %3233 = vmatpush1.msra.mxu0 %v3201
    %3234 = vmatprep.subr.mxu0 0.0
    %3235 = vmatpush1.msra.mxu0 %v3200
    %3236 = vmatprep.subr.mxu0 0.0
    %3237 = vmatpush2.msra.mxu0 0.0
    %3238 = vmatprep.subr.mxu0 0.0
    %3239 = vmatpush2.msra.mxu0 0.0
    %3240 = vmatprep.subr.mxu0 0.0
    %3241 = vmatpush2.msra.mxu0 0.0
    %3242 = vmatprep.subr.mxu0 0.0
    %3243 = vmatpush2.msra.mxu0 0.0
    %3244 = vmatprep.subr.mxu0 0.0
    %3245 = vmatpush2.msra.mxu0 0.0
    %3246 = vmatprep.subr.mxu0 0.0
    %3247 = vmatpush2.msra.mxu0 0.0
    %3248 = vmatprep.subr.mxu0 0.0
    %3249 = vmatpush2.msra.mxu0 0.0
    %3250 = vmatprep.subr.mxu0 0.0
    %3251 = vmatpush2.msra.mxu0 0.0
    %3252 = vmatprep.subr.mxu0 0.0
    %3253 = vmatpush2.msra.mxu0 0.0
    %3254 = vmatprep.subr.mxu0 0.0
    %3255 = vmatpush2.msra.mxu0 0.0
    %3256 = vmatprep.subr.mxu0 0.0
    %3257 = vmatpush2.msra.mxu0 0.0
    %3258 = vmatprep.subr.mxu0 0.0
    %3259 = vmatpush2.msra.mxu0 0.0
    %3260 = vmatprep.subr.mxu0 0.0
    %3261 = vmatpush2.msra.mxu0 0.0
    %3262 = vmatprep.subr.mxu0 0.0
    %3263 = vmatpush2.msra.mxu0 0.0
    %3264 = vmatprep.subr.mxu0 0.0
    %3265 = vmatpush2.msra.mxu0 0.0
    %3266 = vmatprep.subr.mxu0 0.0
    %3267 = vmatpush2.msra.mxu0 0.0
    %3268 = vmatprep.mubr.f32.mxu0 0.0
    %3269 = vmatmul.mubr.f32.gmra.mxu0 %v126
    %v3270 = vpop.f32.mrf.mxu0
    %v3271 = vadd.f32 0.0, %v3270
    %v3272 = vpop.f32.mrf.mxu0
    %3273 = vdwg.mxu0
    %v3274 = vadd.f32 %v3191, %v3271
    %v3275 = vtanh.pop %v3274
    %v3276 = vmul.f32 %v3275, 0.5
    %v3277 = vadd.f32 %v3276, 0.5
    %v3278 = vmul.f32 %v3277, 0.0
    %3280 = vrot.lane.b32.xlu0 %v3275, 64
    %v3281 = vpop.permute.xlu0 %3280
    %v3283 = vmul.f32 %v3277, %v3281
    %3285 = vrot.lane.b32.xlu0 %v3283, 32
    %v3286 = vpop.permute.xlu0 %3285
    %v3288 = vadd.f32 %v3278, %v3286
    %v3289 = vtanh.pop %v3288
    %3291 = vrot.lane.b32.xlu0 %v3289, 64
    %v3292 = vpop.permute.xlu0 %3291
    %v3294 = vmul.f32 %v3277, %v3292
    %3296 = vrot.lane.b32.xlu0 %v3294, 32
    %v3297 = vpop.permute.xlu0 %3296
    %v3298 = vsel %vm124, %v3297, 0
    %3300 = vmatprep.subr.mxu0 0.0
    %3301 = vmatpush1.msra.mxu0 0.0
    %3302 = vmatprep.subr.mxu0 0.0
    %3303 = vmatpush1.msra.mxu0 0.0
    %3304 = vmatprep.subr.mxu0 0.0
    %3305 = vmatpush1.msra.mxu0 0.0
    %3306 = vmatprep.subr.mxu0 0.0
    %3307 = vmatpush1.msra.mxu0 0.0
    %3308 = vmatprep.subr.mxu0 0.0
    %3309 = vmatpush1.msra.mxu0 0.0
    %3310 = vmatprep.subr.mxu0 0.0
    %3311 = vmatpush1.msra.mxu0 0.0
    %3312 = vmatprep.subr.mxu0 0.0
    %3313 = vmatpush1.msra.mxu0 0.0
    %3314 = vmatprep.subr.mxu0 0.0
    %3315 = vmatpush1.msra.mxu0 0.0
    %3316 = vmatprep.subr.mxu0 0.0
    %3317 = vmatpush1.msra.mxu0 0.0
    %3318 = vmatprep.subr.mxu0 0.0
    %3319 = vmatpush1.msra.mxu0 0.0
    %3320 = vmatprep.subr.mxu0 0.0
    %3321 = vmatpush1.msra.mxu0 0.0
    %3322 = vmatprep.subr.mxu0 0.0
    %3323 = vmatpush1.msra.mxu0 0.0
    %3324 = vmatprep.subr.mxu0 0.0
    %3325 = vmatpush1.msra.mxu0 %v3203
    %3326 = vmatprep.subr.mxu0 0.0
    %3327 = vmatpush1.msra.mxu0 %v3202
    %3328 = vmatprep.subr.mxu0 0.0
    %3329 = vmatpush1.msra.mxu0 %v3201
    %3330 = vmatprep.subr.mxu0 0.0
    %3331 = vmatpush1.msra.mxu0 %v3200
    %3332 = vmatprep.subr.mxu0 0.0
    %3333 = vmatpush2.msra.mxu0 0.0
    %3334 = vmatprep.subr.mxu0 0.0
    %3335 = vmatpush2.msra.mxu0 0.0
    %3336 = vmatprep.subr.mxu0 0.0
    %3337 = vmatpush2.msra.mxu0 0.0
    %3338 = vmatprep.subr.mxu0 0.0
    %3339 = vmatpush2.msra.mxu0 0.0
    %3340 = vmatprep.subr.mxu0 0.0
    %3341 = vmatpush2.msra.mxu0 0.0
    %3342 = vmatprep.subr.mxu0 0.0
    %3343 = vmatpush2.msra.mxu0 0.0
    %3344 = vmatprep.subr.mxu0 0.0
    %3345 = vmatpush2.msra.mxu0 0.0
    %3346 = vmatprep.subr.mxu0 0.0
    %3347 = vmatpush2.msra.mxu0 0.0
    %3348 = vmatprep.subr.mxu0 0.0
    %3349 = vmatpush2.msra.mxu0 0.0
    %3350 = vmatprep.subr.mxu0 0.0
    %3351 = vmatpush2.msra.mxu0 0.0
    %3352 = vmatprep.subr.mxu0 0.0
    %3353 = vmatpush2.msra.mxu0 0.0
    %3354 = vmatprep.subr.mxu0 0.0
    %3355 = vmatpush2.msra.mxu0 0.0
    %3356 = vmatprep.subr.mxu0 0.0
    %3357 = vmatpush2.msra.mxu0 0.0
    %3358 = vmatprep.subr.mxu0 0.0
    %3359 = vmatpush2.msra.mxu0 0.0
    %3360 = vmatprep.subr.mxu0 0.0
    %3361 = vmatpush2.msra.mxu0 0.0
    %3362 = vmatprep.subr.mxu0 0.0
    %3363 = vmatpush2.msra.mxu0 0.0
    %3364 = vmatprep.mubr.f32.mxu0 0.0
    %3365 = vmatmul.mubr.f32.gmra.mxu0 %v3298
    %v3366 = vpop.f32.mrf.mxu0
    %v3367 = vadd.f32 0.0, %v3366
    %v3368 = vpop.f32.mrf.mxu0
    %3369 = vdwg.mxu0
    %v3371 = vrot.slane %v3367, 6
    %v3373 = vadd.f32 %v3191, %v3371
    %v3374 = vtanh.pop %v3373
    %v3375 = vmul.f32 %v3374, 0.5
    %v3376 = vadd.f32 %v3375, 0.5
    %v3378 = vrot.slane %v3288, 6
    %v3380 = vmul.f32 %v3376, %v3378
    %3382 = vrot.lane.b32.xlu0 %v3374, 64
    %v3383 = vpop.permute.xlu0 %3382
    %v3385 = vmul.f32 %v3376, %v3383
    %3387 = vrot.lane.b32.xlu0 %v3385, 32
    %v3388 = vpop.permute.xlu0 %3387
    %v3390 = vadd.f32 %v3380, %v3388
    %v3391 = vtanh.pop %v3390
    %3393 = vrot.lane.b32.xlu0 %v3391, 64
    %v3394 = vpop.permute.xlu0 %3393
    %v3396 = vmul.f32 %v3376, %v3394
    %v3398 = vrot.slane %v3396, 2
    %3399 = vrot.lane.b32.xlu0 %v3398, 32
    %v3400 = vpop.permute.xlu0 %3399
    %v3401 = vsel %vm124, %v3400, 0
    %3403 = vmatprep.subr.mxu0 0.0
    %3404 = vmatpush1.msra.mxu0 0.0
    %3405 = vmatprep.subr.mxu0 0.0
    %3406 = vmatpush1.msra.mxu0 0.0
    %3407 = vmatprep.subr.mxu0 0.0
    %3408 = vmatpush1.msra.mxu0 0.0
    %3409 = vmatprep.subr.mxu0 0.0
    %3410 = vmatpush1.msra.mxu0 0.0
    %3411 = vmatprep.subr.mxu0 0.0
    %3412 = vmatpush1.msra.mxu0 0.0
    %3413 = vmatprep.subr.mxu0 0.0
    %3414 = vmatpush1.msra.mxu0 0.0
    %3415 = vmatprep.subr.mxu0 0.0
    %3416 = vmatpush1.msra.mxu0 0.0
    %3417 = vmatprep.subr.mxu0 0.0
    %3418 = vmatpush1.msra.mxu0 0.0
    %3419 = vmatprep.subr.mxu0 0.0
    %3420 = vmatpush1.msra.mxu0 0.0
    %3421 = vmatprep.subr.mxu0 0.0
    %3422 = vmatpush1.msra.mxu0 0.0
    %3423 = vmatprep.subr.mxu0 0.0
    %3424 = vmatpush1.msra.mxu0 0.0
    %3425 = vmatprep.subr.mxu0 0.0
    %3426 = vmatpush1.msra.mxu0 0.0
    %3427 = vmatprep.subr.mxu0 0.0
    %3428 = vmatpush1.msra.mxu0 %v3203
    %3429 = vmatprep.subr.mxu0 0.0
    %3430 = vmatpush1.msra.mxu0 %v3202
    %3431 = vmatprep.subr.mxu0 0.0
    %3432 = vmatpush1.msra.mxu0 %v3201
    %3433 = vmatprep.subr.mxu0 0.0
    %3434 = vmatpush1.msra.mxu0 %v3200
    %3435 = vmatprep.subr.mxu0 0.0
    %3436 = vmatpush2.msra.mxu0 0.0
    %3437 = vmatprep.subr.mxu0 0.0
    %3438 = vmatpush2.msra.mxu0 0.0
    %3439 = vmatprep.subr.mxu0 0.0
    %3440 = vmatpush2.msra.mxu0 0.0
    %3441 = vmatprep.subr.mxu0 0.0
    %3442 = vmatpush2.msra.mxu0 0.0
    %3443 = vmatprep.subr.mxu0 0.0
    %3444 = vmatpush2.msra.mxu0 0.0
    %3445 = vmatprep.subr.mxu0 0.0
    %3446 = vmatpush2.msra.mxu0 0.0
    %3447 = vmatprep.subr.mxu0 0.0
    %3448 = vmatpush2.msra.mxu0 0.0
    %3449 = vmatprep.subr.mxu0 0.0
    %3450 = vmatpush2.msra.mxu0 0.0
    %3451 = vmatprep.subr.mxu0 0.0
    %3452 = vmatpush2.msra.mxu0 0.0
    %3453 = vmatprep.subr.mxu0 0.0
    %3454 = vmatpush2.msra.mxu0 0.0
    %3455 = vmatprep.subr.mxu0 0.0
    %3456 = vmatpush2.msra.mxu0 0.0
    %3457 = vmatprep.subr.mxu0 0.0
    %3458 = vmatpush2.msra.mxu0 0.0
    %3459 = vmatprep.subr.mxu0 0.0
    %3460 = vmatpush2.msra.mxu0 0.0
    %3461 = vmatprep.subr.mxu0 0.0
    %3462 = vmatpush2.msra.mxu0 0.0
    %3463 = vmatprep.subr.mxu0 0.0
    %3464 = vmatpush2.msra.mxu0 0.0
    %3465 = vmatprep.subr.mxu0 0.0
    %3466 = vmatpush2.msra.mxu0 0.0
    %3467 = vmatprep.mubr.f32.mxu0 0.0
    %3468 = vmatmul.mubr.f32.gmra.mxu0 %v3401
    %v3469 = vpop.f32.mrf.mxu0
    %v3470 = vadd.f32 0.0, %v3469
    %v3471 = vpop.f32.mrf.mxu0
    %3472 = vdwg.mxu0
    %v3474 = vrot.slane %v3470, 4
    %v3476 = vadd.f32 %v3191, %v3474
    %v3477 = vtanh.pop %v3476
    %v3478 = vmul.f32 %v3477, 0.5
    %v3479 = vadd.f32 %v3478, 0.5
    %v3481 = vrot.slane %v3390, 6
    %v3483 = vmul.f32 %v3479, %v3481
    %3485 = vrot.lane.b32.xlu0 %v3477, 64
    %v3486 = vpop.permute.xlu0 %3485
    %v3488 = vmul.f32 %v3479, %v3486
    %3490 = vrot.lane.b32.xlu0 %v3488, 32
    %v3491 = vpop.permute.xlu0 %3490
    %v3493 = vadd.f32 %v3483, %v3491
    %v3494 = vtanh.pop %v3493
    %3496 = vrot.lane.b32.xlu0 %v3494, 64
    %v3497 = vpop.permute.xlu0 %3496
    %v3499 = vmul.f32 %v3479, %v3497
    %v3501 = vrot.slane %v3499, 4
    %3502 = vrot.lane.b32.xlu0 %v3501, 32
    %v3503 = vpop.permute.xlu0 %3502
    %v3504 = vsel %vm124, %v3503, 0
    %3506 = vmatprep.subr.mxu0 0.0
    %3507 = vmatpush1.msra.mxu0 0.0
    %3508 = vmatprep.subr.mxu0 0.0
    %3509 = vmatpush1.msra.mxu0 0.0
    %3510 = vmatprep.subr.mxu0 0.0
    %3511 = vmatpush1.msra.mxu0 0.0
    %3512 = vmatprep.subr.mxu0 0.0
    %3513 = vmatpush1.msra.mxu0 0.0
    %3514 = vmatprep.subr.mxu0 0.0
    %3515 = vmatpush1.msra.mxu0 0.0
    %3516 = vmatprep.subr.mxu0 0.0
    %3517 = vmatpush1.msra.mxu0 0.0
    %3518 = vmatprep.subr.mxu0 0.0
    %3519 = vmatpush1.msra.mxu0 0.0
    %3520 = vmatprep.subr.mxu0 0.0
    %3521 = vmatpush1.msra.mxu0 0.0
    %3522 = vmatprep.subr.mxu0 0.0
    %3523 = vmatpush1.msra.mxu0 0.0
    %3524 = vmatprep.subr.mxu0 0.0
    %3525 = vmatpush1.msra.mxu0 0.0
    %3526 = vmatprep.subr.mxu0 0.0
    %3527 = vmatpush1.msra.mxu0 0.0
    %3528 = vmatprep.subr.mxu0 0.0
    %3529 = vmatpush1.msra.mxu0 0.0
    %3530 = vmatprep.subr.mxu0 0.0
    %3531 = vmatpush1.msra.mxu0 %v3203
    %3532 = vmatprep.subr.mxu0 0.0
    %3533 = vmatpush1.msra.mxu0 %v3202
    %3534 = vmatprep.subr.mxu0 0.0
    %3535 = vmatpush1.msra.mxu0 %v3201
    %3536 = vmatprep.subr.mxu0 0.0
    %3537 = vmatpush1.msra.mxu0 %v3200
    %3538 = vmatprep.subr.mxu0 0.0
    %3539 = vmatpush2.msra.mxu0 0.0
    %3540 = vmatprep.subr.mxu0 0.0
    %3541 = vmatpush2.msra.mxu0 0.0
    %3542 = vmatprep.subr.mxu0 0.0
    %3543 = vmatpush2.msra.mxu0 0.0
    %3544 = vmatprep.subr.mxu0 0.0
    %3545 = vmatpush2.msra.mxu0 0.0
    %3546 = vmatprep.subr.mxu0 0.0
    %3547 = vmatpush2.msra.mxu0 0.0
    %3548 = vmatprep.subr.mxu0 0.0
    %3549 = vmatpush2.msra.mxu0 0.0
    %3550 = vmatprep.subr.mxu0 0.0
    %3551 = vmatpush2.msra.mxu0 0.0
    %3552 = vmatprep.subr.mxu0 0.0
    %3553 = vmatpush2.msra.mxu0 0.0
    %3554 = vmatprep.subr.mxu0 0.0
    %3555 = vmatpush2.msra.mxu0 0.0
    %3556 = vmatprep.subr.mxu0 0.0
    %3557 = vmatpush2.msra.mxu0 0.0
    %3558 = vmatprep.subr.mxu0 0.0
    %3559 = vmatpush2.msra.mxu0 0.0
    %3560 = vmatprep.subr.mxu0 0.0
    %3561 = vmatpush2.msra.mxu0 0.0
    %3562 = vmatprep.subr.mxu0 0.0
    %3563 = vmatpush2.msra.mxu0 0.0
    %3564 = vmatprep.subr.mxu0 0.0
    %3565 = vmatpush2.msra.mxu0 0.0
    %3566 = vmatprep.subr.mxu0 0.0
    %3567 = vmatpush2.msra.mxu0 0.0
    %3568 = vmatprep.subr.mxu0 0.0
    %3569 = vmatpush2.msra.mxu0 0.0
    %3570 = vmatprep.mubr.f32.mxu0 0.0
    %3571 = vmatmul.mubr.f32.gmra.mxu0 %v3504
    %v3572 = vpop.f32.mrf.mxu0
    %v3573 = vadd.f32 0.0, %v3572
    %v3574 = vpop.f32.mrf.mxu0
    %3575 = vdwg.mxu0
    %v3577 = vrot.slane %v3573, 2
    %v3579 = vadd.f32 %v3191, %v3577
    %v3580 = vtanh.pop %v3579
    %v3581 = vmul.f32 %v3580, 0.5
    %v3582 = vadd.f32 %v3581, 0.5
    %v3584 = vrot.slane %v3493, 6
    %v3586 = vmul.f32 %v3582, %v3584
    %3588 = vrot.lane.b32.xlu0 %v3580, 64
    %v3589 = vpop.permute.xlu0 %3588
    %v3591 = vmul.f32 %v3582, %v3589
    %3593 = vrot.lane.b32.xlu0 %v3591, 32
    %v3594 = vpop.permute.xlu0 %3593
    %v3596 = vadd.f32 %v3586, %v3594
    %v3597 = vtanh.pop %v3596
    %3599 = vrot.lane.b32.xlu0 %v3597, 64
    %v3600 = vpop.permute.xlu0 %3599
    %v3602 = vmul.f32 %v3582, %v3600
    %v3604 = vrot.slane %v3602, 6
    %3605 = vrot.lane.b32.xlu0 %v3604, 32
    %v3606 = vpop.permute.xlu0 %3605
    %v3607 = vsel %vm124, %v3606, 0
    %3609 = vmatprep.subr.mxu0 0.0
    %3610 = vmatpush1.msra.mxu0 0.0
    %3611 = vmatprep.subr.mxu0 0.0
    %3612 = vmatpush1.msra.mxu0 0.0
    %3613 = vmatprep.subr.mxu0 0.0
    %3614 = vmatpush1.msra.mxu0 0.0
    %3615 = vmatprep.subr.mxu0 0.0
    %3616 = vmatpush1.msra.mxu0 0.0
    %3617 = vmatprep.subr.mxu0 0.0
    %3618 = vmatpush1.msra.mxu0 0.0
    %3619 = vmatprep.subr.mxu0 0.0
    %3620 = vmatpush1.msra.mxu0 0.0
    %3621 = vmatprep.subr.mxu0 0.0
    %3622 = vmatpush1.msra.mxu0 0.0
    %3623 = vmatprep.subr.mxu0 0.0
    %3624 = vmatpush1.msra.mxu0 0.0
    %3625 = vmatprep.subr.mxu0 0.0
    %3626 = vmatpush1.msra.mxu0 0.0
    %3627 = vmatprep.subr.mxu0 0.0
    %3628 = vmatpush1.msra.mxu0 0.0
    %3629 = vmatprep.subr.mxu0 0.0
    %3630 = vmatpush1.msra.mxu0 0.0
    %3631 = vmatprep.subr.mxu0 0.0
    %3632 = vmatpush1.msra.mxu0 0.0
    %3633 = vmatprep.subr.mxu0 0.0
    %3634 = vmatpush1.msra.mxu0 %v3203
    %3635 = vmatprep.subr.mxu0 0.0
    %3636 = vmatpush1.msra.mxu0 %v3202
    %3637 = vmatprep.subr.mxu0 0.0
    %3638 = vmatpush1.msra.mxu0 %v3201
    %3639 = vmatprep.subr.mxu0 0.0
    %3640 = vmatpush1.msra.mxu0 %v3200
    %3641 = vmatprep.subr.mxu0 0.0
    %3642 = vmatpush2.msra.mxu0 0.0
    %3643 = vmatprep.subr.mxu0 0.0
    %3644 = vmatpush2.msra.mxu0 0.0
    %3645 = vmatprep.subr.mxu0 0.0
    %3646 = vmatpush2.msra.mxu0 0.0
    %3647 = vmatprep.subr.mxu0 0.0
    %3648 = vmatpush2.msra.mxu0 0.0
    %3649 = vmatprep.subr.mxu0 0.0
    %3650 = vmatpush2.msra.mxu0 0.0
    %3651 = vmatprep.subr.mxu0 0.0
    %3652 = vmatpush2.msra.mxu0 0.0
    %3653 = vmatprep.subr.mxu0 0.0
    %3654 = vmatpush2.msra.mxu0 0.0
    %3655 = vmatprep.subr.mxu0 0.0
    %3656 = vmatpush2.msra.mxu0 0.0
    %3657 = vmatprep.subr.mxu0 0.0
    %3658 = vmatpush2.msra.mxu0 0.0
    %3659 = vmatprep.subr.mxu0 0.0
    %3660 = vmatpush2.msra.mxu0 0.0
    %3661 = vmatprep.subr.mxu0 0.0
    %3662 = vmatpush2.msra.mxu0 0.0
    %3663 = vmatprep.subr.mxu0 0.0
    %3664 = vmatpush2.msra.mxu0 0.0
    %3665 = vmatprep.subr.mxu0 0.0
    %3666 = vmatpush2.msra.mxu0 0.0
    %3667 = vmatprep.subr.mxu0 0.0
    %3668 = vmatpush2.msra.mxu0 0.0
    %3669 = vmatprep.subr.mxu0 0.0
    %3670 = vmatpush2.msra.mxu0 0.0
    %3671 = vmatprep.subr.mxu0 0.0
    %3672 = vmatpush2.msra.mxu0 0.0
    %3673 = vmatprep.mubr.f32.mxu0 0.0
    %3674 = vmatmul.mubr.f32.gmra.mxu0 %v3607
    %v3675 = vpop.f32.mrf.mxu0
    %v3676 = vadd.f32 0.0, %v3675
    %v3677 = vpop.f32.mrf.mxu0
    %3678 = vdwg.mxu0
    %v3679 = vadd.f32 %v3196, %v3676
    %v3680 = vtanh.pop %v3679
    %v3681 = vmul.f32 %v3680, 0.5
    %v3682 = vadd.f32 %v3681, 0.5
    %v3684 = vrot.slane %v3596, 6
    %v3686 = vmul.f32 %v3682, %v3684
    %3688 = vrot.lane.b32.xlu0 %v3680, 64
    %v3689 = vpop.permute.xlu0 %3688
    %v3691 = vmul.f32 %v3682, %v3689
    %3693 = vrot.lane.b32.xlu0 %v3691, 32
    %v3694 = vpop.permute.xlu0 %3693
    %v3696 = vadd.f32 %v3686, %v3694
    %v3697 = vtanh.pop %v3696
    %3699 = vrot.lane.b32.xlu0 %v3697, 64
    %v3700 = vpop.permute.xlu0 %3699
    %v3702 = vmul.f32 %v3682, %v3700
    %3704 = vrot.lane.b32.xlu0 %v3702, 32
    %v3705 = vpop.permute.xlu0 %3704
    %v3706 = vsel %vm124, %v3705, 0
    %3708 = vmatprep.subr.mxu0 0.0
    %3709 = vmatpush1.msra.mxu0 0.0
    %3710 = vmatprep.subr.mxu0 0.0
    %3711 = vmatpush1.msra.mxu0 0.0
    %3712 = vmatprep.subr.mxu0 0.0
    %3713 = vmatpush1.msra.mxu0 0.0
    %3714 = vmatprep.subr.mxu0 0.0
    %3715 = vmatpush1.msra.mxu0 0.0
    %3716 = vmatprep.subr.mxu0 0.0
    %3717 = vmatpush1.msra.mxu0 0.0
    %3718 = vmatprep.subr.mxu0 0.0
    %3719 = vmatpush1.msra.mxu0 0.0
    %3720 = vmatprep.subr.mxu0 0.0
    %3721 = vmatpush1.msra.mxu0 0.0
    %3722 = vmatprep.subr.mxu0 0.0
    %3723 = vmatpush1.msra.mxu0 0.0
    %3724 = vmatprep.subr.mxu0 0.0
    %3725 = vmatpush1.msra.mxu0 0.0
    %3726 = vmatprep.subr.mxu0 0.0
    %3727 = vmatpush1.msra.mxu0 0.0
    %3728 = vmatprep.subr.mxu0 0.0
    %3729 = vmatpush1.msra.mxu0 0.0
    %3730 = vmatprep.subr.mxu0 0.0
    %3731 = vmatpush1.msra.mxu0 0.0
    %3732 = vmatprep.subr.mxu0 0.0
    %3733 = vmatpush1.msra.mxu0 %v3203
    %3734 = vmatprep.subr.mxu0 0.0
    %3735 = vmatpush1.msra.mxu0 %v3202
    %3736 = vmatprep.subr.mxu0 0.0
    %3737 = vmatpush1.msra.mxu0 %v3201
    %3738 = vmatprep.subr.mxu0 0.0
    %3739 = vmatpush1.msra.mxu0 %v3200
    %3740 = vmatprep.subr.mxu0 0.0
    %3741 = vmatpush2.msra.mxu0 0.0
    %3742 = vmatprep.subr.mxu0 0.0
    %3743 = vmatpush2.msra.mxu0 0.0
    %3744 = vmatprep.subr.mxu0 0.0
    %3745 = vmatpush2.msra.mxu0 0.0
    %3746 = vmatprep.subr.mxu0 0.0
    %3747 = vmatpush2.msra.mxu0 0.0
    %3748 = vmatprep.subr.mxu0 0.0
    %3749 = vmatpush2.msra.mxu0 0.0
    %3750 = vmatprep.subr.mxu0 0.0
    %3751 = vmatpush2.msra.mxu0 0.0
    %3752 = vmatprep.subr.mxu0 0.0
    %3753 = vmatpush2.msra.mxu0 0.0
    %3754 = vmatprep.subr.mxu0 0.0
    %3755 = vmatpush2.msra.mxu0 0.0
    %3756 = vmatprep.subr.mxu0 0.0
    %3757 = vmatpush2.msra.mxu0 0.0
    %3758 = vmatprep.subr.mxu0 0.0
    %3759 = vmatpush2.msra.mxu0 0.0
    %3760 = vmatprep.subr.mxu0 0.0
    %3761 = vmatpush2.msra.mxu0 0.0
    %3762 = vmatprep.subr.mxu0 0.0
    %3763 = vmatpush2.msra.mxu0 0.0
    %3764 = vmatprep.subr.mxu0 0.0
    %3765 = vmatpush2.msra.mxu0 0.0
    %3766 = vmatprep.subr.mxu0 0.0
    %3767 = vmatpush2.msra.mxu0 0.0
    %3768 = vmatprep.subr.mxu0 0.0
    %3769 = vmatpush2.msra.mxu0 0.0
    %3770 = vmatprep.subr.mxu0 0.0
    %3771 = vmatpush2.msra.mxu0 0.0
    %3772 = vmatprep.mubr.f32.mxu0 0.0
    %3773 = vmatmul.mubr.f32.gmra.mxu0 %v3706
    %v3774 = vpop.f32.mrf.mxu0
    %v3775 = vadd.f32 0.0, %v3774
    %v3776 = vpop.f32.mrf.mxu0
    %3777 = vdwg.mxu0
    %v3779 = vrot.slane %v3775, 6
    %v3781 = vadd.f32 %v3196, %v3779
    %v3782 = vtanh.pop %v3781
    %v3783 = vmul.f32 %v3782, 0.5
    %v3784 = vadd.f32 %v3783, 0.5
    %v3786 = vrot.slane %v3696, 6
    %v3788 = vmul.f32 %v3784, %v3786
    %3790 = vrot.lane.b32.xlu0 %v3782, 64
    %v3791 = vpop.permute.xlu0 %3790
    %v3793 = vmul.f32 %v3784, %v3791
    %3795 = vrot.lane.b32.xlu0 %v3793, 32
    %v3796 = vpop.permute.xlu0 %3795
    %v3798 = vadd.f32 %v3788, %v3796
    %v3799 = vtanh.pop %v3798
    %3801 = vrot.lane.b32.xlu0 %v3799, 64
    %v3802 = vpop.permute.xlu0 %3801
    %v3804 = vmul.f32 %v3784, %v3802
    %v3806 = vrot.slane %v3804, 2
    %3807 = vrot.lane.b32.xlu0 %v3806, 32
    %v3808 = vpop.permute.xlu0 %3807
    %v3809 = vsel %vm124, %v3808, 0
    %3811 = vmatprep.subr.mxu0 0.0
    %3812 = vmatpush1.msra.mxu0 0.0
    %3813 = vmatprep.subr.mxu0 0.0
    %3814 = vmatpush1.msra.mxu0 0.0
    %3815 = vmatprep.subr.mxu0 0.0
    %3816 = vmatpush1.msra.mxu0 0.0
    %3817 = vmatprep.subr.mxu0 0.0
    %3818 = vmatpush1.msra.mxu0 0.0
    %3819 = vmatprep.subr.mxu0 0.0
    %3820 = vmatpush1.msra.mxu0 0.0
    %3821 = vmatprep.subr.mxu0 0.0
    %3822 = vmatpush1.msra.mxu0 0.0
    %3823 = vmatprep.subr.mxu0 0.0
    %3824 = vmatpush1.msra.mxu0 0.0
    %3825 = vmatprep.subr.mxu0 0.0
    %3826 = vmatpush1.msra.mxu0 0.0
    %3827 = vmatprep.subr.mxu0 0.0
    %3828 = vmatpush1.msra.mxu0 0.0
    %3829 = vmatprep.subr.mxu0 0.0
    %3830 = vmatpush1.msra.mxu0 0.0
    %3831 = vmatprep.subr.mxu0 0.0
    %3832 = vmatpush1.msra.mxu0 0.0
    %3833 = vmatprep.subr.mxu0 0.0
    %3834 = vmatpush1.msra.mxu0 0.0
    %3835 = vmatprep.subr.mxu0 0.0
    %3836 = vmatpush1.msra.mxu0 %v3203
    %3837 = vmatprep.subr.mxu0 0.0
    %3838 = vmatpush1.msra.mxu0 %v3202
    %3839 = vmatprep.subr.mxu0 0.0
    %3840 = vmatpush1.msra.mxu0 %v3201
    %3841 = vmatprep.subr.mxu0 0.0
    %3842 = vmatpush1.msra.mxu0 %v3200
    %3843 = vmatprep.subr.mxu0 0.0
    %3844 = vmatpush2.msra.mxu0 0.0
    %3845 = vmatprep.subr.mxu0 0.0
    %3846 = vmatpush2.msra.mxu0 0.0
    %3847 = vmatprep.subr.mxu0 0.0
    %3848 = vmatpush2.msra.mxu0 0.0
    %3849 = vmatprep.subr.mxu0 0.0
    %3850 = vmatpush2.msra.mxu0 0.0
    %3851 = vmatprep.subr.mxu0 0.0
    %3852 = vmatpush2.msra.mxu0 0.0
    %3853 = vmatprep.subr.mxu0 0.0
    %3854 = vmatpush2.msra.mxu0 0.0
    %3855 = vmatprep.subr.mxu0 0.0
    %3856 = vmatpush2.msra.mxu0 0.0
    %3857 = vmatprep.subr.mxu0 0.0
    %3858 = vmatpush2.msra.mxu0 0.0
    %3859 = vmatprep.subr.mxu0 0.0
    %3860 = vmatpush2.msra.mxu0 0.0
    %3861 = vmatprep.subr.mxu0 0.0
    %3862 = vmatpush2.msra.mxu0 0.0
    %3863 = vmatprep.subr.mxu0 0.0
    %3864 = vmatpush2.msra.mxu0 0.0
    %3865 = vmatprep.subr.mxu0 0.0
    %3866 = vmatpush2.msra.mxu0 0.0
    %3867 = vmatprep.subr.mxu0 0.0
    %3868 = vmatpush2.msra.mxu0 0.0
    %3869 = vmatprep.subr.mxu0 0.0
    %3870 = vmatpush2.msra.mxu0 0.0
    %3871 = vmatprep.subr.mxu0 0.0
    %3872 = vmatpush2.msra.mxu0 0.0
    %3873 = vmatprep.subr.mxu0 0.0
    %3874 = vmatpush2.msra.mxu0 0.0
    %3875 = vmatprep.mubr.f32.mxu0 0.0
    %3876 = vmatmul.mubr.f32.gmra.mxu0 %v3809
    %v3877 = vpop.f32.mrf.mxu0
    %v3878 = vadd.f32 0.0, %v3877
    %v3879 = vpop.f32.mrf.mxu0
    %3880 = vdwg.mxu0
    %v3882 = vrot.slane %v3878, 4
    %v3884 = vadd.f32 %v3196, %v3882
    %v3885 = vtanh.pop %v3884
    %v3886 = vmul.f32 %v3885, 0.5
    %v3887 = vadd.f32 %v3886, 0.5
    %v3889 = vrot.slane %v3798, 6
    %v3891 = vmul.f32 %v3887, %v3889
    %3893 = vrot.lane.b32.xlu0 %v3885, 64
    %v3894 = vpop.permute.xlu0 %3893
    %v3896 = vmul.f32 %v3887, %v3894
    %3898 = vrot.lane.b32.xlu0 %v3896, 32
    %v3899 = vpop.permute.xlu0 %3898
    %v3901 = vadd.f32 %v3891, %v3899
    %v3902 = vtanh.pop %v3901
    %3904 = vrot.lane.b32.xlu0 %v3902, 64
    %v3905 = vpop.permute.xlu0 %3904
    %v3907 = vmul.f32 %v3887, %v3905
    %v3909 = vrot.slane %v3907, 4
    %3910 = vrot.lane.b32.xlu0 %v3909, 32
    %v3911 = vpop.permute.xlu0 %3910
    %v3912 = vsel %vm124, %v3911, 0
    %3914 = vmatprep.subr.mxu0 0.0
    %3915 = vmatpush1.msra.mxu0 0.0
    %3916 = vmatprep.subr.mxu0 0.0
    %3917 = vmatpush1.msra.mxu0 0.0
    %3918 = vmatprep.subr.mxu0 0.0
    %3919 = vmatpush1.msra.mxu0 0.0
    %3920 = vmatprep.subr.mxu0 0.0
    %3921 = vmatpush1.msra.mxu0 0.0
    %3922 = vmatprep.subr.mxu0 0.0
    %3923 = vmatpush1.msra.mxu0 0.0
    %3924 = vmatprep.subr.mxu0 0.0
    %3925 = vmatpush1.msra.mxu0 0.0
    %3926 = vmatprep.subr.mxu0 0.0
    %3927 = vmatpush1.msra.mxu0 0.0
    %3928 = vmatprep.subr.mxu0 0.0
    %3929 = vmatpush1.msra.mxu0 0.0
    %3930 = vmatprep.subr.mxu0 0.0
    %3931 = vmatpush1.msra.mxu0 0.0
    %3932 = vmatprep.subr.mxu0 0.0
    %3933 = vmatpush1.msra.mxu0 0.0
    %3934 = vmatprep.subr.mxu0 0.0
    %3935 = vmatpush1.msra.mxu0 0.0
    %3936 = vmatprep.subr.mxu0 0.0
    %3937 = vmatpush1.msra.mxu0 0.0
    %3938 = vmatprep.subr.mxu0 0.0
    %3939 = vmatpush1.msra.mxu0 %v3203
    %3940 = vmatprep.subr.mxu0 0.0
    %3941 = vmatpush1.msra.mxu0 %v3202
    %3942 = vmatprep.subr.mxu0 0.0
    %3943 = vmatpush1.msra.mxu0 %v3201
    %3944 = vmatprep.subr.mxu0 0.0
    %3945 = vmatpush1.msra.mxu0 %v3200
    %3946 = vmatprep.subr.mxu0 0.0
    %3947 = vmatpush2.msra.mxu0 0.0
    %3948 = vmatprep.subr.mxu0 0.0
    %3949 = vmatpush2.msra.mxu0 0.0
    %3950 = vmatprep.subr.mxu0 0.0
    %3951 = vmatpush2.msra.mxu0 0.0
    %3952 = vmatprep.subr.mxu0 0.0
    %3953 = vmatpush2.msra.mxu0 0.0
    %3954 = vmatprep.subr.mxu0 0.0
    %3955 = vmatpush2.msra.mxu0 0.0
    %3956 = vmatprep.subr.mxu0 0.0
    %3957 = vmatpush2.msra.mxu0 0.0
    %3958 = vmatprep.subr.mxu0 0.0
    %3959 = vmatpush2.msra.mxu0 0.0
    %3960 = vmatprep.subr.mxu0 0.0
    %3961 = vmatpush2.msra.mxu0 0.0
    %3962 = vmatprep.subr.mxu0 0.0
    %3963 = vmatpush2.msra.mxu0 0.0
    %3964 = vmatprep.subr.mxu0 0.0
    %3965 = vmatpush2.msra.mxu0 0.0
    %3966 = vmatprep.subr.mxu0 0.0
    %3967 = vmatpush2.msra.mxu0 0.0
    %3968 = vmatprep.subr.mxu0 0.0
    %3969 = vmatpush2.msra.mxu0 0.0
    %3970 = vmatprep.subr.mxu0 0.0
    %3971 = vmatpush2.msra.mxu0 0.0
    %3972 = vmatprep.subr.mxu0 0.0
    %3973 = vmatpush2.msra.mxu0 0.0
    %3974 = vmatprep.subr.mxu0 0.0
    %3975 = vmatpush2.msra.mxu0 0.0
    %3976 = vmatprep.subr.mxu0 0.0
    %3977 = vmatpush2.msra.mxu0 0.0
    %3978 = vmatprep.mubr.f32.mxu0 0.0
    %3979 = vmatmul.mubr.f32.gmra.mxu0 %v3912
    %v3980 = vpop.f32.mrf.mxu0
    %v3981 = vadd.f32 0.0, %v3980
    %v3982 = vpop.f32.mrf.mxu0
    %3983 = vdwg.mxu0
    %v3985 = vrot.slane %v3981, 2
    %v3987 = vadd.f32 %v3196, %v3985
    %v3988 = vtanh.pop %v3987
    %v3989 = vmul.f32 %v3988, 0.5
    %v3990 = vadd.f32 %v3989, 0.5
    %v3992 = vrot.slane %v3901, 6
    %v3994 = vmul.f32 %v3990, %v3992
    %3996 = vrot.lane.b32.xlu0 %v3988, 64
    %v3997 = vpop.permute.xlu0 %3996
    %v3999 = vmul.f32 %v3990, %v3997
    %4001 = vrot.lane.b32.xlu0 %v3999, 32
    %v4002 = vpop.permute.xlu0 %4001
    %v4004 = vadd.f32 %v3994, %v4002
    %v4005 = vtanh.pop %v4004
    %4007 = vrot.lane.b32.xlu0 %v4005, 64
    %v4008 = vpop.permute.xlu0 %4007
    %v4010 = vmul.f32 %v3990, %v4008
    %v4011 = vld [vmem:[%s5] sm:$0xff]
    %v4012 = vld [vmem:[%s5 + $0x8] sm:$0xff]
    %v4013 = vld [vmem:[%s5 + $0x10] sm:$0xff]
    %v4014 = vld [vmem:[%s5 + $0x18] sm:$0xff]
    %v4015 = vld [vmem:[%s6] sm:$0x1]
    %v4017 = vlaneseq
    %v4018 = vshrl.u32 %v4017, 7
    %v4019 = vsub.s32 0, %v4018
    %v4020 = vrot.slane %v4015, %v4019
    %v4023 = vrot.slane %v4010, 6
    %4024 = vrot.lane.b32.xlu0 %v4023, 32
    %v4025 = vpop.permute.xlu0 %4024
    %v4026 = vsel %vm124, %v4025, 0
    %4028 = vmatprep.subr.mxu0 0.0
    %4029 = vmatpush1.msra.mxu0 0.0
    %4030 = vmatprep.subr.mxu0 0.0
    %4031 = vmatpush1.msra.mxu0 0.0
    %4032 = vmatprep.subr.mxu0 0.0
    %4033 = vmatpush1.msra.mxu0 0.0
    %4034 = vmatprep.subr.mxu0 0.0
    %4035 = vmatpush1.msra.mxu0 0.0
    %4036 = vmatprep.subr.mxu0 0.0
    %4037 = vmatpush1.msra.mxu0 0.0
    %4038 = vmatprep.subr.mxu0 0.0
    %4039 = vmatpush1.msra.mxu0 0.0
    %4040 = vmatprep.subr.mxu0 0.0
    %4041 = vmatpush1.msra.mxu0 0.0
    %4042 = vmatprep.subr.mxu0 0.0
    %4043 = vmatpush1.msra.mxu0 0.0
    %4044 = vmatprep.subr.mxu0 0.0
    %4045 = vmatpush1.msra.mxu0 0.0
    %4046 = vmatprep.subr.mxu0 0.0
    %4047 = vmatpush1.msra.mxu0 0.0
    %4048 = vmatprep.subr.mxu0 0.0
    %4049 = vmatpush1.msra.mxu0 0.0
    %4050 = vmatprep.subr.mxu0 0.0
    %4051 = vmatpush1.msra.mxu0 0.0
    %4052 = vmatprep.subr.mxu0 0.0
    %4053 = vmatpush1.msra.mxu0 %v4014
    %4054 = vmatprep.subr.mxu0 0.0
    %4055 = vmatpush1.msra.mxu0 %v4013
    %4056 = vmatprep.subr.mxu0 0.0
    %4057 = vmatpush1.msra.mxu0 %v4012
    %4058 = vmatprep.subr.mxu0 0.0
    %4059 = vmatpush1.msra.mxu0 %v4011
    %4060 = vmatprep.subr.mxu0 0.0
    %4061 = vmatpush2.msra.mxu0 0.0
    %4062 = vmatprep.subr.mxu0 0.0
    %4063 = vmatpush2.msra.mxu0 0.0
    %4064 = vmatprep.subr.mxu0 0.0
    %4065 = vmatpush2.msra.mxu0 0.0
    %4066 = vmatprep.subr.mxu0 0.0
    %4067 = vmatpush2.msra.mxu0 0.0
    %4068 = vmatprep.subr.mxu0 0.0
    %4069 = vmatpush2.msra.mxu0 0.0
    %4070 = vmatprep.subr.mxu0 0.0
    %4071 = vmatpush2.msra.mxu0 0.0
    %4072 = vmatprep.subr.mxu0 0.0
    %4073 = vmatpush2.msra.mxu0 0.0
    %4074 = vmatprep.subr.mxu0 0.0
    %4075 = vmatpush2.msra.mxu0 0.0
    %4076 = vmatprep.subr.mxu0 0.0
    %4077 = vmatpush2.msra.mxu0 0.0
    %4078 = vmatprep.subr.mxu0 0.0
    %4079 = vmatpush2.msra.mxu0 0.0
    %4080 = vmatprep.subr.mxu0 0.0
    %4081 = vmatpush2.msra.mxu0 0.0
    %4082 = vmatprep.subr.mxu0 0.0
    %4083 = vmatpush2.msra.mxu0 0.0
    %4084 = vmatprep.subr.mxu0 0.0
    %4085 = vmatpush2.msra.mxu0 0.0
    %4086 = vmatprep.subr.mxu0 0.0
    %4087 = vmatpush2.msra.mxu0 0.0
    %4088 = vmatprep.subr.mxu0 0.0
    %4089 = vmatpush2.msra.mxu0 0.0
    %4090 = vmatprep.subr.mxu0 0.0
    %4091 = vmatpush2.msra.mxu0 0.0
    %4092 = vmatprep.mubr.f32.mxu0 0.0
    %4093 = vmatmul.mubr.f32.gmra.mxu0 %v4026
    %v4094 = vpop.f32.mrf.mxu0
    %v4095 = vadd.f32 %v4020, %v4094
    %v4096 = vpop.f32.mrf.mxu0
    %4097 = vdwg.mxu0
    %vm4098 = vcmask 25600
    %4099 = vst.msk [vmem:[#allocation3] sm:$0x3] %vm4098, %v4095
    // Predicated region
    $region30: #{sensor_network_forward.1} parent=1 // pred_check
      _
    $region31: #{sensor_network_forward.1} parent=1 // pred_check_branch
      %4101 = sbr.rel (0) target = $region33
    $region32: #{sensor_network_forward.1} parent=1 // pred_region
      %s4103 = ssub.s32 32, 32
      %4104 = vsyncadd [#allocation4], %s4103
      %s4106 = sshll.u32 [#allocation3], 4
      %s4107 = int_to_ptr.vmem [resolvable:$true] %s4106
      %4109 = dma.vmem_to_hbm [thread:$0]  %s4107, 32, %s7, [#allocation4]
    $region33: #{sensor_network_forward.1} parent=1 // pred_fallthru
      _
    // Predicated region
    $region34: #{sensor_network_forward.1} parent=1 // pred_check
      _
    $region35: #{sensor_network_forward.1} parent=1 // pred_check_branch
      %4111 = sbr.rel (0) target = $region37
    $region36: #{sensor_network_forward.1} parent=1 // pred_region
      %4112 = dma.done [#allocation4], 32
    $region37: #{sensor_network_forward.1} parent=1 // pred_fallthru
      _
    %4113 = vsyncpa [#allocation4], 1

</llo_original>
